<compile_context>
chip_gen: v7x
topology: tpu7x:2x2x1
jax: 0.10.0
libtpu: 0.0.40
codegen_flags: <defaults>
</compile_context>

<pallas_src>
import jax
import jax.numpy as jnp
from jax.experimental import pallas as pl
from jax.experimental.pallas import tpu as pltpu

# ---------------- small, synthetic configuration ----------------
B = 2              # batch
IN_DIM = 128       # backbone feature dim (module default: 384)
T_DIM = 256        # teacher feature dim  (module default: 512)
DIM = 128          # transformer dim      (deit_tiny: 192)
HEADS = 2          # attention heads      (deit_tiny: 3)
HEAD_DIM = DIM // HEADS
DEPTH = 2          # transformer blocks   (deit_tiny: 12)
MLP_DIM = 4 * DIM
NUM_CLASSES = 128  # module default: 345
CLIP_DIM = 128     # module default: 512
N_TEXT = 16        # rows of text_features in UnitClassifier2
SEQ = 3            # cls_token + f_b + f_t
SEQ_PAD = 4        # tokens per batch padded so B*SEQ_PAD == 8 sublanes
TOK = B * SEQ_PAD  # 8 -> one full (8,128) tile
N_PAD = 128        # clip-logit block padded to a full 128-lane width

HEAD_PAD = 128                      # each head's q/k/v padded to a 128-lane block
QKV_PAD = HEADS * 3 * HEAD_PAD      # 768: padded qkv projection width
HEAD_OUT = NUM_CLASSES + CLIP_DIM   # 256: merged fc|fc2 output width
OUT_W = NUM_CLASSES + N_PAD         # 256: kernel output slab width
PRE_VEC_W = max(DIM, HEAD_OUT)      # 256: width of the pre/post vector slab


# ---------------- shared math (kernel AND matched reference) ----------------
def _ln(x, g, b, eps):
    mu = jnp.mean(x, axis=-1, keepdims=True)
    var = jnp.mean((x - mu) ** 2, axis=-1, keepdims=True)
    return (x - mu) * jax.lax.rsqrt(var + eps) * g + b


def _mm(a, b):
    """bf16 x bf16 -> f32 accumulation (single-pass MXU matmul)."""
    return jnp.dot(a.astype(jnp.bfloat16), b.astype(jnp.bfloat16),
                   preferred_element_type=jnp.float32)


def _attn_mask_bias():
    """Additive block-diagonal mask over the padded (TOK, TOK) score tile.
    Built from 2-D iota + shift/and (no integer division) so it lowers cleanly
    on Mosaic; every query row still sees >= SEQ valid keys, so no NaNs."""
    shift = SEQ_PAD.bit_length() - 1            # SEQ_PAD is a power of two
    r = jax.lax.broadcasted_iota(jnp.int32, (TOK, TOK), 0)
    c = jax.lax.broadcasted_iota(jnp.int32, (TOK, TOK), 1)
    same_batch = jnp.right_shift(r, shift) == jnp.right_shift(c, shift)
    key_valid = jnp.bitwise_and(c, SEQ_PAD - 1) < SEQ
    return jnp.where(same_batch & key_valid, 0.0, -1e30).astype(jnp.float32)


def _pre_proj(f_b_, f_t, pre_w, pre_vec):
    """backbone_fc / teacher_fc: Linear + LayerNorm (eps = 1e-5)."""
    bb_b, bb_g, bb_be = pre_vec[0:1, :DIM], pre_vec[1:2, :DIM], pre_vec[2:3, :DIM]
    t_b, t_g, t_be = pre_vec[3:4, :DIM], pre_vec[4:5, :DIM], pre_vec[5:6, :DIM]
    fb = _ln(_mm(f_b_, pre_w[:IN_DIM, :]) + bb_b, bb_g, bb_be, 1e-5)
    ft = _ln(_mm(f_t, pre_w[IN_DIM:, :]) + t_b, t_g, t_be, 1e-5)
    return fb, ft


def _body(x, mask_bias, get_block, norm_g, norm_b, head_w, head_b, att_t,
          approx_recip):
    """Transformer blocks + final norm + fc/fc2 + cosine clip logits on the
    padded (TOK, DIM) token tile.  Returns lane-dense (TOK, NUM_CLASSES) and
    (TOK, N_PAD) slabs; padded-token rows hold finite garbage (discarded)."""
    for d in range(DEPTH):
        wqkv, wo, w1, w2, vec = get_block(d)
        g1, b1 = vec[0:1, :DIM], vec[1:2, :DIM]
        bqkv = vec[2:3, :]
        bo = vec[3:4, :DIM]
        g2, b2 = vec[4:5, :DIM], vec[5:6, :DIM]
        bb1 = vec[6:7, :MLP_DIM]
        bb2 = vec[7:8, :DIM]

        # --- attention (1/sqrt(HEAD_DIM) pre-folded into the Q weights) ---
        h = _ln(x, g1, b1, 1e-6)
        qkv = _mm(h, wqkv) + bqkv                               # (TOK, QKV_PAD) f32
        att_cat = jnp.zeros((TOK, DIM), jnp.float32)
        for hh in range(HEADS):
            base = hh * 3 * HEAD_PAD                            # lane-aligned
            q = qkv[:, base:base + HEAD_PAD]                    # valid lanes 0:HEAD_DIM
            k = qkv[:, base + HEAD_PAD:base + 2 * HEAD_PAD]     # valid lanes 0:HEAD_DIM
            v = qkv[:, base + 2 * HEAD_PAD:base + 3 * HEAD_PAD]  # head placed at lanes hh*HEAD_DIM
            s = jax.lax.dot_general(q.astype(jnp.bfloat16), k.astype(jnp.bfloat16),
                                    (((1,), (1,)), ((), ())),
                                    preferred_element_type=jnp.float32)  # (TOK, TOK)
            s = s + mask_bias
            s = s - jnp.max(s, axis=-1, keepdims=True)
            p = jnp.exp(s)
            denom = jnp.sum(p, axis=-1, keepdims=True)
            if approx_recip:
                p = p * pl.reciprocal(denom, approx=True)
            else:
                p = p / denom
            # v's non-head lanes are exactly zero, so summing the per-head
            # (TOK, DIM) outputs reproduces the head concatenation.
            att_cat = att_cat + _mm(p, v)
        x = x + _mm(att_cat, wo) + bo

        # --- MLP ---
        h2 = _ln(x, g2, b2, 1e-6)
        # TODO(synk): timm uses exact erf-GELU; tanh-approx GELU is used here to
        # guarantee a Mosaic lowering (deviation < ~1e-3 absolute).
        m = jax.nn.gelu(_mm(h2, w1) + bb1, approximate=True)
        x = x + _mm(m, w2) + bb2

    xf = _ln(x, norm_g, norm_b, 1e-6)                           # model.norm
    ho = _mm(xf, head_w) + head_b                               # (TOK, HEAD_OUT) = [fc | fc2]
    o_cls = ho[:, :NUM_CLASSES]
    cf = ho[:, NUM_CLASSES:]
    cfn = cf * jax.lax.rsqrt(jnp.sum(cf * cf, axis=-1, keepdims=True))
    # att_t = transpose(exp(logit_scale) * normalize(text_features)), zero-padded.
    o_txt = _mm(cfn, att_t)                                     # (TOK, N_PAD)
    return o_cls, o_txt


# ---------------- the fused Pallas kernel ----------------
def fused_kernel(f_b_ref, f_t_ref, pre_w_ref, pre_vec_ref,
                 wqkv_ref, wo_ref, w1_ref, w2_ref, blk_vec_ref,
                 head_w_ref, att_t_ref, o_ref, x_sc):
    pre_vec = pre_vec_ref[...]                                  # (16, PRE_VEC_W) f32
    fb, ft = _pre_proj(f_b_ref[...], f_t_ref[...], pre_w_ref[...], pre_vec)

    # token tile via row stores into VMEM scratch (no sublane concat chain)
    tok_cls = pre_vec[8:9, :DIM]                                # cls_token + pos[0]
    tok_fb = pre_vec[9:10, :DIM]                                # pos[1]
    tok_ft = pre_vec[10:11, :DIM]                               # pos[2]
    zero_row = jnp.zeros((1, DIM), jnp.float32)
    for b in range(B):
        r = b * SEQ_PAD
        x_sc[r + 0:r + 1, :] = tok_cls
        x_sc[r + 1:r + 2, :] = fb[b:b + 1, :] + tok_fb
        x_sc[r + 2:r + 3, :] = ft[b:b + 1, :] + tok_ft
        x_sc[r + 3:r + 4, :] = zero_row

    def get_block(d):
        return (wqkv_ref[d], wo_ref[d], w1_ref[d], w2_ref[d], blk_vec_ref[d])

    o_cls, o_txt = _body(x_sc[...], _attn_mask_bias(), get_block,
                         pre_vec[6:7, :DIM], pre_vec[7:8, :DIM],
                         head_w_ref[...], pre_vec[11:12, :HEAD_OUT],
                         att_t_ref[...], approx_recip=True)
    o_ref[:, :NUM_CLASSES] = o_cls
    o_ref[:, NUM_CLASSES:] = o_txt


def _select_outputs(o_cls_full, o_txt_full):
    rows_cls = jnp.array([b * SEQ_PAD + 2 for b in range(B)], jnp.int32)   # x[:, 2]
    rows_clip = jnp.array([b * SEQ_PAD + 1 for b in range(B)], jnp.int32)  # x[:, 1]
    return o_cls_full[rows_cls], o_txt_full[rows_clip][:, :N_TEXT]


def deit_attention_forward(kp, f_b_, f_t):
    inputs = (f_b_, f_t, kp["pre_w"], kp["pre_vec"],
              kp["wqkv_all"], kp["wo_all"], kp["w1_all"], kp["w2_all"],
              kp["blk_vec"], kp["head_w"], kp["att_t"])

    flops = int(
        2 * B * (IN_DIM + T_DIM) * DIM
        + DEPTH * (2 * TOK * DIM * QKV_PAD
                   + HEADS * 4 * TOK * TOK * HEAD_PAD
                   + 2 * TOK * DIM * DIM
                   + 4 * TOK * DIM * MLP_DIM)
        + 2 * TOK * DIM * HEAD_OUT + 2 * TOK * CLIP_DIM * N_PAD)
    transcendentals = int(DEPTH * (HEADS * TOK * TOK + TOK * MLP_DIM) + 4 * TOK)
    bytes_accessed = int(sum(x.size * x.dtype.itemsize for x in inputs)
                         + TOK * OUT_W * 4)

    out = pl.pallas_call(
        fused_kernel,
        out_shape=jax.ShapeDtypeStruct((TOK, OUT_W), jnp.float32),
        scratch_shapes=[pltpu.VMEM((TOK, DIM), jnp.float32)],
        cost_estimate=pl.CostEstimate(flops=flops,
                                      transcendentals=transcendentals,
                                      bytes_accessed=bytes_accessed),
    )(*inputs)
    return _select_outputs(out[:, :NUM_CLASSES], out[:, NUM_CLASSES:])


# ---------------- one-time parameter preparation ----------------
def prepare_params(p):
    """Fold the 1/sqrt(HEAD_DIM) Q-scale, pad each head's q/k/v to a full
    128-lane block (V placed at its concat offset), stack weights across blocks
    (all cast to bf16), bundle every small vector into two slabs, merge fc|fc2,
    and pre-normalize/scale/transpose/pad text_features."""
    scale = HEAD_DIM ** -0.5

    pre_w = jnp.concatenate([p["bb_w"], p["t_w"]], axis=0).astype(jnp.bfloat16)

    pos = p["pos_embed"][0, :SEQ, :]                        # (SEQ, DIM)
    tokb = pos.at[0:1, :].add(p["cls_token"][0])            # row 0 += cls_token

    pre_vec = jnp.zeros((16, PRE_VEC_W), jnp.float32)
    pre_vec = pre_vec.at[0, :DIM].set(p["bb_b"][0])
    pre_vec = pre_vec.at[1, :DIM].set(p["bb_g"][0])
    pre_vec = pre_vec.at[2, :DIM].set(p["bb_beta"][0])
    pre_vec = pre_vec.at[3, :DIM].set(p["t_b"][0])
    pre_vec = pre_vec.at[4, :DIM].set(p["t_g"][0])
    pre_vec = pre_vec.at[5, :DIM].set(p["t_beta"][0])
    pre_vec = pre_vec.at[6, :DIM].set(p["norm_g"][0])
    pre_vec = pre_vec.at[7, :DIM].set(p["norm_b"][0])
    pre_vec = pre_vec.at[8:8 + SEQ, :DIM].set(tokb)
    pre_vec = pre_vec.at[11, :HEAD_OUT].set(
        jnp.concatenate([p["fc_b"][0], p["fc2_b"][0]], axis=0))

    wqkv_l, wo_l, w1_l, w2_l, vec_l = [], [], [], [], []
    for blk in p["blocks"]:
        wq = blk["wqkv"][:, :DIM]
        wk = blk["wqkv"][:, DIM:2 * DIM]
        wv = blk["wqkv"][:, 2 * DIM:]
        bq = blk["bqkv"][0, :DIM]
        bk = blk["bqkv"][0, DIM:2 * DIM]
        bv = blk["bqkv"][0, 2 * DIM:]
        wpad = jnp.zeros((DIM, QKV_PAD), jnp.float32)
        bpad = jnp.zeros((QKV_PAD,), jnp.float32)
        for h in range(HEADS):
            base = h * 3 * HEAD_PAD
            c = h * HEAD_DIM
            wpad = wpad.at[:, base:base + HEAD_DIM].set(wq[:, c:c + HEAD_DIM] * scale)
            wpad = wpad.at[:, base + HEAD_PAD:base + HEAD_PAD + HEAD_DIM].set(
                wk[:, c:c + HEAD_DIM])
            wpad = wpad.at[:, base + 2 * HEAD_PAD + c:
                           base + 2 * HEAD_PAD + c + HEAD_DIM].set(wv[:, c:c + HEAD_DIM])
            bpad = bpad.at[base:base + HEAD_DIM].set(bq[c:c + HEAD_DIM] * scale)
            bpad = bpad.at[base + HEAD_PAD:base + HEAD_PAD + HEAD_DIM].set(
                bk[c:c + HEAD_DIM])
            bpad = bpad.at[base + 2 * HEAD_PAD + c:
                           base + 2 * HEAD_PAD + c + HEAD_DIM].set(bv[c:c + HEAD_DIM])
        wqkv_l.append(wpad.astype(jnp.bfloat16))
        wo_l.append(blk["wo"].astype(jnp.bfloat16))
        w1_l.append(blk["w1"].astype(jnp.bfloat16))
        w2_l.append(blk["w2"].astype(jnp.bfloat16))

        vec = jnp.zeros((8, QKV_PAD), jnp.float32)
        vec = vec.at[0, :DIM].set(blk["g1"][0])
        vec = vec.at[1, :DIM].set(blk["b1"][0])
        vec = vec.at[2, :].set(bpad)
        vec = vec.at[3, :DIM].set(blk["bo"][0])
        vec = vec.at[4, :DIM].set(blk["g2"][0])
        vec = vec.at[5, :DIM].set(blk["b2"][0])
        vec = vec.at[6, :MLP_DIM].set(blk["bb1"][0])
        vec = vec.at[7, :DIM].set(blk["bb2"][0])
        vec_l.append(vec)

    tf = p["text_features"]
    tfn = tf * jax.lax.rsqrt(jnp.sum(tf * tf, axis=-1, keepdims=True))
    att = jnp.exp(p["logit_scale"][0, 0]) * tfn                 # (N_TEXT, CLIP_DIM)
    att_t = jnp.zeros((CLIP_DIM, N_PAD), jnp.float32).at[:, :N_TEXT].set(att.T)

    return {
        "pre_w": pre_w,
        "pre_vec": pre_vec,
        "wqkv_all": jnp.stack(wqkv_l),
        "wo_all": jnp.stack(wo_l),
        "w1_all": jnp.stack(w1_l),
        "w2_all": jnp.stack(w2_l),
        "blk_vec": jnp.stack(vec_l),
        "head_w": jnp.concatenate([p["fc_w"], p["fc2_w"]], axis=1).astype(jnp.bfloat16),
        "att_t": att_t.astype(jnp.bfloat16),
    }


# ---------------- references (for correctness checks) ----------------
def matched_reference(kp, f_b_, f_t):
    """Identical math (same prepared/padded bf16 weights, same tanh-GELU) run
    through plain XLA; only the softmax reciprocal is exact here."""
    pre_vec = kp["pre_vec"]
    fb, ft = _pre_proj(f_b_, f_t, kp["pre_w"], pre_vec)
    tok_cls = pre_vec[8:9, :DIM]
    tok_fb = pre_vec[9:10, :DIM]
    tok_ft = pre_vec[10:11, :DIM]
    zero_row = jnp.zeros((1, DIM), jnp.float32)
    rows = []
    for b in range(B):
        rows += [tok_cls, fb[b:b + 1, :] + tok_fb, ft[b:b + 1, :] + tok_ft, zero_row]
    x = jnp.concatenate(rows, axis=0)

    def get_block(d):
        return (kp["wqkv_all"][d], kp["wo_all"][d], kp["w1_all"][d],
                kp["w2_all"][d], kp["blk_vec"][d])

    o_cls, o_txt = _body(x, _attn_mask_bias(), get_block,
                         pre_vec[6:7, :DIM], pre_vec[7:8, :DIM],
                         kp["head_w"], pre_vec[11:12, :HEAD_OUT], kp["att_t"],
                         approx_recip=False)
    return _select_outputs(o_cls, o_txt)


def reference_forward(params, f_b_, f_t):
    """Pure f32 reference with the original module semantics (exact erf-GELU)."""
    def ln(x, g, b, eps):
        mu = x.mean(-1, keepdims=True)
        var = ((x - mu) ** 2).mean(-1, keepdims=True)
        return (x - mu) / jnp.sqrt(var + eps) * g + b

    fb = ln(f_b_ @ params["bb_w"] + params["bb_b"], params["bb_g"], params["bb_beta"], 1e-5)
    ft = ln(f_t @ params["t_w"] + params["t_b"], params["t_g"], params["t_beta"], 1e-5)
    x = jnp.concatenate([jnp.broadcast_to(params["cls_token"], (B, 1, DIM)),
                         jnp.stack([fb, ft], axis=1)], axis=1) + params["pos_embed"][:, :SEQ, :]
    for blk in params["blocks"]:
        h = ln(x, blk["g1"], blk["b1"], 1e-6)
        qkv = h @ blk["wqkv"] + blk["bqkv"]
        q, k, v = jnp.split(qkv, 3, axis=-1)
        q = q.reshape(B, SEQ, HEADS, HEAD_DIM).transpose(0, 2, 1, 3)
        k = k.reshape(B, SEQ, HEADS, HEAD_DIM).transpose(0, 2, 1, 3)
        v = v.reshape(B, SEQ, HEADS, HEAD_DIM).transpose(0, 2, 1, 3)
        s = (q @ jnp.swapaxes(k, -1, -2)) * (HEAD_DIM ** -0.5)
        p = jax.nn.softmax(s, axis=-1)
        a = (p @ v).transpose(0, 2, 1, 3).reshape(B, SEQ, DIM)
        x = x + (a @ blk["wo"] + blk["bo"])
        h2 = ln(x, blk["g2"], blk["b2"], 1e-6)
        m = jax.nn.gelu(h2 @ blk["w1"] + blk["bb1"], approximate=False)
        x = x + (m @ blk["w2"] + blk["bb2"])
    x = ln(x, params["norm_g"], params["norm_b"], 1e-6)
    out1 = x[:, 2] @ params["fc_w"] + params["fc_b"]
    cf = x[:, 1] @ params["fc2_w"] + params["fc2_b"]
    xn = cf / jnp.linalg.norm(cf, axis=-1, keepdims=True)
    an = params["text_features"] / jnp.linalg.norm(params["text_features"], axis=-1, keepdims=True)
    out2 = jnp.exp(params["logit_scale"]) * (xn @ an.T)
    return out1, out2


# ---------------- deterministic parameter construction ----------------
def make_params():
    keys = iter(jax.random.split(jax.random.PRNGKey(0), 256))

    def rnd(shape, scale=0.02):
        return (scale * jax.random.normal(next(keys), shape)).astype(jnp.float32)

    def gamma(shape):
        return (1.0 + 0.1 * jax.random.normal(next(keys), shape)).astype(jnp.float32)

    p = {
        "bb_w": rnd((IN_DIM, DIM)), "bb_b": rnd((1, DIM)),
        "bb_g": gamma((1, DIM)), "bb_beta": rnd((1, DIM)),
        "t_w": rnd((T_DIM, DIM)), "t_b": rnd((1, DIM)),
        "t_g": gamma((1, DIM)), "t_beta": rnd((1, DIM)),
        "cls_token": rnd((1, 1, DIM)),
        "pos_embed": rnd((1, SEQ, DIM)),
        "norm_g": gamma((1, DIM)), "norm_b": rnd((1, DIM)),
        "fc_w": rnd((DIM, NUM_CLASSES)), "fc_b": rnd((1, NUM_CLASSES)),
        "fc2_w": rnd((DIM, CLIP_DIM)), "fc2_b": rnd((1, CLIP_DIM)),
        "text_features": rnd((N_TEXT, CLIP_DIM), scale=1.0),
        "logit_scale": jnp.full((1, 1), jnp.log(1.0 / 0.07), jnp.float32),
    }
    blocks = []
    for _ in range(DEPTH):
        blocks.append({
            "g1": gamma((1, DIM)), "b1": rnd((1, DIM)),
            "wqkv": rnd((DIM, 3 * DIM)), "bqkv": rnd((1, 3 * DIM)),
            "wo": rnd((DIM, DIM)), "bo": rnd((1, DIM)),
            "g2": gamma((1, DIM)), "b2": rnd((1, DIM)),
            "w1": rnd((DIM, MLP_DIM)), "bb1": rnd((1, MLP_DIM)),
            "w2": rnd((MLP_DIM, DIM)), "bb2": rnd((1, DIM)),
        })
    p["blocks"] = blocks
    return p
    # TODO(synk): pretrained deit_tiny checkpoint weights are replaced by this
    # deterministic synthetic initialization (shapes only).


if __name__ == "__main__":
    params = make_params()
    kparams = prepare_params(params)

    kin = jax.random.split(jax.random.PRNGKey(0), 2)
    f_b_ = jax.random.normal(kin[0], (B, IN_DIM), jnp.float32)
    f_t = jax.random.normal(kin[1], (B, T_DIM), jnp.float32)

    out_cls, out_txt = deit_attention_forward(kparams, f_b_, f_t)
    out_cls = jax.block_until_ready(out_cls)
    out_txt = jax.block_until_ready(out_txt)
    assert out_cls.shape == (B, NUM_CLASSES) and out_txt.shape == (B, N_TEXT)

    # Tight check: identical math (same prepared bf16 weights / folded scales /
    # tanh-GELU) via XLA; the only deltas are the approx softmax reciprocal and
    # hardware transcendental rounding.
    mref_cls, mref_txt = matched_reference(kparams, f_b_, f_t)
    assert jnp.allclose(out_cls, mref_cls, rtol=1e-2, atol=1e-2)
    assert jnp.allclose(out_txt, mref_txt, rtol=1e-2, atol=1e-2)

    # Semantic check: pure-f32 module reference (looser tolerance covers the
    # intentional bf16 matmul quantization and the tanh-GELU approximation).
    ref_cls, ref_txt = reference_forward(params, f_b_, f_t)
    assert jnp.allclose(out_cls, ref_cls, rtol=5e-2, atol=5e-2)
    assert jnp.allclose(out_txt, ref_txt, rtol=5e-2, atol=1e-1)

    print("KERNEL_OK")
</pallas_src>

<mosaic_0001>
module attributes {stable_mosaic.version = 11 : i64} {
  func.func @fused_kernel(%arg0: memref<2x128xf32, #tpu.memory_space<vmem>>, %arg1: memref<2x256xf32, #tpu.memory_space<vmem>>, %arg2: memref<384x128xbf16, #tpu.memory_space<vmem>>, %arg3: memref<16x256xf32, #tpu.memory_space<vmem>>, %arg4: memref<2x128x768xbf16, #tpu.memory_space<vmem>>, %arg5: memref<2x128x128xbf16, #tpu.memory_space<vmem>>, %arg6: memref<2x128x512xbf16, #tpu.memory_space<vmem>>, %arg7: memref<2x512x128xbf16, #tpu.memory_space<vmem>>, %arg8: memref<2x8x768xf32, #tpu.memory_space<vmem>>, %arg9: memref<128x256xbf16, #tpu.memory_space<vmem>>, %arg10: memref<128x128xbf16, #tpu.memory_space<vmem>>, %arg11: memref<8x256xf32, #tpu.memory_space<vmem>>, %arg12: memref<8x128xf32, #tpu.memory_space<vmem>>) attributes {dimension_semantics = [], scalar_prefetch = 0 : i64, scratch_operands = 1 : i64, tpu.core_type = #tpu.core_type<tc>} {
    %c0 = arith.constant 0 : index
    %c0_0 = arith.constant 0 : index
    %0 = vector.load %arg3[%c0, %c0_0] : memref<16x256xf32, #tpu.memory_space<vmem>>, vector<16x256xf32>
    %c0_1 = arith.constant 0 : index
    %c0_2 = arith.constant 0 : index
    %1 = vector.load %arg0[%c0_1, %c0_2] : memref<2x128xf32, #tpu.memory_space<vmem>>, vector<2x128xf32>
    %c0_3 = arith.constant 0 : index
    %c0_4 = arith.constant 0 : index
    %2 = vector.load %arg1[%c0_3, %c0_4] : memref<2x256xf32, #tpu.memory_space<vmem>>, vector<2x256xf32>
    %c0_5 = arith.constant 0 : index
    %c0_6 = arith.constant 0 : index
    %3 = vector.load %arg2[%c0_5, %c0_6] : memref<384x128xbf16, #tpu.memory_space<vmem>>, vector<384x128xbf16>
    %4 = vector.extract_strided_slice %0 {offsets = [0, 0], sizes = [1, 128], strides = [1, 1]} : vector<16x256xf32> to vector<1x128xf32>
    %5 = vector.extract_strided_slice %0 {offsets = [1, 0], sizes = [1, 128], strides = [1, 1]} : vector<16x256xf32> to vector<1x128xf32>
    %6 = vector.extract_strided_slice %0 {offsets = [2, 0], sizes = [1, 128], strides = [1, 1]} : vector<16x256xf32> to vector<1x128xf32>
    %7 = vector.extract_strided_slice %0 {offsets = [3, 0], sizes = [1, 128], strides = [1, 1]} : vector<16x256xf32> to vector<1x128xf32>
    %8 = vector.extract_strided_slice %0 {offsets = [4, 0], sizes = [1, 128], strides = [1, 1]} : vector<16x256xf32> to vector<1x128xf32>
    %9 = vector.extract_strided_slice %0 {offsets = [5, 0], sizes = [1, 128], strides = [1, 1]} : vector<16x256xf32> to vector<1x128xf32>
    %10 = vector.extract_strided_slice %3 {offsets = [0, 0], sizes = [128, 128], strides = [1, 1]} : vector<384x128xbf16> to vector<128x128xbf16>
    %11 = arith.truncf %1 : vector<2x128xf32> to vector<2x128xbf16>
    %cst = arith.constant dense<0.000000e+00> : vector<2x128xf32>
    %12 = tpu.matmul %11, %10, %cst {dimension_numbers = #tpu.dot_dimension_numbers<[1], [0], [0], [1], [0, 0, 1, 1], [], []>} : vector<2x128xbf16>, vector<128x128xbf16>, vector<2x128xf32> -> vector<2x128xf32>
    %13 = vector.broadcast %4 : vector<1x128xf32> to vector<2x128xf32>
    %14 = arith.addf %12, %13 : vector<2x128xf32>
    %cst_7 = arith.constant dense<0.000000e+00> : vector<2xf32>
    %15 = vector.multi_reduction <add>, %14, %cst_7 [1] : vector<2x128xf32> to vector<2xf32>
    %16 = vector.shape_cast %15 : vector<2xf32> to vector<2x1xf32>
    %cst_8 = arith.constant 1.280000e+02 : f32
    %17 = vector.broadcast %cst_8 : f32 to vector<2x1xf32>
    %18 = arith.divf %16, %17 : vector<2x1xf32>
    %19 = vector.broadcast %18 : vector<2x1xf32> to vector<2x128xf32>
    %20 = arith.subf %14, %19 : vector<2x128xf32>
    %21 = arith.mulf %20, %20 : vector<2x128xf32>
    %cst_9 = arith.constant dense<0.000000e+00> : vector<2xf32>
    %22 = vector.multi_reduction <add>, %21, %cst_9 [1] : vector<2x128xf32> to vector<2xf32>
    %23 = vector.shape_cast %22 : vector<2xf32> to vector<2x1xf32>
    %cst_10 = arith.constant 1.280000e+02 : f32
    %24 = vector.broadcast %cst_10 : f32 to vector<2x1xf32>
    %25 = arith.divf %23, %24 : vector<2x1xf32>
    %26 = vector.broadcast %18 : vector<2x1xf32> to vector<2x128xf32>
    %27 = arith.subf %14, %26 : vector<2x128xf32>
    %cst_11 = arith.constant 9.99999974E-6 : f32
    %28 = vector.broadcast %cst_11 : f32 to vector<2x1xf32>
    %29 = arith.addf %25, %28 : vector<2x1xf32>
    %30 = math.rsqrt %29 : vector<2x1xf32>
    %31 = vector.broadcast %30 : vector<2x1xf32> to vector<2x128xf32>
    %32 = arith.mulf %27, %31 : vector<2x128xf32>
    %33 = vector.broadcast %5 : vector<1x128xf32> to vector<2x128xf32>
    %34 = arith.mulf %32, %33 : vector<2x128xf32>
    %35 = vector.broadcast %6 : vector<1x128xf32> to vector<2x128xf32>
    %36 = arith.addf %34, %35 : vector<2x128xf32>
    %37 = vector.extract_strided_slice %3 {offsets = [128, 0], sizes = [256, 128], strides = [1, 1]} : vector<384x128xbf16> to vector<256x128xbf16>
    %38 = arith.truncf %2 : vector<2x256xf32> to vector<2x256xbf16>
    %cst_12 = arith.constant dense<0.000000e+00> : vector<2x128xf32>
    %39 = tpu.matmul %38, %37, %cst_12 {dimension_numbers = #tpu.dot_dimension_numbers<[1], [0], [0], [1], [0, 0, 1, 1], [], []>} : vector<2x256xbf16>, vector<256x128xbf16>, vector<2x128xf32> -> vector<2x128xf32>
    %40 = vector.broadcast %7 : vector<1x128xf32> to vector<2x128xf32>
    %41 = arith.addf %39, %40 : vector<2x128xf32>
    %cst_13 = arith.constant dense<0.000000e+00> : vector<2xf32>
    %42 = vector.multi_reduction <add>, %41, %cst_13 [1] : vector<2x128xf32> to vector<2xf32>
    %43 = vector.shape_cast %42 : vector<2xf32> to vector<2x1xf32>
    %cst_14 = arith.constant 1.280000e+02 : f32
    %44 = vector.broadcast %cst_14 : f32 to vector<2x1xf32>
    %45 = arith.divf %43, %44 : vector<2x1xf32>
    %46 = vector.broadcast %45 : vector<2x1xf32> to vector<2x128xf32>
    %47 = arith.subf %41, %46 : vector<2x128xf32>
    %48 = arith.mulf %47, %47 : vector<2x128xf32>
    %cst_15 = arith.constant dense<0.000000e+00> : vector<2xf32>
    %49 = vector.multi_reduction <add>, %48, %cst_15 [1] : vector<2x128xf32> to vector<2xf32>
    %50 = vector.shape_cast %49 : vector<2xf32> to vector<2x1xf32>
    %cst_16 = arith.constant 1.280000e+02 : f32
    %51 = vector.broadcast %cst_16 : f32 to vector<2x1xf32>
    %52 = arith.divf %50, %51 : vector<2x1xf32>
    %53 = vector.broadcast %45 : vector<2x1xf32> to vector<2x128xf32>
    %54 = arith.subf %41, %53 : vector<2x128xf32>
    %cst_17 = arith.constant 9.99999974E-6 : f32
    %55 = vector.broadcast %cst_17 : f32 to vector<2x1xf32>
    %56 = arith.addf %52, %55 : vector<2x1xf32>
    %57 = math.rsqrt %56 : vector<2x1xf32>
    %58 = vector.broadcast %57 : vector<2x1xf32> to vector<2x128xf32>
    %59 = arith.mulf %54, %58 : vector<2x128xf32>
    %60 = vector.broadcast %8 : vector<1x128xf32> to vector<2x128xf32>
    %61 = arith.mulf %59, %60 : vector<2x128xf32>
    %62 = vector.broadcast %9 : vector<1x128xf32> to vector<2x128xf32>
    %63 = arith.addf %61, %62 : vector<2x128xf32>
    %64 = vector.extract_strided_slice %0 {offsets = [8, 0], sizes = [1, 128], strides = [1, 1]} : vector<16x256xf32> to vector<1x128xf32>
    %65 = vector.extract_strided_slice %0 {offsets = [9, 0], sizes = [1, 128], strides = [1, 1]} : vector<16x256xf32> to vector<1x128xf32>
    %66 = vector.extract_strided_slice %0 {offsets = [10, 0], sizes = [1, 128], strides = [1, 1]} : vector<16x256xf32> to vector<1x128xf32>
    %cst_18 = arith.constant 0.000000e+00 : f32
    %67 = vector.broadcast %cst_18 : f32 to vector<1x128xf32>
    %c0_19 = arith.constant 0 : index
    %c0_20 = arith.constant 0 : index
    %68 = vector.load %arg12[%c0_19, %c0_20] : memref<8x128xf32, #tpu.memory_space<vmem>>, vector<1x128xf32>
    tpu.vector_store %arg12[%c0_19, %c0_20], %64 {strides = array<i32>} : memref<8x128xf32, #tpu.memory_space<vmem>>, vector<1x128xf32>,
    %69 = vector.extract_strided_slice %36 {offsets = [0, 0], sizes = [1, 128], strides = [1, 1]} : vector<2x128xf32> to vector<1x128xf32>
    %70 = arith.addf %69, %65 : vector<1x128xf32>
    %c1 = arith.constant 1 : index
    %c0_21 = arith.constant 0 : index
    %71 = vector.load %arg12[%c1, %c0_21] : memref<8x128xf32, #tpu.memory_space<vmem>>, vector<1x128xf32>
    tpu.vector_store %arg12[%c1, %c0_21], %70 {strides = array<i32>} : memref<8x128xf32, #tpu.memory_space<vmem>>, vector<1x128xf32>,
    %72 = vector.extract_strided_slice %63 {offsets = [0, 0], sizes = [1, 128], strides = [1, 1]} : vector<2x128xf32> to vector<1x128xf32>
    %73 = arith.addf %72, %66 : vector<1x128xf32>
    %c2 = arith.constant 2 : index
    %c0_22 = arith.constant 0 : index
    %74 = vector.load %arg12[%c2, %c0_22] : memref<8x128xf32, #tpu.memory_space<vmem>>, vector<1x128xf32>
    tpu.vector_store %arg12[%c2, %c0_22], %73 {strides = array<i32>} : memref<8x128xf32, #tpu.memory_space<vmem>>, vector<1x128xf32>,
    %c3 = arith.constant 3 : index
    %c0_23 = arith.constant 0 : index
    %75 = vector.load %arg12[%c3, %c0_23] : memref<8x128xf32, #tpu.memory_space<vmem>>, vector<1x128xf32>
    tpu.vector_store %arg12[%c3, %c0_23], %67 {strides = array<i32>} : memref<8x128xf32, #tpu.memory_space<vmem>>, vector<1x128xf32>,
    %c4 = arith.constant 4 : index
    %c0_24 = arith.constant 0 : index
    %76 = vector.load %arg12[%c4, %c0_24] : memref<8x128xf32, #tpu.memory_space<vmem>>, vector<1x128xf32>
    tpu.vector_store %arg12[%c4, %c0_24], %64 {strides = array<i32>} : memref<8x128xf32, #tpu.memory_space<vmem>>, vector<1x128xf32>,
    %77 = vector.extract_strided_slice %36 {offsets = [1, 0], sizes = [1, 128], strides = [1, 1]} : vector<2x128xf32> to vector<1x128xf32>
    %78 = arith.addf %77, %65 : vector<1x128xf32>
    %c5 = arith.constant 5 : index
    %c0_25 = arith.constant 0 : index
    %79 = vector.load %arg12[%c5, %c0_25] : memref<8x128xf32, #tpu.memory_space<vmem>>, vector<1x128xf32>
    tpu.vector_store %arg12[%c5, %c0_25], %78 {strides = array<i32>} : memref<8x128xf32, #tpu.memory_space<vmem>>, vector<1x128xf32>,
    %80 = vector.extract_strided_slice %63 {offsets = [1, 0], sizes = [1, 128], strides = [1, 1]} : vector<2x128xf32> to vector<1x128xf32>
    %81 = arith.addf %80, %66 : vector<1x128xf32>
    %c6 = arith.constant 6 : index
    %c0_26 = arith.constant 0 : index
    %82 = vector.load %arg12[%c6, %c0_26] : memref<8x128xf32, #tpu.memory_space<vmem>>, vector<1x128xf32>
    tpu.vector_store %arg12[%c6, %c0_26], %81 {strides = array<i32>} : memref<8x128xf32, #tpu.memory_space<vmem>>, vector<1x128xf32>,
    %c7 = arith.constant 7 : index
    %c0_27 = arith.constant 0 : index
    %83 = vector.load %arg12[%c7, %c0_27] : memref<8x128xf32, #tpu.memory_space<vmem>>, vector<1x128xf32>
    tpu.vector_store %arg12[%c7, %c0_27], %67 {strides = array<i32>} : memref<8x128xf32, #tpu.memory_space<vmem>>, vector<1x128xf32>,
    %c0_28 = arith.constant 0 : index
    %c0_29 = arith.constant 0 : index
    %84 = vector.load %arg12[%c0_28, %c0_29] : memref<8x128xf32, #tpu.memory_space<vmem>>, vector<8x128xf32>
    %85 = tpu.iota {dimensions = array<i32: 0>} : vector<8x8xi32>
    %86 = tpu.iota {dimensions = array<i32: 1>} : vector<8x8xi32>
    %c2_i32 = arith.constant 2 : i32
    %87 = vector.broadcast %c2_i32 : i32 to vector<8x8xi32>
    %88 = arith.shrsi %85, %87 : vector<8x8xi32>
    %c2_i32_30 = arith.constant 2 : i32
    %89 = vector.broadcast %c2_i32_30 : i32 to vector<8x8xi32>
    %90 = arith.shrsi %86, %89 : vector<8x8xi32>
    %91 = arith.cmpi eq, %88, %90 : vector<8x8xi32>
    %c3_i32 = arith.constant 3 : i32
    %92 = vector.broadcast %c3_i32 : i32 to vector<8x8xi32>
    %93 = arith.andi %86, %92 : vector<8x8xi32>
    %c3_i32_31 = arith.constant 3 : i32
    %94 = vector.broadcast %c3_i32_31 : i32 to vector<8x8xi32>
    %95 = arith.cmpi slt, %93, %94 : vector<8x8xi32>
    %96 = arith.andi %91, %95 : vector<8x8xi1>
    %cst_32 = arith.constant 0.000000e+00 : f32
    %cst_33 = arith.constant -1.000000e+30 : f32
    %97 = vector.broadcast %cst_32 : f32 to vector<8x8xf32>
    %98 = vector.broadcast %cst_33 : f32 to vector<8x8xf32>
    %99 = arith.select %96, %97, %98 : vector<8x8xi1>, vector<8x8xf32>
    %100 = vector.extract_strided_slice %0 {offsets = [6, 0], sizes = [1, 128], strides = [1, 1]} : vector<16x256xf32> to vector<1x128xf32>
    %101 = vector.extract_strided_slice %0 {offsets = [7, 0], sizes = [1, 128], strides = [1, 1]} : vector<16x256xf32> to vector<1x128xf32>
    %c0_34 = arith.constant 0 : index
    %c0_35 = arith.constant 0 : index
    %102 = vector.load %arg9[%c0_34, %c0_35] : memref<128x256xbf16, #tpu.memory_space<vmem>>, vector<128x256xbf16>
    %103 = vector.extract_strided_slice %0 {offsets = [11, 0], sizes = [1, 256], strides = [1, 1]} : vector<16x256xf32> to vector<1x256xf32>
    %c0_36 = arith.constant 0 : index
    %c0_37 = arith.constant 0 : index
    %104 = vector.load %arg10[%c0_36, %c0_37] : memref<128x128xbf16, #tpu.memory_space<vmem>>, vector<128x128xbf16>
    %c0_38 = arith.constant 0 : index
    %c0_39 = arith.constant 0 : index
    %c0_40 = arith.constant 0 : index
    %105 = vector.load %arg4[%c0_38, %c0_39, %c0_40] : memref<2x128x768xbf16, #tpu.memory_space<vmem>>, vector<1x128x768xbf16>
    %106 = vector.shape_cast %105 : vector<1x128x768xbf16> to vector<128x768xbf16>
    %c0_41 = arith.constant 0 : index
    %c0_42 = arith.constant 0 : index
    %c0_43 = arith.constant 0 : index
    %107 = vector.load %arg5[%c0_41, %c0_42, %c0_43] : memref<2x128x128xbf16, #tpu.memory_space<vmem>>, vector<1x128x128xbf16>
    %108 = vector.shape_cast %107 : vector<1x128x128xbf16> to vector<128x128xbf16>
    %c0_44 = arith.constant 0 : index
    %c0_45 = arith.constant 0 : index
    %c0_46 = arith.constant 0 : index
    %109 = vector.load %arg6[%c0_44, %c0_45, %c0_46] : memref<2x128x512xbf16, #tpu.memory_space<vmem>>, vector<1x128x512xbf16>
    %110 = vector.shape_cast %109 : vector<1x128x512xbf16> to vector<128x512xbf16>
    %c0_47 = arith.constant 0 : index
    %c0_48 = arith.constant 0 : index
    %c0_49 = arith.constant 0 : index
    %111 = vector.load %arg7[%c0_47, %c0_48, %c0_49] : memref<2x512x128xbf16, #tpu.memory_space<vmem>>, vector<1x512x128xbf16>
    %112 = vector.shape_cast %111 : vector<1x512x128xbf16> to vector<512x128xbf16>
    %c0_50 = arith.constant 0 : index
    %c0_51 = arith.constant 0 : index
    %c0_52 = arith.constant 0 : index
    %113 = vector.load %arg8[%c0_50, %c0_51, %c0_52] : memref<2x8x768xf32, #tpu.memory_space<vmem>>, vector<1x8x768xf32>
    %114 = vector.shape_cast %113 : vector<1x8x768xf32> to vector<8x768xf32>
    %115 = vector.extract_strided_slice %114 {offsets = [0, 0], sizes = [1, 128], strides = [1, 1]} : vector<8x768xf32> to vector<1x128xf32>
    %116 = vector.extract_strided_slice %114 {offsets = [1, 0], sizes = [1, 128], strides = [1, 1]} : vector<8x768xf32> to vector<1x128xf32>
    %117 = vector.extract_strided_slice %114 {offsets = [2, 0], sizes = [1, 768], strides = [1, 1]} : vector<8x768xf32> to vector<1x768xf32>
    %118 = vector.extract_strided_slice %114 {offsets = [3, 0], sizes = [1, 128], strides = [1, 1]} : vector<8x768xf32> to vector<1x128xf32>
    %119 = vector.extract_strided_slice %114 {offsets = [4, 0], sizes = [1, 128], strides = [1, 1]} : vector<8x768xf32> to vector<1x128xf32>
    %120 = vector.extract_strided_slice %114 {offsets = [5, 0], sizes = [1, 128], strides = [1, 1]} : vector<8x768xf32> to vector<1x128xf32>
    %121 = vector.extract_strided_slice %114 {offsets = [6, 0], sizes = [1, 512], strides = [1, 1]} : vector<8x768xf32> to vector<1x512xf32>
    %122 = vector.extract_strided_slice %114 {offsets = [7, 0], sizes = [1, 128], strides = [1, 1]} : vector<8x768xf32> to vector<1x128xf32>
    %cst_53 = arith.constant dense<0.000000e+00> : vector<8xf32>
    %123 = vector.multi_reduction <add>, %84, %cst_53 [1] : vector<8x128xf32> to vector<8xf32>
    %124 = vector.shape_cast %123 : vector<8xf32> to vector<8x1xf32>
    %cst_54 = arith.constant 1.280000e+02 : f32
    %125 = vector.broadcast %cst_54 : f32 to vector<8x1xf32>
    %126 = arith.divf %124, %125 : vector<8x1xf32>
    %127 = vector.broadcast %126 : vector<8x1xf32> to vector<8x128xf32>
    %128 = arith.subf %84, %127 : vector<8x128xf32>
    %129 = arith.mulf %128, %128 : vector<8x128xf32>
    %cst_55 = arith.constant dense<0.000000e+00> : vector<8xf32>
    %130 = vector.multi_reduction <add>, %129, %cst_55 [1] : vector<8x128xf32> to vector<8xf32>
    %131 = vector.shape_cast %130 : vector<8xf32> to vector<8x1xf32>
    %cst_56 = arith.constant 1.280000e+02 : f32
    %132 = vector.broadcast %cst_56 : f32 to vector<8x1xf32>
    %133 = arith.divf %131, %132 : vector<8x1xf32>
    %134 = vector.broadcast %126 : vector<8x1xf32> to vector<8x128xf32>
    %135 = arith.subf %84, %134 : vector<8x128xf32>
    %cst_57 = arith.constant 9.99999997E-7 : f32
    %136 = vector.broadcast %cst_57 : f32 to vector<8x1xf32>
    %137 = arith.addf %133, %136 : vector<8x1xf32>
    %138 = math.rsqrt %137 : vector<8x1xf32>
    %139 = vector.broadcast %138 : vector<8x1xf32> to vector<8x128xf32>
    %140 = arith.mulf %135, %139 : vector<8x128xf32>
    %141 = vector.broadcast %115 : vector<1x128xf32> to vector<8x128xf32>
    %142 = arith.mulf %140, %141 : vector<8x128xf32>
    %143 = vector.broadcast %116 : vector<1x128xf32> to vector<8x128xf32>
    %144 = arith.addf %142, %143 : vector<8x128xf32>
    %145 = arith.truncf %144 : vector<8x128xf32> to vector<8x128xbf16>
    %cst_58 = arith.constant dense<0.000000e+00> : vector<8x768xf32>
    %146 = tpu.matmul %145, %106, %cst_58 {dimension_numbers = #tpu.dot_dimension_numbers<[1], [0], [0], [1], [0, 0, 1, 1], [], []>} : vector<8x128xbf16>, vector<128x768xbf16>, vector<8x768xf32> -> vector<8x768xf32>
    %147 = vector.broadcast %117 : vector<1x768xf32> to vector<8x768xf32>
    %148 = arith.addf %146, %147 : vector<8x768xf32>
    %cst_59 = arith.constant 0.000000e+00 : f32
    %149 = vector.broadcast %cst_59 : f32 to vector<8x128xf32>
    %150 = vector.extract_strided_slice %148 {offsets = [0, 0], sizes = [8, 128], strides = [1, 1]} : vector<8x768xf32> to vector<8x128xf32>
    %151 = vector.extract_strided_slice %148 {offsets = [0, 128], sizes = [8, 128], strides = [1, 1]} : vector<8x768xf32> to vector<8x128xf32>
    %152 = vector.extract_strided_slice %148 {offsets = [0, 256], sizes = [8, 128], strides = [1, 1]} : vector<8x768xf32> to vector<8x128xf32>
    %153 = arith.truncf %150 : vector<8x128xf32> to vector<8x128xbf16>
    %154 = arith.truncf %151 : vector<8x128xf32> to vector<8x128xbf16>
    %cst_60 = arith.constant dense<0.000000e+00> : vector<8x8xf32>
    %155 = tpu.matmul %153, %154, %cst_60 {dimension_numbers = #tpu.dot_dimension_numbers<[1], [1], [0], [0], [0, 0, 1, 0], [], []>} : vector<8x128xbf16>, vector<8x128xbf16>, vector<8x8xf32> -> vector<8x8xf32>
    %156 = arith.addf %155, %99 : vector<8x8xf32>
    %cst_61 = arith.constant dense<0xFF800000> : vector<8xf32>
    %157 = vector.multi_reduction <maximumf>, %156, %cst_61 [1] : vector<8x8xf32> to vector<8xf32>
    %158 = vector.shape_cast %157 : vector<8xf32> to vector<8x1xf32>
    %159 = vector.broadcast %158 : vector<8x1xf32> to vector<8x8xf32>
    %160 = arith.subf %156, %159 : vector<8x8xf32>
    %161 = math.exp %160 : vector<8x8xf32>
    %cst_62 = arith.constant dense<0.000000e+00> : vector<8xf32>
    %162 = vector.multi_reduction <add>, %161, %cst_62 [1] : vector<8x8xf32> to vector<8xf32>
    %163 = vector.shape_cast %162 : vector<8xf32> to vector<8x1xf32>
    %164 = tpu.reciprocal %163 {approx = true} : vector<8x1xf32> -> vector<8x1xf32>
    %165 = vector.broadcast %164 : vector<8x1xf32> to vector<8x8xf32>
    %166 = arith.mulf %161, %165 : vector<8x8xf32>
    %167 = arith.truncf %166 : vector<8x8xf32> to vector<8x8xbf16>
    %168 = arith.truncf %152 : vector<8x128xf32> to vector<8x128xbf16>
    %cst_63 = arith.constant dense<0.000000e+00> : vector<8x128xf32>
    %169 = tpu.matmul %167, %168, %cst_63 {dimension_numbers = #tpu.dot_dimension_numbers<[1], [0], [0], [1], [0, 0, 1, 1], [], []>} : vector<8x8xbf16>, vector<8x128xbf16>, vector<8x128xf32> -> vector<8x128xf32>
    %170 = arith.addf %149, %169 : vector<8x128xf32>
    %171 = vector.extract_strided_slice %148 {offsets = [0, 384], sizes = [8, 128], strides = [1, 1]} : vector<8x768xf32> to vector<8x128xf32>
    %172 = vector.extract_strided_slice %148 {offsets = [0, 512], sizes = [8, 128], strides = [1, 1]} : vector<8x768xf32> to vector<8x128xf32>
    %173 = vector.extract_strided_slice %148 {offsets = [0, 640], sizes = [8, 128], strides = [1, 1]} : vector<8x768xf32> to vector<8x128xf32>
    %174 = arith.truncf %171 : vector<8x128xf32> to vector<8x128xbf16>
    %175 = arith.truncf %172 : vector<8x128xf32> to vector<8x128xbf16>
    %cst_64 = arith.constant dense<0.000000e+00> : vector<8x8xf32>
    %176 = tpu.matmul %174, %175, %cst_64 {dimension_numbers = #tpu.dot_dimension_numbers<[1], [1], [0], [0], [0, 0, 1, 0], [], []>} : vector<8x128xbf16>, vector<8x128xbf16>, vector<8x8xf32> -> vector<8x8xf32>
    %177 = arith.addf %176, %99 : vector<8x8xf32>
    %cst_65 = arith.constant dense<0xFF800000> : vector<8xf32>
    %178 = vector.multi_reduction <maximumf>, %177, %cst_65 [1] : vector<8x8xf32> to vector<8xf32>
    %179 = vector.shape_cast %178 : vector<8xf32> to vector<8x1xf32>
    %180 = vector.broadcast %179 : vector<8x1xf32> to vector<8x8xf32>
    %181 = arith.subf %177, %180 : vector<8x8xf32>
    %182 = math.exp %181 : vector<8x8xf32>
    %cst_66 = arith.constant dense<0.000000e+00> : vector<8xf32>
    %183 = vector.multi_reduction <add>, %182, %cst_66 [1] : vector<8x8xf32> to vector<8xf32>
    %184 = vector.shape_cast %183 : vector<8xf32> to vector<8x1xf32>
    %185 = tpu.reciprocal %184 {approx = true} : vector<8x1xf32> -> vector<8x1xf32>
    %186 = vector.broadcast %185 : vector<8x1xf32> to vector<8x8xf32>
    %187 = arith.mulf %182, %186 : vector<8x8xf32>
    %188 = arith.truncf %187 : vector<8x8xf32> to vector<8x8xbf16>
    %189 = arith.truncf %173 : vector<8x128xf32> to vector<8x128xbf16>
    %cst_67 = arith.constant dense<0.000000e+00> : vector<8x128xf32>
    %190 = tpu.matmul %188, %189, %cst_67 {dimension_numbers = #tpu.dot_dimension_numbers<[1], [0], [0], [1], [0, 0, 1, 1], [], []>} : vector<8x8xbf16>, vector<8x128xbf16>, vector<8x128xf32> -> vector<8x128xf32>
    %191 = arith.addf %170, %190 : vector<8x128xf32>
    %192 = arith.truncf %191 : vector<8x128xf32> to vector<8x128xbf16>
    %cst_68 = arith.constant dense<0.000000e+00> : vector<8x128xf32>
    %193 = tpu.matmul %192, %108, %cst_68 {dimension_numbers = #tpu.dot_dimension_numbers<[1], [0], [0], [1], [0, 0, 1, 1], [], []>} : vector<8x128xbf16>, vector<128x128xbf16>, vector<8x128xf32> -> vector<8x128xf32>
    %194 = arith.addf %84, %193 : vector<8x128xf32>
    %195 = vector.broadcast %118 : vector<1x128xf32> to vector<8x128xf32>
    %196 = arith.addf %194, %195 : vector<8x128xf32>
    %cst_69 = arith.constant dense<0.000000e+00> : vector<8xf32>
    %197 = vector.multi_reduction <add>, %196, %cst_69 [1] : vector<8x128xf32> to vector<8xf32>
    %198 = vector.shape_cast %197 : vector<8xf32> to vector<8x1xf32>
    %cst_70 = arith.constant 1.280000e+02 : f32
    %199 = vector.broadcast %cst_70 : f32 to vector<8x1xf32>
    %200 = arith.divf %198, %199 : vector<8x1xf32>
    %201 = vector.broadcast %200 : vector<8x1xf32> to vector<8x128xf32>
    %202 = arith.subf %196, %201 : vector<8x128xf32>
    %203 = arith.mulf %202, %202 : vector<8x128xf32>
    %cst_71 = arith.constant dense<0.000000e+00> : vector<8xf32>
    %204 = vector.multi_reduction <add>, %203, %cst_71 [1] : vector<8x128xf32> to vector<8xf32>
    %205 = vector.shape_cast %204 : vector<8xf32> to vector<8x1xf32>
    %cst_72 = arith.constant 1.280000e+02 : f32
    %206 = vector.broadcast %cst_72 : f32 to vector<8x1xf32>
    %207 = arith.divf %205, %206 : vector<8x1xf32>
    %208 = vector.broadcast %200 : vector<8x1xf32> to vector<8x128xf32>
    %209 = arith.subf %196, %208 : vector<8x128xf32>
    %cst_73 = arith.constant 9.99999997E-7 : f32
    %210 = vector.broadcast %cst_73 : f32 to vector<8x1xf32>
    %211 = arith.addf %207, %210 : vector<8x1xf32>
    %212 = math.rsqrt %211 : vector<8x1xf32>
    %213 = vector.broadcast %212 : vector<8x1xf32> to vector<8x128xf32>
    %214 = arith.mulf %209, %213 : vector<8x128xf32>
    %215 = vector.broadcast %119 : vector<1x128xf32> to vector<8x128xf32>
    %216 = arith.mulf %214, %215 : vector<8x128xf32>
    %217 = vector.broadcast %120 : vector<1x128xf32> to vector<8x128xf32>
    %218 = arith.addf %216, %217 : vector<8x128xf32>
    %219 = arith.truncf %218 : vector<8x128xf32> to vector<8x128xbf16>
    %cst_74 = arith.constant dense<0.000000e+00> : vector<8x512xf32>
    %220 = tpu.matmul %219, %110, %cst_74 {dimension_numbers = #tpu.dot_dimension_numbers<[1], [0], [0], [1], [0, 0, 1, 1], [], []>} : vector<8x128xbf16>, vector<128x512xbf16>, vector<8x512xf32> -> vector<8x512xf32>
    %221 = vector.broadcast %121 : vector<1x512xf32> to vector<8x512xf32>
    %222 = arith.addf %220, %221 : vector<8x512xf32>
    %223 = arith.mulf %222, %222 : vector<8x512xf32>
    %224 = arith.mulf %222, %223 : vector<8x512xf32>
    %cst_75 = arith.constant 4.471500e-02 : f32
    %225 = vector.broadcast %cst_75 : f32 to vector<8x512xf32>
    %226 = arith.mulf %225, %224 : vector<8x512xf32>
    %227 = arith.addf %222, %226 : vector<8x512xf32>
    %cst_76 = arith.constant 0.797884583 : f32
    %228 = vector.broadcast %cst_76 : f32 to vector<8x512xf32>
    %229 = arith.mulf %228, %227 : vector<8x512xf32>
    %230 = math.tanh %229 : vector<8x512xf32>
    %cst_77 = arith.constant 1.000000e+00 : f32
    %231 = vector.broadcast %cst_77 : f32 to vector<8x512xf32>
    %232 = arith.addf %231, %230 : vector<8x512xf32>
    %cst_78 = arith.constant 5.000000e-01 : f32
    %233 = vector.broadcast %cst_78 : f32 to vector<8x512xf32>
    %234 = arith.mulf %233, %232 : vector<8x512xf32>
    %235 = arith.mulf %222, %234 : vector<8x512xf32>
    %236 = arith.truncf %235 : vector<8x512xf32> to vector<8x512xbf16>
    %cst_79 = arith.constant dense<0.000000e+00> : vector<8x128xf32>
    %237 = tpu.matmul %236, %112, %cst_79 {dimension_numbers = #tpu.dot_dimension_numbers<[1], [0], [0], [1], [0, 0, 1, 1], [], []>} : vector<8x512xbf16>, vector<512x128xbf16>, vector<8x128xf32> -> vector<8x128xf32>
    %238 = arith.addf %196, %237 : vector<8x128xf32>
    %239 = vector.broadcast %122 : vector<1x128xf32> to vector<8x128xf32>
    %240 = arith.addf %238, %239 : vector<8x128xf32>
    %c1_80 = arith.constant 1 : index
    %c0_81 = arith.constant 0 : index
    %c0_82 = arith.constant 0 : index
    %241 = vector.load %arg4[%c1_80, %c0_81, %c0_82] : memref<2x128x768xbf16, #tpu.memory_space<vmem>>, vector<1x128x768xbf16>
    %242 = vector.shape_cast %241 : vector<1x128x768xbf16> to vector<128x768xbf16>
    %c1_83 = arith.constant 1 : index
    %c0_84 = arith.constant 0 : index
    %c0_85 = arith.constant 0 : index
    %243 = vector.load %arg5[%c1_83, %c0_84, %c0_85] : memref<2x128x128xbf16, #tpu.memory_space<vmem>>, vector<1x128x128xbf16>
    %244 = vector.shape_cast %243 : vector<1x128x128xbf16> to vector<128x128xbf16>
    %c1_86 = arith.constant 1 : index
    %c0_87 = arith.constant 0 : index
    %c0_88 = arith.constant 0 : index
    %245 = vector.load %arg6[%c1_86, %c0_87, %c0_88] : memref<2x128x512xbf16, #tpu.memory_space<vmem>>, vector<1x128x512xbf16>
    %246 = vector.shape_cast %245 : vector<1x128x512xbf16> to vector<128x512xbf16>
    %c1_89 = arith.constant 1 : index
    %c0_90 = arith.constant 0 : index
    %c0_91 = arith.constant 0 : index
    %247 = vector.load %arg7[%c1_89, %c0_90, %c0_91] : memref<2x512x128xbf16, #tpu.memory_space<vmem>>, vector<1x512x128xbf16>
    %248 = vector.shape_cast %247 : vector<1x512x128xbf16> to vector<512x128xbf16>
    %c1_92 = arith.constant 1 : index
    %c0_93 = arith.constant 0 : index
    %c0_94 = arith.constant 0 : index
    %249 = vector.load %arg8[%c1_92, %c0_93, %c0_94] : memref<2x8x768xf32, #tpu.memory_space<vmem>>, vector<1x8x768xf32>
    %250 = vector.shape_cast %249 : vector<1x8x768xf32> to vector<8x768xf32>
    %251 = vector.extract_strided_slice %250 {offsets = [0, 0], sizes = [1, 128], strides = [1, 1]} : vector<8x768xf32> to vector<1x128xf32>
    %252 = vector.extract_strided_slice %250 {offsets = [1, 0], sizes = [1, 128], strides = [1, 1]} : vector<8x768xf32> to vector<1x128xf32>
    %253 = vector.extract_strided_slice %250 {offsets = [2, 0], sizes = [1, 768], strides = [1, 1]} : vector<8x768xf32> to vector<1x768xf32>
    %254 = vector.extract_strided_slice %250 {offsets = [3, 0], sizes = [1, 128], strides = [1, 1]} : vector<8x768xf32> to vector<1x128xf32>
    %255 = vector.extract_strided_slice %250 {offsets = [4, 0], sizes = [1, 128], strides = [1, 1]} : vector<8x768xf32> to vector<1x128xf32>
    %256 = vector.extract_strided_slice %250 {offsets = [5, 0], sizes = [1, 128], strides = [1, 1]} : vector<8x768xf32> to vector<1x128xf32>
    %257 = vector.extract_strided_slice %250 {offsets = [6, 0], sizes = [1, 512], strides = [1, 1]} : vector<8x768xf32> to vector<1x512xf32>
    %258 = vector.extract_strided_slice %250 {offsets = [7, 0], sizes = [1, 128], strides = [1, 1]} : vector<8x768xf32> to vector<1x128xf32>
    %cst_95 = arith.constant dense<0.000000e+00> : vector<8xf32>
    %259 = vector.multi_reduction <add>, %240, %cst_95 [1] : vector<8x128xf32> to vector<8xf32>
    %260 = vector.shape_cast %259 : vector<8xf32> to vector<8x1xf32>
    %cst_96 = arith.constant 1.280000e+02 : f32
    %261 = vector.broadcast %cst_96 : f32 to vector<8x1xf32>
    %262 = arith.divf %260, %261 : vector<8x1xf32>
    %263 = vector.broadcast %262 : vector<8x1xf32> to vector<8x128xf32>
    %264 = arith.subf %240, %263 : vector<8x128xf32>
    %265 = arith.mulf %264, %264 : vector<8x128xf32>
    %cst_97 = arith.constant dense<0.000000e+00> : vector<8xf32>
    %266 = vector.multi_reduction <add>, %265, %cst_97 [1] : vector<8x128xf32> to vector<8xf32>
    %267 = vector.shape_cast %266 : vector<8xf32> to vector<8x1xf32>
    %cst_98 = arith.constant 1.280000e+02 : f32
    %268 = vector.broadcast %cst_98 : f32 to vector<8x1xf32>
    %269 = arith.divf %267, %268 : vector<8x1xf32>
    %270 = vector.broadcast %262 : vector<8x1xf32> to vector<8x128xf32>
    %271 = arith.subf %240, %270 : vector<8x128xf32>
    %cst_99 = arith.constant 9.99999997E-7 : f32
    %272 = vector.broadcast %cst_99 : f32 to vector<8x1xf32>
    %273 = arith.addf %269, %272 : vector<8x1xf32>
    %274 = math.rsqrt %273 : vector<8x1xf32>
    %275 = vector.broadcast %274 : vector<8x1xf32> to vector<8x128xf32>
    %276 = arith.mulf %271, %275 : vector<8x128xf32>
    %277 = vector.broadcast %251 : vector<1x128xf32> to vector<8x128xf32>
    %278 = arith.mulf %276, %277 : vector<8x128xf32>
    %279 = vector.broadcast %252 : vector<1x128xf32> to vector<8x128xf32>
    %280 = arith.addf %278, %279 : vector<8x128xf32>
    %281 = arith.truncf %280 : vector<8x128xf32> to vector<8x128xbf16>
    %cst_100 = arith.constant dense<0.000000e+00> : vector<8x768xf32>
    %282 = tpu.matmul %281, %242, %cst_100 {dimension_numbers = #tpu.dot_dimension_numbers<[1], [0], [0], [1], [0, 0, 1, 1], [], []>} : vector<8x128xbf16>, vector<128x768xbf16>, vector<8x768xf32> -> vector<8x768xf32>
    %283 = vector.broadcast %253 : vector<1x768xf32> to vector<8x768xf32>
    %284 = arith.addf %282, %283 : vector<8x768xf32>
    %cst_101 = arith.constant 0.000000e+00 : f32
    %285 = vector.broadcast %cst_101 : f32 to vector<8x128xf32>
    %286 = vector.extract_strided_slice %284 {offsets = [0, 0], sizes = [8, 128], strides = [1, 1]} : vector<8x768xf32> to vector<8x128xf32>
    %287 = vector.extract_strided_slice %284 {offsets = [0, 128], sizes = [8, 128], strides = [1, 1]} : vector<8x768xf32> to vector<8x128xf32>
    %288 = vector.extract_strided_slice %284 {offsets = [0, 256], sizes = [8, 128], strides = [1, 1]} : vector<8x768xf32> to vector<8x128xf32>
    %289 = arith.truncf %286 : vector<8x128xf32> to vector<8x128xbf16>
    %290 = arith.truncf %287 : vector<8x128xf32> to vector<8x128xbf16>
    %cst_102 = arith.constant dense<0.000000e+00> : vector<8x8xf32>
    %291 = tpu.matmul %289, %290, %cst_102 {dimension_numbers = #tpu.dot_dimension_numbers<[1], [1], [0], [0], [0, 0, 1, 0], [], []>} : vector<8x128xbf16>, vector<8x128xbf16>, vector<8x8xf32> -> vector<8x8xf32>
    %292 = arith.addf %291, %99 : vector<8x8xf32>
    %cst_103 = arith.constant dense<0xFF800000> : vector<8xf32>
    %293 = vector.multi_reduction <maximumf>, %292, %cst_103 [1] : vector<8x8xf32> to vector<8xf32>
    %294 = vector.shape_cast %293 : vector<8xf32> to vector<8x1xf32>
    %295 = vector.broadcast %294 : vector<8x1xf32> to vector<8x8xf32>
    %296 = arith.subf %292, %295 : vector<8x8xf32>
    %297 = math.exp %296 : vector<8x8xf32>
    %cst_104 = arith.constant dense<0.000000e+00> : vector<8xf32>
    %298 = vector.multi_reduction <add>, %297, %cst_104 [1] : vector<8x8xf32> to vector<8xf32>
    %299 = vector.shape_cast %298 : vector<8xf32> to vector<8x1xf32>
    %300 = tpu.reciprocal %299 {approx = true} : vector<8x1xf32> -> vector<8x1xf32>
    %301 = vector.broadcast %300 : vector<8x1xf32> to vector<8x8xf32>
    %302 = arith.mulf %297, %301 : vector<8x8xf32>
    %303 = arith.truncf %302 : vector<8x8xf32> to vector<8x8xbf16>
    %304 = arith.truncf %288 : vector<8x128xf32> to vector<8x128xbf16>
    %cst_105 = arith.constant dense<0.000000e+00> : vector<8x128xf32>
    %305 = tpu.matmul %303, %304, %cst_105 {dimension_numbers = #tpu.dot_dimension_numbers<[1], [0], [0], [1], [0, 0, 1, 1], [], []>} : vector<8x8xbf16>, vector<8x128xbf16>, vector<8x128xf32> -> vector<8x128xf32>
    %306 = arith.addf %285, %305 : vector<8x128xf32>
    %307 = vector.extract_strided_slice %284 {offsets = [0, 384], sizes = [8, 128], strides = [1, 1]} : vector<8x768xf32> to vector<8x128xf32>
    %308 = vector.extract_strided_slice %284 {offsets = [0, 512], sizes = [8, 128], strides = [1, 1]} : vector<8x768xf32> to vector<8x128xf32>
    %309 = vector.extract_strided_slice %284 {offsets = [0, 640], sizes = [8, 128], strides = [1, 1]} : vector<8x768xf32> to vector<8x128xf32>
    %310 = arith.truncf %307 : vector<8x128xf32> to vector<8x128xbf16>
    %311 = arith.truncf %308 : vector<8x128xf32> to vector<8x128xbf16>
    %cst_106 = arith.constant dense<0.000000e+00> : vector<8x8xf32>
    %312 = tpu.matmul %310, %311, %cst_106 {dimension_numbers = #tpu.dot_dimension_numbers<[1], [1], [0], [0], [0, 0, 1, 0], [], []>} : vector<8x128xbf16>, vector<8x128xbf16>, vector<8x8xf32> -> vector<8x8xf32>
    %313 = arith.addf %312, %99 : vector<8x8xf32>
    %cst_107 = arith.constant dense<0xFF800000> : vector<8xf32>
    %314 = vector.multi_reduction <maximumf>, %313, %cst_107 [1] : vector<8x8xf32> to vector<8xf32>
    %315 = vector.shape_cast %314 : vector<8xf32> to vector<8x1xf32>
    %316 = vector.broadcast %315 : vector<8x1xf32> to vector<8x8xf32>
    %317 = arith.subf %313, %316 : vector<8x8xf32>
    %318 = math.exp %317 : vector<8x8xf32>
    %cst_108 = arith.constant dense<0.000000e+00> : vector<8xf32>
    %319 = vector.multi_reduction <add>, %318, %cst_108 [1] : vector<8x8xf32> to vector<8xf32>
    %320 = vector.shape_cast %319 : vector<8xf32> to vector<8x1xf32>
    %321 = tpu.reciprocal %320 {approx = true} : vector<8x1xf32> -> vector<8x1xf32>
    %322 = vector.broadcast %321 : vector<8x1xf32> to vector<8x8xf32>
    %323 = arith.mulf %318, %322 : vector<8x8xf32>
    %324 = arith.truncf %323 : vector<8x8xf32> to vector<8x8xbf16>
    %325 = arith.truncf %309 : vector<8x128xf32> to vector<8x128xbf16>
    %cst_109 = arith.constant dense<0.000000e+00> : vector<8x128xf32>
    %326 = tpu.matmul %324, %325, %cst_109 {dimension_numbers = #tpu.dot_dimension_numbers<[1], [0], [0], [1], [0, 0, 1, 1], [], []>} : vector<8x8xbf16>, vector<8x128xbf16>, vector<8x128xf32> -> vector<8x128xf32>
    %327 = arith.addf %306, %326 : vector<8x128xf32>
    %328 = arith.truncf %327 : vector<8x128xf32> to vector<8x128xbf16>
    %cst_110 = arith.constant dense<0.000000e+00> : vector<8x128xf32>
    %329 = tpu.matmul %328, %244, %cst_110 {dimension_numbers = #tpu.dot_dimension_numbers<[1], [0], [0], [1], [0, 0, 1, 1], [], []>} : vector<8x128xbf16>, vector<128x128xbf16>, vector<8x128xf32> -> vector<8x128xf32>
    %330 = arith.addf %240, %329 : vector<8x128xf32>
    %331 = vector.broadcast %254 : vector<1x128xf32> to vector<8x128xf32>
    %332 = arith.addf %330, %331 : vector<8x128xf32>
    %cst_111 = arith.constant dense<0.000000e+00> : vector<8xf32>
    %333 = vector.multi_reduction <add>, %332, %cst_111 [1] : vector<8x128xf32> to vector<8xf32>
    %334 = vector.shape_cast %333 : vector<8xf32> to vector<8x1xf32>
    %cst_112 = arith.constant 1.280000e+02 : f32
    %335 = vector.broadcast %cst_112 : f32 to vector<8x1xf32>
    %336 = arith.divf %334, %335 : vector<8x1xf32>
    %337 = vector.broadcast %336 : vector<8x1xf32> to vector<8x128xf32>
    %338 = arith.subf %332, %337 : vector<8x128xf32>
    %339 = arith.mulf %338, %338 : vector<8x128xf32>
    %cst_113 = arith.constant dense<0.000000e+00> : vector<8xf32>
    %340 = vector.multi_reduction <add>, %339, %cst_113 [1] : vector<8x128xf32> to vector<8xf32>
    %341 = vector.shape_cast %340 : vector<8xf32> to vector<8x1xf32>
    %cst_114 = arith.constant 1.280000e+02 : f32
    %342 = vector.broadcast %cst_114 : f32 to vector<8x1xf32>
    %343 = arith.divf %341, %342 : vector<8x1xf32>
    %344 = vector.broadcast %336 : vector<8x1xf32> to vector<8x128xf32>
    %345 = arith.subf %332, %344 : vector<8x128xf32>
    %cst_115 = arith.constant 9.99999997E-7 : f32
    %346 = vector.broadcast %cst_115 : f32 to vector<8x1xf32>
    %347 = arith.addf %343, %346 : vector<8x1xf32>
    %348 = math.rsqrt %347 : vector<8x1xf32>
    %349 = vector.broadcast %348 : vector<8x1xf32> to vector<8x128xf32>
    %350 = arith.mulf %345, %349 : vector<8x128xf32>
    %351 = vector.broadcast %255 : vector<1x128xf32> to vector<8x128xf32>
    %352 = arith.mulf %350, %351 : vector<8x128xf32>
    %353 = vector.broadcast %256 : vector<1x128xf32> to vector<8x128xf32>
    %354 = arith.addf %352, %353 : vector<8x128xf32>
    %355 = arith.truncf %354 : vector<8x128xf32> to vector<8x128xbf16>
    %cst_116 = arith.constant dense<0.000000e+00> : vector<8x512xf32>
    %356 = tpu.matmul %355, %246, %cst_116 {dimension_numbers = #tpu.dot_dimension_numbers<[1], [0], [0], [1], [0, 0, 1, 1], [], []>} : vector<8x128xbf16>, vector<128x512xbf16>, vector<8x512xf32> -> vector<8x512xf32>
    %357 = vector.broadcast %257 : vector<1x512xf32> to vector<8x512xf32>
    %358 = arith.addf %356, %357 : vector<8x512xf32>
    %359 = arith.mulf %358, %358 : vector<8x512xf32>
    %360 = arith.mulf %358, %359 : vector<8x512xf32>
    %cst_117 = arith.constant 4.471500e-02 : f32
    %361 = vector.broadcast %cst_117 : f32 to vector<8x512xf32>
    %362 = arith.mulf %361, %360 : vector<8x512xf32>
    %363 = arith.addf %358, %362 : vector<8x512xf32>
    %cst_118 = arith.constant 0.797884583 : f32
    %364 = vector.broadcast %cst_118 : f32 to vector<8x512xf32>
    %365 = arith.mulf %364, %363 : vector<8x512xf32>
    %366 = math.tanh %365 : vector<8x512xf32>
    %cst_119 = arith.constant 1.000000e+00 : f32
    %367 = vector.broadcast %cst_119 : f32 to vector<8x512xf32>
    %368 = arith.addf %367, %366 : vector<8x512xf32>
    %cst_120 = arith.constant 5.000000e-01 : f32
    %369 = vector.broadcast %cst_120 : f32 to vector<8x512xf32>
    %370 = arith.mulf %369, %368 : vector<8x512xf32>
    %371 = arith.mulf %358, %370 : vector<8x512xf32>
    %372 = arith.truncf %371 : vector<8x512xf32> to vector<8x512xbf16>
    %cst_121 = arith.constant dense<0.000000e+00> : vector<8x128xf32>
    %373 = tpu.matmul %372, %248, %cst_121 {dimension_numbers = #tpu.dot_dimension_numbers<[1], [0], [0], [1], [0, 0, 1, 1], [], []>} : vector<8x512xbf16>, vector<512x128xbf16>, vector<8x128xf32> -> vector<8x128xf32>
    %374 = arith.addf %332, %373 : vector<8x128xf32>
    %375 = vector.broadcast %258 : vector<1x128xf32> to vector<8x128xf32>
    %376 = arith.addf %374, %375 : vector<8x128xf32>
    %cst_122 = arith.constant dense<0.000000e+00> : vector<8xf32>
    %377 = vector.multi_reduction <add>, %376, %cst_122 [1] : vector<8x128xf32> to vector<8xf32>
    %378 = vector.shape_cast %377 : vector<8xf32> to vector<8x1xf32>
    %cst_123 = arith.constant 1.280000e+02 : f32
    %379 = vector.broadcast %cst_123 : f32 to vector<8x1xf32>
    %380 = arith.divf %378, %379 : vector<8x1xf32>
    %381 = vector.broadcast %380 : vector<8x1xf32> to vector<8x128xf32>
    %382 = arith.subf %376, %381 : vector<8x128xf32>
    %383 = arith.mulf %382, %382 : vector<8x128xf32>
    %cst_124 = arith.constant dense<0.000000e+00> : vector<8xf32>
    %384 = vector.multi_reduction <add>, %383, %cst_124 [1] : vector<8x128xf32> to vector<8xf32>
    %385 = vector.shape_cast %384 : vector<8xf32> to vector<8x1xf32>
    %cst_125 = arith.constant 1.280000e+02 : f32
    %386 = vector.broadcast %cst_125 : f32 to vector<8x1xf32>
    %387 = arith.divf %385, %386 : vector<8x1xf32>
    %388 = vector.broadcast %380 : vector<8x1xf32> to vector<8x128xf32>
    %389 = arith.subf %376, %388 : vector<8x128xf32>
    %cst_126 = arith.constant 9.99999997E-7 : f32
    %390 = vector.broadcast %cst_126 : f32 to vector<8x1xf32>
    %391 = arith.addf %387, %390 : vector<8x1xf32>
    %392 = math.rsqrt %391 : vector<8x1xf32>
    %393 = vector.broadcast %392 : vector<8x1xf32> to vector<8x128xf32>
    %394 = arith.mulf %389, %393 : vector<8x128xf32>
    %395 = vector.broadcast %100 : vector<1x128xf32> to vector<8x128xf32>
    %396 = arith.mulf %394, %395 : vector<8x128xf32>
    %397 = vector.broadcast %101 : vector<1x128xf32> to vector<8x128xf32>
    %398 = arith.addf %396, %397 : vector<8x128xf32>
    %399 = arith.truncf %398 : vector<8x128xf32> to vector<8x128xbf16>
    %cst_127 = arith.constant dense<0.000000e+00> : vector<8x256xf32>
    %400 = tpu.matmul %399, %102, %cst_127 {dimension_numbers = #tpu.dot_dimension_numbers<[1], [0], [0], [1], [0, 0, 1, 1], [], []>} : vector<8x128xbf16>, vector<128x256xbf16>, vector<8x256xf32> -> vector<8x256xf32>
    %401 = vector.broadcast %103 : vector<1x256xf32> to vector<8x256xf32>
    %402 = arith.addf %400, %401 : vector<8x256xf32>
    %403 = vector.extract_strided_slice %402 {offsets = [0, 0], sizes = [8, 128], strides = [1, 1]} : vector<8x256xf32> to vector<8x128xf32>
    %404 = vector.extract_strided_slice %402 {offsets = [0, 128], sizes = [8, 128], strides = [1, 1]} : vector<8x256xf32> to vector<8x128xf32>
    %405 = arith.mulf %404, %404 : vector<8x128xf32>
    %cst_128 = arith.constant dense<0.000000e+00> : vector<8xf32>
    %406 = vector.multi_reduction <add>, %405, %cst_128 [1] : vector<8x128xf32> to vector<8xf32>
    %407 = vector.shape_cast %406 : vector<8xf32> to vector<8x1xf32>
    %408 = math.rsqrt %407 : vector<8x1xf32>
    %409 = vector.broadcast %408 : vector<8x1xf32> to vector<8x128xf32>
    %410 = arith.mulf %404, %409 : vector<8x128xf32>
    %411 = arith.truncf %410 : vector<8x128xf32> to vector<8x128xbf16>
    %cst_129 = arith.constant dense<0.000000e+00> : vector<8x128xf32>
    %412 = tpu.matmul %411, %104, %cst_129 {dimension_numbers = #tpu.dot_dimension_numbers<[1], [0], [0], [1], [0, 0, 1, 1], [], []>} : vector<8x128xbf16>, vector<128x128xbf16>, vector<8x128xf32> -> vector<8x128xf32>
    %c0_130 = arith.constant 0 : index
    %c0_131 = arith.constant 0 : index
    %413 = vector.load %arg11[%c0_130, %c0_131] : memref<8x256xf32, #tpu.memory_space<vmem>>, vector<8x128xf32>
    tpu.vector_store %arg11[%c0_130, %c0_131], %403 {strides = array<i32>} : memref<8x256xf32, #tpu.memory_space<vmem>>, vector<8x128xf32>,
    %c0_132 = arith.constant 0 : index
    %c128 = arith.constant 128 : index
    %414 = vector.load %arg11[%c0_132, %c128] : memref<8x256xf32, #tpu.memory_space<vmem>>, vector<8x128xf32>
    tpu.vector_store %arg11[%c0_132, %c128], %412 {strides = array<i32>} : memref<8x256xf32, #tpu.memory_space<vmem>>, vector<8x128xf32>,
    return
  }
}

</mosaic_0001>

<llo_original>
// kernel: tpu_custom_call.1
$region0: #{tpu_custom_call.1}
  #allocation0 [shape = 'u32[]', space=smem, size = 0x4, offset = 0x4, fixed_abs, tag = 'smem constant byte address 0x4 - core index']
  #allocation1 [shape = 'u32[144,128]{1,0:T(1,128)}', space=vmem, size = 0x12000, scoped, tag = 'internal scratch']
  #allocation2 [shape = 'f32[8,128]{1,0:T(8,128)}', space=vmem, size = 0x1000, scoped, tag = 'scratch operand']
  %s0 = inlined_call_operand.hbm [shape: f32[2,128], index: 0, kind: input, shape index: {}]
  %s1 = inlined_call_operand.hbm [shape: f32[2,256], index: 1, kind: input, shape index: {}]
  %s2 = inlined_call_operand.hbm [shape: bf16[384,128], index: 2, kind: input, shape index: {}]
  %s3 = inlined_call_operand.hbm [shape: f32[16,256], index: 3, kind: input, shape index: {}]
  %s4 = inlined_call_operand.hbm [shape: bf16[2,128,768], index: 4, kind: input, shape index: {}]
  %s5 = inlined_call_operand.hbm [shape: bf16[2,128,128], index: 5, kind: input, shape index: {}]
  %s6 = inlined_call_operand.hbm [shape: bf16[2,128,512], index: 6, kind: input, shape index: {}]
  %s7 = inlined_call_operand.hbm [shape: bf16[2,512,128], index: 7, kind: input, shape index: {}]
  %s8 = inlined_call_operand.hbm [shape: f32[2,8,768], index: 8, kind: input, shape index: {}]
  %s9 = inlined_call_operand.hbm [shape: bf16[128,256], index: 9, kind: input, shape index: {}]
  %s10 = inlined_call_operand.hbm [shape: bf16[128,128], index: 10, kind: input, shape index: {}]
  %s11 = inlined_call_operand.hbm [shape: f32[8,256], index: 11, kind: output, shape index: {}]
  %s12 = sld [smem:[#allocation0]]
  $region98: #{tpu_custom_call.1} parent=0
    _
  %s14 = ssub.s32 1, %s12
  %s15 = scalar_select 0, %s14, %s12
  $region1: #{tpu_custom_call.1} parent=0
    #allocation3 [shape = 'u8[1024]{0}', space=vmem, size = 0x400, scoped, tag = 'input window, operand 0, single buffered']
    #allocation4 [shape = 's32[1]{0}', space=sflag, size = 0x4, scoped, tag = 'scoped memory for tpu_custom_call.1']
    #allocation5 [shape = 's32[1]{0}', space=sflag, size = 0x4, scoped, tag = 'scoped memory for tpu_custom_call.1']
    #allocation6 [shape = 'u8[2048]{0}', space=vmem, size = 0x800, scoped, tag = 'input window, operand 1, single buffered']
    #allocation7 [shape = 's32[1]{0}', space=sflag, size = 0x4, scoped, tag = 'scoped memory for tpu_custom_call.1']
    #allocation8 [shape = 'u8[98304]{0}', space=vmem, size = 0x18000, scoped, tag = 'input window, operand 2, single buffered']
    #allocation9 [shape = 'u8[16384]{0}', space=vmem, size = 0x4000, scoped, tag = 'input window, operand 3, single buffered']
    #allocation10 [shape = 's32[1]{0}', space=sflag, size = 0x4, scoped, tag = 'scoped memory for tpu_custom_call.1']
    #allocation11 [shape = 'u8[393216]{0}', space=vmem, size = 0x60000, scoped, tag = 'input window, operand 4, single buffered']
    #allocation12 [shape = 'u8[65536]{0}', space=vmem, size = 0x10000, scoped, tag = 'input window, operand 5, single buffered']
    #allocation13 [shape = 's32[1]{0}', space=sflag, size = 0x4, scoped, tag = 'scoped memory for tpu_custom_call.1']
    #allocation14 [shape = 'u8[262144]{0}', space=vmem, size = 0x40000, scoped, tag = 'input window, operand 6, single buffered']
    #allocation15 [shape = 'u8[262144]{0}', space=vmem, size = 0x40000, scoped, tag = 'input window, operand 7, single buffered']
    #allocation16 [shape = 's32[1]{0}', space=sflag, size = 0x4, scoped, tag = 'scoped memory for tpu_custom_call.1']
    #allocation17 [shape = 'u8[49152]{0}', space=vmem, size = 0xc000, scoped, tag = 'input window, operand 8, single buffered']
    #allocation18 [shape = 'u8[65536]{0}', space=vmem, size = 0x10000, scoped, tag = 'input window, operand 9, single buffered']
    #allocation19 [shape = 's32[1]{0}', space=sflag, size = 0x4, scoped, tag = 'scoped memory for tpu_custom_call.1']
    #allocation20 [shape = 'u8[32768]{0}', space=vmem, size = 0x8000, scoped, tag = 'input window, operand 10, single buffered']
    #allocation21 [shape = 'u8[8192]{0}', space=vmem, size = 0x2000, scoped, tag = 'output window, operand 0, single buffered']
    %16 = vsyncpa [#allocation4], 0
    %17 = vsyncpa [#allocation7], 0
    %18 = vsyncpa [#allocation10], 0
    %19 = vsyncpa [#allocation13], 0
    %20 = vsyncpa [#allocation16], 0
    %21 = vsyncpa [#allocation19], 0
    %22 = vsyncpa [#allocation5], 0
    // Predicated region
    $region2: #{tpu_custom_call.1} parent=1 // pred_check
      _
    $region3: #{tpu_custom_call.1} parent=1 // pred_check_branch
      %24 = sbr.rel (0) target = $region5
    $region4: #{tpu_custom_call.1} parent=1 // pred_region
      %s26 = ssub.s32 32, 32
      %27 = vsyncadd [#allocation4], %s26
      %s29 = sshll.u32 [#allocation3], 4
      %s30 = int_to_ptr.vmem [resolvable:$true] %s29
      %32 = dma.hbm_to_vmem [thread:$0]  %s0, 32, %s30, [#allocation4]
    $region5: #{tpu_custom_call.1} parent=1 // pred_fallthru
      _
    // Predicated region
    $region6: #{tpu_custom_call.1} parent=1 // pred_check
      _
    $region7: #{tpu_custom_call.1} parent=1 // pred_check_branch
      %34 = sbr.rel (0) target = $region9
    $region8: #{tpu_custom_call.1} parent=1 // pred_region
      %s36 = ssub.s32 64, 64
      %37 = vsyncadd [#allocation7], %s36
      %s39 = sshll.u32 [#allocation6], 4
      %s40 = int_to_ptr.vmem [resolvable:$true] %s39
      %42 = dma.hbm_to_vmem [thread:$0]  %s1, 64, %s40, [#allocation7]
    $region9: #{tpu_custom_call.1} parent=1 // pred_fallthru
      _
    // Predicated region
    $region10: #{tpu_custom_call.1} parent=1 // pred_check
      _
    $region11: #{tpu_custom_call.1} parent=1 // pred_check_branch
      %44 = sbr.rel (0) target = $region13
    $region12: #{tpu_custom_call.1} parent=1 // pred_region
      %s46 = ssub.s32 3072, 3072
      %47 = vsyncadd [#allocation7], %s46
      %s48 = sshll.u32 [#allocation8], 4
      %s49 = int_to_ptr.vmem [resolvable:$true] %s48
      %54 = dma.hbm_to_vmem [thread:$0]  %s2, 3072, %s49, [#allocation7], 64, 64, 4
    $region13: #{tpu_custom_call.1} parent=1 // pred_fallthru
      _
    // Predicated region
    $region14: #{tpu_custom_call.1} parent=1 // pred_check
      _
    $region15: #{tpu_custom_call.1} parent=1 // pred_check_branch
      %56 = sbr.rel (0) target = $region17
    $region16: #{tpu_custom_call.1} parent=1 // pred_region
      %s58 = ssub.s32 512, 512
      %59 = vsyncadd [#allocation10], %s58
      %s60 = sshll.u32 [#allocation9], 4
      %s61 = int_to_ptr.vmem [resolvable:$true] %s60
      %66 = dma.hbm_to_vmem [thread:$0]  %s3, 512, %s61, [#allocation10], 256, 256, 16
    $region17: #{tpu_custom_call.1} parent=1 // pred_fallthru
      _
    // Predicated region
    $region18: #{tpu_custom_call.1} parent=1 // pred_check
      _
    $region19: #{tpu_custom_call.1} parent=1 // pred_check_branch
      %68 = sbr.rel (0) target = $region21
    $region20: #{tpu_custom_call.1} parent=1 // pred_region
      %s70 = ssub.s32 12288, 12288
      %71 = vsyncadd [#allocation10], %s70
      %s72 = sshll.u32 [#allocation11], 4
      %s73 = int_to_ptr.vmem [resolvable:$true] %s72
      %78 = dma.hbm_to_vmem [thread:$0]  %s4, 12288, %s73, [#allocation10], 384, 384, 24
    $region21: #{tpu_custom_call.1} parent=1 // pred_fallthru
      _
    // Predicated region
    $region22: #{tpu_custom_call.1} parent=1 // pred_check
      _
    $region23: #{tpu_custom_call.1} parent=1 // pred_check_branch
      %80 = sbr.rel (0) target = $region25
    $region24: #{tpu_custom_call.1} parent=1 // pred_region
      %s82 = ssub.s32 2048, 2048
      %83 = vsyncadd [#allocation13], %s82
      %s84 = sshll.u32 [#allocation12], 4
      %s85 = int_to_ptr.vmem [resolvable:$true] %s84
      %90 = dma.hbm_to_vmem [thread:$0]  %s5, 2048, %s85, [#allocation13], 64, 64, 4
    $region25: #{tpu_custom_call.1} parent=1 // pred_fallthru
      _
    // Predicated region
    $region26: #{tpu_custom_call.1} parent=1 // pred_check
      _
    $region27: #{tpu_custom_call.1} parent=1 // pred_check_branch
      %92 = sbr.rel (0) target = $region29
    $region28: #{tpu_custom_call.1} parent=1 // pred_region
      %s94 = ssub.s32 8192, 8192
      %95 = vsyncadd [#allocation13], %s94
      %s96 = sshll.u32 [#allocation14], 4
      %s97 = int_to_ptr.vmem [resolvable:$true] %s96
      %102 = dma.hbm_to_vmem [thread:$0]  %s6, 8192, %s97, [#allocation13], 256, 256, 16
    $region29: #{tpu_custom_call.1} parent=1 // pred_fallthru
      _
    // Predicated region
    $region30: #{tpu_custom_call.1} parent=1 // pred_check
      _
    $region31: #{tpu_custom_call.1} parent=1 // pred_check_branch
      %104 = sbr.rel (0) target = $region33
    $region32: #{tpu_custom_call.1} parent=1 // pred_region
      %s106 = ssub.s32 8192, 8192
      %107 = vsyncadd [#allocation16], %s106
      %s108 = sshll.u32 [#allocation15], 4
      %s109 = int_to_ptr.vmem [resolvable:$true] %s108
      %114 = dma.hbm_to_vmem [thread:$0]  %s7, 8192, %s109, [#allocation16], 64, 64, 4
    $region33: #{tpu_custom_call.1} parent=1 // pred_fallthru
      _
    // Predicated region
    $region34: #{tpu_custom_call.1} parent=1 // pred_check
      _
    $region35: #{tpu_custom_call.1} parent=1 // pred_check_branch
      %116 = sbr.rel (0) target = $region37
    $region36: #{tpu_custom_call.1} parent=1 // pred_region
      %s118 = ssub.s32 1536, 1536
      %119 = vsyncadd [#allocation16], %s118
      %s120 = sshll.u32 [#allocation17], 4
      %s121 = int_to_ptr.vmem [resolvable:$true] %s120
      %126 = dma.hbm_to_vmem [thread:$0]  %s8, 1536, %s121, [#allocation16], 768, 768, 48
    $region37: #{tpu_custom_call.1} parent=1 // pred_fallthru
      _
    // Predicated region
    $region38: #{tpu_custom_call.1} parent=1 // pred_check
      _
    $region39: #{tpu_custom_call.1} parent=1 // pred_check_branch
      %128 = sbr.rel (0) target = $region41
    $region40: #{tpu_custom_call.1} parent=1 // pred_region
      %s130 = ssub.s32 2048, 2048
      %131 = vsyncadd [#allocation19], %s130
      %s132 = sshll.u32 [#allocation18], 4
      %s133 = int_to_ptr.vmem [resolvable:$true] %s132
      %138 = dma.hbm_to_vmem [thread:$0]  %s9, 2048, %s133, [#allocation19], 128, 128, 8
    $region41: #{tpu_custom_call.1} parent=1 // pred_fallthru
      _
    // Predicated region
    $region42: #{tpu_custom_call.1} parent=1 // pred_check
      _
    $region43: #{tpu_custom_call.1} parent=1 // pred_check_branch
      %140 = sbr.rel (0) target = $region45
    $region44: #{tpu_custom_call.1} parent=1 // pred_region
      %s142 = ssub.s32 1024, 1024
      %143 = vsyncadd [#allocation19], %s142
      %s144 = sshll.u32 [#allocation20], 4
      %s145 = int_to_ptr.vmem [resolvable:$true] %s144
      %150 = dma.hbm_to_vmem [thread:$0]  %s10, 1024, %s145, [#allocation19], 64, 64, 4
    $region45: #{tpu_custom_call.1} parent=1 // pred_fallthru
      _
    // Predicated region
    $region46: #{tpu_custom_call.1} parent=1 // pred_check
      _
    $region47: #{tpu_custom_call.1} parent=1 // pred_check_branch
      %152 = sbr.rel (0) target = $region49
    $region48: #{tpu_custom_call.1} parent=1 // pred_region
      %153 = dma.done [#allocation4], 32
    $region49: #{tpu_custom_call.1} parent=1 // pred_fallthru
      _
    // Predicated region
    $region50: #{tpu_custom_call.1} parent=1 // pred_check
      _
    $region51: #{tpu_custom_call.1} parent=1 // pred_check_branch
      %155 = sbr.rel (0) target = $region53
    $region52: #{tpu_custom_call.1} parent=1 // pred_region
      %156 = dma.done [#allocation7], 64
    $region53: #{tpu_custom_call.1} parent=1 // pred_fallthru
      _
    // Predicated region
    $region54: #{tpu_custom_call.1} parent=1 // pred_check
      _
    $region55: #{tpu_custom_call.1} parent=1 // pred_check_branch
      %158 = sbr.rel (0) target = $region57
    $region56: #{tpu_custom_call.1} parent=1 // pred_region
      %159 = dma.done [#allocation7], 3072
    $region57: #{tpu_custom_call.1} parent=1 // pred_fallthru
      _
    // Predicated region
    $region58: #{tpu_custom_call.1} parent=1 // pred_check
      _
    $region59: #{tpu_custom_call.1} parent=1 // pred_check_branch
      %161 = sbr.rel (0) target = $region61
    $region60: #{tpu_custom_call.1} parent=1 // pred_region
      %162 = dma.done [#allocation10], 512
    $region61: #{tpu_custom_call.1} parent=1 // pred_fallthru
      _
    // Predicated region
    $region62: #{tpu_custom_call.1} parent=1 // pred_check
      _
    $region63: #{tpu_custom_call.1} parent=1 // pred_check_branch
      %164 = sbr.rel (0) target = $region65
    $region64: #{tpu_custom_call.1} parent=1 // pred_region
      %165 = dma.done [#allocation10], 12288
    $region65: #{tpu_custom_call.1} parent=1 // pred_fallthru
      _
    // Predicated region
    $region66: #{tpu_custom_call.1} parent=1 // pred_check
      _
    $region67: #{tpu_custom_call.1} parent=1 // pred_check_branch
      %167 = sbr.rel (0) target = $region69
    $region68: #{tpu_custom_call.1} parent=1 // pred_region
      %168 = dma.done [#allocation13], 2048
    $region69: #{tpu_custom_call.1} parent=1 // pred_fallthru
      _
    // Predicated region
    $region70: #{tpu_custom_call.1} parent=1 // pred_check
      _
    $region71: #{tpu_custom_call.1} parent=1 // pred_check_branch
      %170 = sbr.rel (0) target = $region73
    $region72: #{tpu_custom_call.1} parent=1 // pred_region
      %171 = dma.done [#allocation13], 8192
    $region73: #{tpu_custom_call.1} parent=1 // pred_fallthru
      _
    // Predicated region
    $region74: #{tpu_custom_call.1} parent=1 // pred_check
      _
    $region75: #{tpu_custom_call.1} parent=1 // pred_check_branch
      %173 = sbr.rel (0) target = $region77
    $region76: #{tpu_custom_call.1} parent=1 // pred_region
      %174 = dma.done [#allocation16], 8192
    $region77: #{tpu_custom_call.1} parent=1 // pred_fallthru
      _
    // Predicated region
    $region78: #{tpu_custom_call.1} parent=1 // pred_check
      _
    $region79: #{tpu_custom_call.1} parent=1 // pred_check_branch
      %176 = sbr.rel (0) target = $region81
    $region80: #{tpu_custom_call.1} parent=1 // pred_region
      %177 = dma.done [#allocation16], 1536
    $region81: #{tpu_custom_call.1} parent=1 // pred_fallthru
      _
    // Predicated region
    $region82: #{tpu_custom_call.1} parent=1 // pred_check
      _
    $region83: #{tpu_custom_call.1} parent=1 // pred_check_branch
      %179 = sbr.rel (0) target = $region85
    $region84: #{tpu_custom_call.1} parent=1 // pred_region
      %180 = dma.done [#allocation19], 2048
    $region85: #{tpu_custom_call.1} parent=1 // pred_fallthru
      _
    // Predicated region
    $region86: #{tpu_custom_call.1} parent=1 // pred_check
      _
    $region87: #{tpu_custom_call.1} parent=1 // pred_check_branch
      %182 = sbr.rel (0) target = $region89
    $region88: #{tpu_custom_call.1} parent=1 // pred_region
      %183 = dma.done [#allocation19], 1024
    $region89: #{tpu_custom_call.1} parent=1 // pred_fallthru
      _
    %v185 = vld [vmem:[#allocation9] sm:$0xff]
    %v186 = vld [vmem:[#allocation9 + $0x10] sm:$0xff]
    %v187 = vld [vmem:[#allocation9 + $0x18] sm:$0xff]
    %v188 = vld [vmem:[#allocation3] sm:$0x3]
    %v189 = vld [vmem:[#allocation6] sm:$0xf]
    %v190 = vld [vmem:[#allocation8] sm:$0xf]
    %v191 = vld [vmem:[#allocation8 + $0x4] sm:$0xf]
    %v192 = vld [vmem:[#allocation8 + $0x8] sm:$0xf]
    %v193 = vld [vmem:[#allocation8 + $0xc] sm:$0xf]
    %v194 = vld [vmem:[#allocation8 + $0x10] sm:$0xf]
    %v195 = vld [vmem:[#allocation8 + $0x14] sm:$0xf]
    %v196 = vld [vmem:[#allocation8 + $0x18] sm:$0xf]
    %v197 = vld [vmem:[#allocation8 + $0x1c] sm:$0xf]
    %v198 = vld [vmem:[#allocation8 + $0x20] sm:$0xf]
    %v199 = vld [vmem:[#allocation8 + $0x24] sm:$0xf]
    %v200 = vld [vmem:[#allocation8 + $0x28] sm:$0xf]
    %v201 = vld [vmem:[#allocation8 + $0x2c] sm:$0xf]
    %v202 = vld [vmem:[#allocation8 + $0x30] sm:$0xf]
    %v203 = vld [vmem:[#allocation8 + $0x34] sm:$0xf]
    %v204 = vld [vmem:[#allocation8 + $0x38] sm:$0xf]
    %v205 = vld [vmem:[#allocation8 + $0x3c] sm:$0xf]
    %v206 = vld [vmem:[#allocation8 + $0x40] sm:$0xf]
    %v207 = vld [vmem:[#allocation8 + $0x44] sm:$0xf]
    %v208 = vld [vmem:[#allocation8 + $0x48] sm:$0xf]
    %v209 = vld [vmem:[#allocation8 + $0x4c] sm:$0xf]
    %v210 = vld [vmem:[#allocation8 + $0x50] sm:$0xf]
    %v211 = vld [vmem:[#allocation8 + $0x54] sm:$0xf]
    %v212 = vld [vmem:[#allocation8 + $0x58] sm:$0xf]
    %v213 = vld [vmem:[#allocation8 + $0x5c] sm:$0xf]
    %v214 = vld [vmem:[#allocation8 + $0x60] sm:$0xf]
    %v215 = vld [vmem:[#allocation8 + $0x64] sm:$0xf]
    %v216 = vld [vmem:[#allocation8 + $0x68] sm:$0xf]
    %v217 = vld [vmem:[#allocation8 + $0x6c] sm:$0xf]
    %v218 = vld [vmem:[#allocation8 + $0x70] sm:$0xf]
    %v219 = vld [vmem:[#allocation8 + $0x74] sm:$0xf]
    %v220 = vld [vmem:[#allocation8 + $0x78] sm:$0xf]
    %v221 = vld [vmem:[#allocation8 + $0x7c] sm:$0xf]
    %v222 = vld [vmem:[#allocation8 + $0x80] sm:$0xf]
    %v223 = vld [vmem:[#allocation8 + $0x84] sm:$0xf]
    %v224 = vld [vmem:[#allocation8 + $0x88] sm:$0xf]
    %v225 = vld [vmem:[#allocation8 + $0x8c] sm:$0xf]
    %v226 = vld [vmem:[#allocation8 + $0x90] sm:$0xf]
    %v227 = vld [vmem:[#allocation8 + $0x94] sm:$0xf]
    %v228 = vld [vmem:[#allocation8 + $0x98] sm:$0xf]
    %v229 = vld [vmem:[#allocation8 + $0x9c] sm:$0xf]
    %v230 = vld [vmem:[#allocation8 + $0xa0] sm:$0xf]
    %v231 = vld [vmem:[#allocation8 + $0xa4] sm:$0xf]
    %v232 = vld [vmem:[#allocation8 + $0xa8] sm:$0xf]
    %v233 = vld [vmem:[#allocation8 + $0xac] sm:$0xf]
    %v234 = vld [vmem:[#allocation8 + $0xb0] sm:$0xf]
    %v235 = vld [vmem:[#allocation8 + $0xb4] sm:$0xf]
    %v236 = vld [vmem:[#allocation8 + $0xb8] sm:$0xf]
    %v237 = vld [vmem:[#allocation8 + $0xbc] sm:$0xf]
    %v238 = vpack.c.bf16 %v188, %v188
    %v239 = vlaneseq
    %v240 = vshrl.u32 %v239, 7
    %v241 = vsub.s32 0, %v240
    %v242 = vrot.slane %v185, %v241
    %v259 = vunpack.c.l.b16 %v190
    %v260 = vunpack.c.l.b16 %v191
    %v261 = vunpack.c.l.b16 %v192
    %v262 = vunpack.c.l.b16 %v193
    %v263 = vunpack.c.l.b16 %v194
    %v264 = vunpack.c.l.b16 %v195
    %v265 = vunpack.c.l.b16 %v196
    %v266 = vunpack.c.l.b16 %v197
    %v267 = vunpack.c.l.b16 %v198
    %v268 = vunpack.c.l.b16 %v199
    %v269 = vunpack.c.l.b16 %v200
    %v270 = vunpack.c.l.b16 %v201
    %v271 = vunpack.c.l.b16 %v202
    %v272 = vunpack.c.l.b16 %v203
    %v273 = vunpack.c.l.b16 %v204
    %v274 = vunpack.c.l.b16 %v205
    %v275 = vpack.c.b16 %v260, %v259
    %v276 = vpack.c.b16 %v262, %v261
    %v277 = vpack.c.b16 %v264, %v263
    %v278 = vpack.c.b16 %v266, %v265
    %v279 = vpack.c.b16 %v268, %v267
    %v280 = vpack.c.b16 %v270, %v269
    %v281 = vpack.c.b16 %v272, %v271
    %v282 = vpack.c.b16 %v274, %v273
    %291 = vmatprep.subr.bf16.mxu0 0
    %292 = vmatpush1.bf16.msra.mxu0 %v275
    %293 = vmatprep.subr.bf16.mxu0 0
    %294 = vmatpush1.bf16.msra.mxu0 %v276
    %295 = vmatprep.subr.bf16.mxu0 0
    %296 = vmatpush1.bf16.msra.mxu0 %v277
    %297 = vmatprep.subr.bf16.mxu0 0
    %298 = vmatpush1.bf16.msra.mxu0 %v278
    %299 = vmatprep.subr.bf16.mxu0 0
    %300 = vmatpush1.bf16.msra.mxu0 %v279
    %301 = vmatprep.subr.bf16.mxu0 0
    %302 = vmatpush1.bf16.msra.mxu0 %v280
    %303 = vmatprep.subr.bf16.mxu0 0
    %304 = vmatpush1.bf16.msra.mxu0 %v281
    %305 = vmatprep.subr.bf16.mxu0 0
    %306 = vmatpush1.bf16.msra.mxu0 %v282
    %307 = vmatprep.subr.bf16.mxu0 0
    %308 = vmatpush1.bf16.msra.mxu0 0
    %309 = vmatprep.subr.bf16.mxu0 0
    %310 = vmatpush1.bf16.msra.mxu0 0
    %311 = vmatprep.subr.bf16.mxu0 0
    %312 = vmatpush1.bf16.msra.mxu0 0
    %313 = vmatprep.subr.bf16.mxu0 0
    %314 = vmatpush1.bf16.msra.mxu0 0
    %315 = vmatprep.subr.bf16.mxu0 0
    %316 = vmatpush1.bf16.msra.mxu0 0
    %317 = vmatprep.subr.bf16.mxu0 0
    %318 = vmatpush1.bf16.msra.mxu0 0
    %319 = vmatprep.subr.bf16.mxu0 0
    %320 = vmatpush1.bf16.msra.mxu0 0
    %321 = vmatprep.subr.bf16.mxu0 0
    %322 = vmatpush1.bf16.msra.mxu0 0
    %323 = vmatprep.mubr.bf16.mxu0 0
    %324 = vmatmul.mubr.bf16.gmra.mrb[0].mxu0 %v238
    %v325 = vpop.f32.mrb[0].mxu0
    %v326 = vadd.f32 %v242, %v325
    %v327 = vpop.f32.mrb[0].mxu0
    %v328 = vpop.f32.mrb[0].mxu0
    %v329 = vpop.f32.mrb[0].mxu0
    %330 = vdwg.mxu0
    %vm331 = vcmask 1041408
    %v332 = vsel %vm331, %v326, 0.0
    %333 = vadd.xlane.f32.xlu0 %v332
    %v334 = vpop.xlane.xlu0 %333
    %v335 = vrcp.pop 128.0
    %v336 = vmul.f32 %v334, %v335
    %v337 = vsub.f32 %v326, %v336
    %v338 = vmul.f32 %v337, %v337
    %v339 = vsel %vm331, %v338, 0.0
    %340 = vadd.xlane.f32.xlu0 %v339
    %v341 = vpop.xlane.xlu0 %340
    %v342 = vmul.f32 %v341, %v335
    %v343 = vadd.f32 %v342, 1e-05
    %v344 = vrsqrt.pop %v343
    %v345 = vmul.f32 %v337, %v344
    %v346 = vlaneseq
    %v347 = vshrl.u32 %v346, 7
    %v348 = vsub.s32 1, %v347
    %v349 = vrot.slane %v185, %v348
    %v350 = vmul.f32 %v345, %v349
    %v351 = vlaneseq
    %v352 = vshrl.u32 %v351, 7
    %v353 = vsub.s32 2, %v352
    %v354 = vrot.slane %v185, %v353
    %v355 = vadd.f32 %v350, %v354
    %v358 = vunpack.c.l.s4 1983009808
    %v359 = vunpack.c.0.s8 %v358
    %v360 = vlaneseq
    %v361 = vshrl.u32 %v360, 7
    %v362 = vsub.s32 %v359, %v361
    %v363 = vrot.slane %v189, %v362
    %v364 = vcombine.high %v363, %v363
    %v367 = vpack.c.bf16 %v363, %v363
    %v368 = vpack.c.bf16 %v364, %v364
    %v369 = vlaneseq
    %v370 = vshrl.u32 %v369, 7
    %v371 = vsub.s32 3, %v370
    %v372 = vrot.slane %v185, %v371
    %v405 = vunpack.c.l.b16 %v206
    %v406 = vunpack.c.l.b16 %v207
    %v407 = vunpack.c.l.b16 %v208
    %v408 = vunpack.c.l.b16 %v209
    %v409 = vunpack.c.l.b16 %v210
    %v410 = vunpack.c.l.b16 %v211
    %v411 = vunpack.c.l.b16 %v212
    %v412 = vunpack.c.l.b16 %v213
    %v413 = vunpack.c.l.b16 %v214
    %v414 = vunpack.c.l.b16 %v215
    %v415 = vunpack.c.l.b16 %v216
    %v416 = vunpack.c.l.b16 %v217
    %v417 = vunpack.c.l.b16 %v218
    %v418 = vunpack.c.l.b16 %v219
    %v419 = vunpack.c.l.b16 %v220
    %v420 = vunpack.c.l.b16 %v221
    %v421 = vunpack.c.l.b16 %v222
    %v422 = vunpack.c.l.b16 %v223
    %v423 = vunpack.c.l.b16 %v224
    %v424 = vunpack.c.l.b16 %v225
    %v425 = vunpack.c.l.b16 %v226
    %v426 = vunpack.c.l.b16 %v227
    %v427 = vunpack.c.l.b16 %v228
    %v428 = vunpack.c.l.b16 %v229
    %v429 = vunpack.c.l.b16 %v230
    %v430 = vunpack.c.l.b16 %v231
    %v431 = vunpack.c.l.b16 %v232
    %v432 = vunpack.c.l.b16 %v233
    %v433 = vunpack.c.l.b16 %v234
    %v434 = vunpack.c.l.b16 %v235
    %v435 = vunpack.c.l.b16 %v236
    %v436 = vunpack.c.l.b16 %v237
    %v437 = vpack.c.b16 %v406, %v405
    %v438 = vpack.c.b16 %v408, %v407
    %v439 = vpack.c.b16 %v410, %v409
    %v440 = vpack.c.b16 %v412, %v411
    %v441 = vpack.c.b16 %v414, %v413
    %v442 = vpack.c.b16 %v416, %v415
    %v443 = vpack.c.b16 %v418, %v417
    %v444 = vpack.c.b16 %v420, %v419
    %v445 = vpack.c.b16 %v422, %v421
    %v446 = vpack.c.b16 %v424, %v423
    %v447 = vpack.c.b16 %v426, %v425
    %v448 = vpack.c.b16 %v428, %v427
    %v449 = vpack.c.b16 %v430, %v429
    %v450 = vpack.c.b16 %v432, %v431
    %v451 = vpack.c.b16 %v434, %v433
    %v452 = vpack.c.b16 %v436, %v435
    %469 = vmatprep.subr.bf16.mxu0 0
    %470 = vmatpush1.bf16.msra.mxu0 %v437
    %471 = vmatprep.subr.bf16.mxu0 0
    %472 = vmatpush1.bf16.msra.mxu0 %v438
    %473 = vmatprep.subr.bf16.mxu0 0
    %474 = vmatpush1.bf16.msra.mxu0 %v439
    %475 = vmatprep.subr.bf16.mxu0 0
    %476 = vmatpush1.bf16.msra.mxu0 %v440
    %477 = vmatprep.subr.bf16.mxu0 0
    %478 = vmatpush1.bf16.msra.mxu0 %v441
    %479 = vmatprep.subr.bf16.mxu0 0
    %480 = vmatpush1.bf16.msra.mxu0 %v442
    %481 = vmatprep.subr.bf16.mxu0 0
    %482 = vmatpush1.bf16.msra.mxu0 %v443
    %483 = vmatprep.subr.bf16.mxu0 0
    %484 = vmatpush1.bf16.msra.mxu0 %v444
    %485 = vmatprep.subr.bf16.mxu0 0
    %486 = vmatpush1.bf16.msra.mxu0 %v445
    %487 = vmatprep.subr.bf16.mxu0 0
    %488 = vmatpush1.bf16.msra.mxu0 %v446
    %489 = vmatprep.subr.bf16.mxu0 0
    %490 = vmatpush1.bf16.msra.mxu0 %v447
    %491 = vmatprep.subr.bf16.mxu0 0
    %492 = vmatpush1.bf16.msra.mxu0 %v448
    %493 = vmatprep.subr.bf16.mxu0 0
    %494 = vmatpush1.bf16.msra.mxu0 %v449
    %495 = vmatprep.subr.bf16.mxu0 0
    %496 = vmatpush1.bf16.msra.mxu0 %v450
    %497 = vmatprep.subr.bf16.mxu0 0
    %498 = vmatpush1.bf16.msra.mxu0 %v451
    %499 = vmatprep.subr.bf16.mxu0 0
    %500 = vmatpush1.bf16.msra.mxu0 %v452
    %501 = vmatprep.mubr.bf16.mxu0 %v368
    %502 = vmatmul.mubr.bf16.gmra.mrb[0].mxu0 %v367
    %v503 = vpop.f32.mrb[0].mxu0
    %v504 = vadd.f32 %v372, %v503
    %v505 = vpop.f32.mrb[0].mxu0
    %v506 = vpop.f32.mrb[0].mxu0
    %v507 = vpop.f32.mrb[0].mxu0
    %508 = vdwg.mxu0
    %v509 = vsel %vm331, %v504, 0.0
    %510 = vadd.xlane.f32.xlu0 %v509
    %v511 = vpop.xlane.xlu0 %510
    %v512 = vmul.f32 %v511, %v335
    %v513 = vsub.f32 %v504, %v512
    %v514 = vmul.f32 %v513, %v513
    %v515 = vsel %vm331, %v514, 0.0
    %516 = vadd.xlane.f32.xlu0 %v515
    %v517 = vpop.xlane.xlu0 %516
    %v518 = vmul.f32 %v517, %v335
    %v519 = vadd.f32 %v518, 1e-05
    %v520 = vrsqrt.pop %v519
    %v521 = vmul.f32 %v513, %v520
    %v522 = vlaneseq
    %v523 = vshrl.u32 %v522, 7
    %v524 = vsub.s32 4, %v523
    %v525 = vrot.slane %v185, %v524
    %v526 = vmul.f32 %v521, %v525
    %v527 = vlaneseq
    %v528 = vshrl.u32 %v527, 7
    %v529 = vsub.s32 5, %v528
    %v530 = vrot.slane %v185, %v529
    %v531 = vadd.f32 %v526, %v530
    %532 = vst [vmem:[#allocation2] sm:$0x1] %v186
    %v534 = vrot.slane %v186, 1
    %v536 = vadd.f32 %v355, %v534
    %537 = vst [vmem:[#allocation2 + $0x1] sm:$0x1] %v536
    %v538 = vrot.slane %v186, 2
    %v540 = vadd.f32 %v531, %v538
    %541 = vst [vmem:[#allocation2 + $0x2] sm:$0x1] %v540
    %542 = vst [vmem:[#allocation2 + $0x3] sm:$0x1] 0.0
    %543 = vst [vmem:[#allocation2 + $0x4] sm:$0x1] %v186
    %v544 = vadd.f32 %v355, %v186
    %545 = vst [vmem:[#allocation2 + $0x4] sm:$0x2] %v544
    %v546 = vadd.f32 %v531, %v534
    %547 = vst [vmem:[#allocation2 + $0x5] sm:$0x2] %v546
    %548 = vst [vmem:[#allocation2 + $0x7] sm:$0x1] 0.0
    %v549 = vld [vmem:[#allocation2] sm:$0xff]
    %v550 = vlaneseq
    %v551 = vshrl.u32 %v550, 7
    %v552 = vlaneseq
    %v553 = vand.u32 %v552, 127
    %v554 = vshra.s32 %v551, 2
    %v555 = vshra.s32 %v553, 2
    %vm556 = vcmp.eq.s32.totalorder %v554, %v555
    %v557 = vand.u32 %v553, 3
    %vm558 = vcmp.lt.s32.totalorder %v557, 3
    %vm559 = vmand %vm556, %vm558
    %v560 = vsel %vm559, 0.0, -1e+30
    %v561 = vld [vmem:[#allocation18] sm:$0xff]
    %v562 = vld [vmem:[#allocation18 + $0x8] sm:$0xff]
    %v563 = vld [vmem:[#allocation18 + $0x10] sm:$0xff]
    %v564 = vld [vmem:[#allocation18 + $0x18] sm:$0xff]
    %v565 = vld [vmem:[#allocation18 + $0x20] sm:$0xff]
    %v566 = vld [vmem:[#allocation18 + $0x28] sm:$0xff]
    %v567 = vld [vmem:[#allocation18 + $0x30] sm:$0xff]
    %v568 = vld [vmem:[#allocation18 + $0x38] sm:$0xff]
    %v569 = vld [vmem:[#allocation18 + $0x40] sm:$0xff]
    %v570 = vld [vmem:[#allocation18 + $0x48] sm:$0xff]
    %v571 = vld [vmem:[#allocation18 + $0x50] sm:$0xff]
    %v572 = vld [vmem:[#allocation18 + $0x58] sm:$0xff]
    %v573 = vld [vmem:[#allocation18 + $0x60] sm:$0xff]
    %v574 = vld [vmem:[#allocation18 + $0x68] sm:$0xff]
    %v575 = vld [vmem:[#allocation18 + $0x70] sm:$0xff]
    %v576 = vld [vmem:[#allocation18 + $0x78] sm:$0xff]
    %v577 = vld [vmem:[#allocation20] sm:$0xf]
    %v578 = vld [vmem:[#allocation20 + $0x4] sm:$0xf]
    %v579 = vld [vmem:[#allocation20 + $0x8] sm:$0xf]
    %v580 = vld [vmem:[#allocation20 + $0xc] sm:$0xf]
    %v581 = vld [vmem:[#allocation20 + $0x10] sm:$0xf]
    %v582 = vld [vmem:[#allocation20 + $0x14] sm:$0xf]
    %v583 = vld [vmem:[#allocation20 + $0x18] sm:$0xf]
    %v584 = vld [vmem:[#allocation20 + $0x1c] sm:$0xf]
    %v585 = vld [vmem:[#allocation20 + $0x20] sm:$0xf]
    %v586 = vld [vmem:[#allocation20 + $0x24] sm:$0xf]
    %v587 = vld [vmem:[#allocation20 + $0x28] sm:$0xf]
    %v588 = vld [vmem:[#allocation20 + $0x2c] sm:$0xf]
    %v589 = vld [vmem:[#allocation20 + $0x30] sm:$0xf]
    %v590 = vld [vmem:[#allocation20 + $0x34] sm:$0xf]
    %v591 = vld [vmem:[#allocation20 + $0x38] sm:$0xf]
    %v592 = vld [vmem:[#allocation20 + $0x3c] sm:$0xf]
    %v593 = vld [vmem:[#allocation11] sm:$0xff]
    %v594 = vld [vmem:[#allocation11 + $0x8] sm:$0xff]
    %v595 = vld [vmem:[#allocation11 + $0x10] sm:$0xff]
    %v596 = vld [vmem:[#allocation11 + $0x18] sm:$0xff]
    %v597 = vld [vmem:[#allocation11 + $0x20] sm:$0xff]
    %v598 = vld [vmem:[#allocation11 + $0x28] sm:$0xff]
    %v599 = vld [vmem:[#allocation11 + $0x30] sm:$0xff]
    %v600 = vld [vmem:[#allocation11 + $0x38] sm:$0xff]
    %v601 = vld [vmem:[#allocation11 + $0x40] sm:$0xff]
    %v602 = vld [vmem:[#allocation11 + $0x48] sm:$0xff]
    %v603 = vld [vmem:[#allocation11 + $0x50] sm:$0xff]
    %v604 = vld [vmem:[#allocation11 + $0x58] sm:$0xff]
    %v605 = vld [vmem:[#allocation11 + $0x60] sm:$0xff]
    %v606 = vld [vmem:[#allocation11 + $0x68] sm:$0xff]
    %v607 = vld [vmem:[#allocation11 + $0x70] sm:$0xff]
    %v608 = vld [vmem:[#allocation11 + $0x78] sm:$0xff]
    %v609 = vld [vmem:[#allocation11 + $0x80] sm:$0xff]
    %v610 = vld [vmem:[#allocation11 + $0x88] sm:$0xff]
    %v611 = vld [vmem:[#allocation11 + $0x90] sm:$0xff]
    %v612 = vld [vmem:[#allocation11 + $0x98] sm:$0xff]
    %v613 = vld [vmem:[#allocation11 + $0xa0] sm:$0xff]
    %v614 = vld [vmem:[#allocation11 + $0xa8] sm:$0xff]
    %v615 = vld [vmem:[#allocation11 + $0xb0] sm:$0xff]
    %v616 = vld [vmem:[#allocation11 + $0xb8] sm:$0xff]
    %v617 = vld [vmem:[#allocation11 + $0xc0] sm:$0xff]
    %v618 = vld [vmem:[#allocation11 + $0xc8] sm:$0xff]
    %v619 = vld [vmem:[#allocation11 + $0xd0] sm:$0xff]
    %v620 = vld [vmem:[#allocation11 + $0xd8] sm:$0xff]
    %v621 = vld [vmem:[#allocation11 + $0xe0] sm:$0xff]
    %v622 = vld [vmem:[#allocation11 + $0xe8] sm:$0xff]
    %v623 = vld [vmem:[#allocation11 + $0xf0] sm:$0xff]
    %v624 = vld [vmem:[#allocation11 + $0xf8] sm:$0xff]
    %v625 = vld [vmem:[#allocation11 + $0x100] sm:$0xff]
    %v626 = vld [vmem:[#allocation11 + $0x108] sm:$0xff]
    %v627 = vld [vmem:[#allocation11 + $0x110] sm:$0xff]
    %v628 = vld [vmem:[#allocation11 + $0x118] sm:$0xff]
    %v629 = vld [vmem:[#allocation11 + $0x120] sm:$0xff]
    %v630 = vld [vmem:[#allocation11 + $0x128] sm:$0xff]
    %v631 = vld [vmem:[#allocation11 + $0x130] sm:$0xff]
    %v632 = vld [vmem:[#allocation11 + $0x138] sm:$0xff]
    %v633 = vld [vmem:[#allocation11 + $0x140] sm:$0xff]
    %v634 = vld [vmem:[#allocation11 + $0x148] sm:$0xff]
    %v635 = vld [vmem:[#allocation11 + $0x150] sm:$0xff]
    %v636 = vld [vmem:[#allocation11 + $0x158] sm:$0xff]
    %v637 = vld [vmem:[#allocation11 + $0x160] sm:$0xff]
    %v638 = vld [vmem:[#allocation11 + $0x168] sm:$0xff]
    %v639 = vld [vmem:[#allocation11 + $0x170] sm:$0xff]
    %v640 = vld [vmem:[#allocation11 + $0x178] sm:$0xff]
    %v641 = vld [vmem:[#allocation12] sm:$0xf]
    %v642 = vld [vmem:[#allocation12 + $0x4] sm:$0xf]
    %v643 = vld [vmem:[#allocation12 + $0x8] sm:$0xf]
    %v644 = vld [vmem:[#allocation12 + $0xc] sm:$0xf]
    %v645 = vld [vmem:[#allocation12 + $0x10] sm:$0xf]
    %v646 = vld [vmem:[#allocation12 + $0x14] sm:$0xf]
    %v647 = vld [vmem:[#allocation12 + $0x18] sm:$0xf]
    %v648 = vld [vmem:[#allocation12 + $0x1c] sm:$0xf]
    %v649 = vld [vmem:[#allocation12 + $0x20] sm:$0xf]
    %v650 = vld [vmem:[#allocation12 + $0x24] sm:$0xf]
    %v651 = vld [vmem:[#allocation12 + $0x28] sm:$0xf]
    %v652 = vld [vmem:[#allocation12 + $0x2c] sm:$0xf]
    %v653 = vld [vmem:[#allocation12 + $0x30] sm:$0xf]
    %v654 = vld [vmem:[#allocation12 + $0x34] sm:$0xf]
    %v655 = vld [vmem:[#allocation12 + $0x38] sm:$0xf]
    %v656 = vld [vmem:[#allocation12 + $0x3c] sm:$0xf]
    %v657 = vld [vmem:[#allocation14] sm:$0xff]
    %v658 = vld [vmem:[#allocation14 + $0x8] sm:$0xff]
    %v659 = vld [vmem:[#allocation14 + $0x10] sm:$0xff]
    %v660 = vld [vmem:[#allocation14 + $0x18] sm:$0xff]
    %v661 = vld [vmem:[#allocation14 + $0x20] sm:$0xff]
    %v662 = vld [vmem:[#allocation14 + $0x28] sm:$0xff]
    %v663 = vld [vmem:[#allocation14 + $0x30] sm:$0xff]
    %v664 = vld [vmem:[#allocation14 + $0x38] sm:$0xff]
    %v665 = vld [vmem:[#allocation14 + $0x40] sm:$0xff]
    %v666 = vld [vmem:[#allocation14 + $0x48] sm:$0xff]
    %v667 = vld [vmem:[#allocation14 + $0x50] sm:$0xff]
    %v668 = vld [vmem:[#allocation14 + $0x58] sm:$0xff]
    %v669 = vld [vmem:[#allocation14 + $0x60] sm:$0xff]
    %v670 = vld [vmem:[#allocation14 + $0x68] sm:$0xff]
    %v671 = vld [vmem:[#allocation14 + $0x70] sm:$0xff]
    %v672 = vld [vmem:[#allocation14 + $0x78] sm:$0xff]
    %v673 = vld [vmem:[#allocation14 + $0x80] sm:$0xff]
    %v674 = vld [vmem:[#allocation14 + $0x88] sm:$0xff]
    %v675 = vld [vmem:[#allocation14 + $0x90] sm:$0xff]
    %v676 = vld [vmem:[#allocation14 + $0x98] sm:$0xff]
    %v677 = vld [vmem:[#allocation14 + $0xa0] sm:$0xff]
    %v678 = vld [vmem:[#allocation14 + $0xa8] sm:$0xff]
    %v679 = vld [vmem:[#allocation14 + $0xb0] sm:$0xff]
    %v680 = vld [vmem:[#allocation14 + $0xb8] sm:$0xff]
    %v681 = vld [vmem:[#allocation14 + $0xc0] sm:$0xff]
    %v682 = vld [vmem:[#allocation14 + $0xc8] sm:$0xff]
    %v683 = vld [vmem:[#allocation14 + $0xd0] sm:$0xff]
    %v684 = vld [vmem:[#allocation14 + $0xd8] sm:$0xff]
    %v685 = vld [vmem:[#allocation14 + $0xe0] sm:$0xff]
    %v686 = vld [vmem:[#allocation14 + $0xe8] sm:$0xff]
    %v687 = vld [vmem:[#allocation14 + $0xf0] sm:$0xff]
    %v688 = vld [vmem:[#allocation14 + $0xf8] sm:$0xff]
    %v689 = vld [vmem:[#allocation15] sm:$0xf]
    %v690 = vld [vmem:[#allocation15 + $0x4] sm:$0xf]
    %v691 = vld [vmem:[#allocation15 + $0x8] sm:$0xf]
    %v692 = vld [vmem:[#allocation15 + $0xc] sm:$0xf]
    %v693 = vld [vmem:[#allocation15 + $0x10] sm:$0xf]
    %v694 = vld [vmem:[#allocation15 + $0x14] sm:$0xf]
    %v695 = vld [vmem:[#allocation15 + $0x18] sm:$0xf]
    %v696 = vld [vmem:[#allocation15 + $0x1c] sm:$0xf]
    %v697 = vld [vmem:[#allocation15 + $0x20] sm:$0xf]
    %v698 = vld [vmem:[#allocation15 + $0x24] sm:$0xf]
    %v699 = vld [vmem:[#allocation15 + $0x28] sm:$0xf]
    %v700 = vld [vmem:[#allocation15 + $0x2c] sm:$0xf]
    %v701 = vld [vmem:[#allocation15 + $0x30] sm:$0xf]
    %v702 = vld [vmem:[#allocation15 + $0x34] sm:$0xf]
    %v703 = vld [vmem:[#allocation15 + $0x38] sm:$0xf]
    %v704 = vld [vmem:[#allocation15 + $0x3c] sm:$0xf]
    %v705 = vld [vmem:[#allocation15 + $0x40] sm:$0xf]
    %v706 = vld [vmem:[#allocation15 + $0x44] sm:$0xf]
    %v707 = vld [vmem:[#allocation15 + $0x48] sm:$0xf]
    %v708 = vld [vmem:[#allocation15 + $0x4c] sm:$0xf]
    %v709 = vld [vmem:[#allocation15 + $0x50] sm:$0xf]
    %v710 = vld [vmem:[#allocation15 + $0x54] sm:$0xf]
    %v711 = vld [vmem:[#allocation15 + $0x58] sm:$0xf]
    %v712 = vld [vmem:[#allocation15 + $0x5c] sm:$0xf]
    %v713 = vld [vmem:[#allocation15 + $0x60] sm:$0xf]
    %v714 = vld [vmem:[#allocation15 + $0x64] sm:$0xf]
    %v715 = vld [vmem:[#allocation15 + $0x68] sm:$0xf]
    %v716 = vld [vmem:[#allocation15 + $0x6c] sm:$0xf]
    %v717 = vld [vmem:[#allocation15 + $0x70] sm:$0xf]
    %v718 = vld [vmem:[#allocation15 + $0x74] sm:$0xf]
    %v719 = vld [vmem:[#allocation15 + $0x78] sm:$0xf]
    %v720 = vld [vmem:[#allocation15 + $0x7c] sm:$0xf]
    %v721 = vld [vmem:[#allocation15 + $0x80] sm:$0xf]
    %v722 = vld [vmem:[#allocation15 + $0x84] sm:$0xf]
    %v723 = vld [vmem:[#allocation15 + $0x88] sm:$0xf]
    %v724 = vld [vmem:[#allocation15 + $0x8c] sm:$0xf]
    %v725 = vld [vmem:[#allocation15 + $0x90] sm:$0xf]
    %v726 = vld [vmem:[#allocation15 + $0x94] sm:$0xf]
    %v727 = vld [vmem:[#allocation15 + $0x98] sm:$0xf]
    %v728 = vld [vmem:[#allocation15 + $0x9c] sm:$0xf]
    %v729 = vld [vmem:[#allocation15 + $0xa0] sm:$0xf]
    %v730 = vld [vmem:[#allocation15 + $0xa4] sm:$0xf]
    %v731 = vld [vmem:[#allocation15 + $0xa8] sm:$0xf]
    %v732 = vld [vmem:[#allocation15 + $0xac] sm:$0xf]
    %v733 = vld [vmem:[#allocation15 + $0xb0] sm:$0xf]
    %v734 = vld [vmem:[#allocation15 + $0xb4] sm:$0xf]
    %v735 = vld [vmem:[#allocation15 + $0xb8] sm:$0xf]
    %v736 = vld [vmem:[#allocation15 + $0xbc] sm:$0xf]
    %v737 = vld [vmem:[#allocation15 + $0xc0] sm:$0xf]
    %v738 = vld [vmem:[#allocation15 + $0xc4] sm:$0xf]
    %v739 = vld [vmem:[#allocation15 + $0xc8] sm:$0xf]
    %v740 = vld [vmem:[#allocation15 + $0xcc] sm:$0xf]
    %v741 = vld [vmem:[#allocation15 + $0xd0] sm:$0xf]
    %v742 = vld [vmem:[#allocation15 + $0xd4] sm:$0xf]
    %v743 = vld [vmem:[#allocation15 + $0xd8] sm:$0xf]
    %v744 = vld [vmem:[#allocation15 + $0xdc] sm:$0xf]
    %v745 = vld [vmem:[#allocation15 + $0xe0] sm:$0xf]
    %v746 = vld [vmem:[#allocation15 + $0xe4] sm:$0xf]
    %v747 = vld [vmem:[#allocation15 + $0xe8] sm:$0xf]
    %v748 = vld [vmem:[#allocation15 + $0xec] sm:$0xf]
    %v749 = vld [vmem:[#allocation15 + $0xf0] sm:$0xf]
    %v750 = vld [vmem:[#allocation15 + $0xf4] sm:$0xf]
    %v751 = vld [vmem:[#allocation15 + $0xf8] sm:$0xf]
    %v752 = vld [vmem:[#allocation15 + $0xfc] sm:$0xf]
    %v753 = vld [vmem:[#allocation17] sm:$0xff]
    %v754 = vld [vmem:[#allocation17 + $0x8] sm:$0xff]
    %v755 = vld [vmem:[#allocation17 + $0x10] sm:$0xff]
    %v756 = vld [vmem:[#allocation17 + $0x18] sm:$0xff]
    %v757 = vld [vmem:[#allocation17 + $0x20] sm:$0xff]
    %v758 = vld [vmem:[#allocation17 + $0x28] sm:$0xff]
    %759 = vadd.xlane.f32.xlu0 %v549
    %v760 = vpop.xlane.xlu0 %759
    %v761 = vmul.f32 %v760, %v335
    %v762 = vsub.f32 %v549, %v761
    %v763 = vmul.f32 %v762, %v762
    %764 = vadd.xlane.f32.xlu0 %v763
    %v765 = vpop.xlane.xlu0 %764
    %v766 = vmul.f32 %v765, %v335
    %v767 = vadd.f32 %v766, 1e-06
    %v768 = vrsqrt.pop %v767
    %v769 = vmul.f32 %v762, %v768
    %v770 = vlaneseq
    %v771 = vshrl.u32 %v770, 7
    %v772 = vsub.s32 0, %v771
    %v773 = vrot.slane %v753, %v772
    %v774 = vmul.f32 %v769, %v773
    %v775 = vlaneseq
    %v776 = vshrl.u32 %v775, 7
    %v777 = vsub.s32 1, %v776
    %v778 = vrot.slane %v753, %v777
    %v779 = vadd.f32 %v774, %v778
    %v780 = vpack.c.bf16 %v779, %v779
    %v781 = vlaneseq
    %v782 = vshrl.u32 %v781, 7
    %v783 = vsub.s32 2, %v782
    %v784 = vrot.slane %v753, %v783
    %v785 = vlaneseq
    %v786 = vshrl.u32 %v785, 7
    %v787 = vsub.s32 2, %v786
    %v788 = vrot.slane %v754, %v787
    %v789 = vlaneseq
    %v790 = vshrl.u32 %v789, 7
    %v791 = vsub.s32 2, %v790
    %v792 = vrot.slane %v755, %v791
    %v793 = vlaneseq
    %v794 = vshrl.u32 %v793, 7
    %v795 = vsub.s32 2, %v794
    %v796 = vrot.slane %v756, %v795
    %v797 = vlaneseq
    %v798 = vshrl.u32 %v797, 7
    %v799 = vsub.s32 2, %v798
    %v800 = vrot.slane %v757, %v799
    %v801 = vlaneseq
    %v802 = vshrl.u32 %v801, 7
    %v803 = vsub.s32 2, %v802
    %v804 = vrot.slane %v758, %v803
    %v853 = vunpack.c.l.b16 %v593
    %v854 = vunpack.c.h.b16 %v593
    %v855 = vunpack.c.l.b16 %v594
    %v856 = vunpack.c.h.b16 %v594
    %v857 = vunpack.c.l.b16 %v595
    %v858 = vunpack.c.h.b16 %v595
    %v859 = vunpack.c.l.b16 %v596
    %v860 = vunpack.c.h.b16 %v596
    %v861 = vunpack.c.l.b16 %v597
    %v862 = vunpack.c.h.b16 %v597
    %v863 = vunpack.c.l.b16 %v598
    %v864 = vunpack.c.h.b16 %v598
    %v865 = vunpack.c.l.b16 %v599
    %v866 = vunpack.c.h.b16 %v599
    %v867 = vunpack.c.l.b16 %v600
    %v868 = vunpack.c.h.b16 %v600
    %v869 = vunpack.c.l.b16 %v601
    %v870 = vunpack.c.h.b16 %v601
    %v871 = vunpack.c.l.b16 %v602
    %v872 = vunpack.c.h.b16 %v602
    %v873 = vunpack.c.l.b16 %v603
    %v874 = vunpack.c.h.b16 %v603
    %v875 = vunpack.c.l.b16 %v604
    %v876 = vunpack.c.h.b16 %v604
    %v877 = vunpack.c.l.b16 %v605
    %v878 = vunpack.c.h.b16 %v605
    %v879 = vunpack.c.l.b16 %v606
    %v880 = vunpack.c.h.b16 %v606
    %v881 = vunpack.c.l.b16 %v607
    %v882 = vunpack.c.h.b16 %v607
    %v883 = vunpack.c.l.b16 %v608
    %v884 = vunpack.c.h.b16 %v608
    %v885 = vunpack.c.l.b16 %v609
    %v886 = vunpack.c.h.b16 %v609
    %v887 = vunpack.c.l.b16 %v610
    %v888 = vunpack.c.h.b16 %v610
    %v889 = vunpack.c.l.b16 %v611
    %v890 = vunpack.c.h.b16 %v611
    %v891 = vunpack.c.l.b16 %v612
    %v892 = vunpack.c.h.b16 %v612
    %v893 = vunpack.c.l.b16 %v613
    %v894 = vunpack.c.h.b16 %v613
    %v895 = vunpack.c.l.b16 %v614
    %v896 = vunpack.c.h.b16 %v614
    %v897 = vunpack.c.l.b16 %v615
    %v898 = vunpack.c.h.b16 %v615
    %v899 = vunpack.c.l.b16 %v616
    %v900 = vunpack.c.h.b16 %v616
    %v901 = vunpack.c.l.b16 %v617
    %v902 = vunpack.c.h.b16 %v617
    %v903 = vunpack.c.l.b16 %v618
    %v904 = vunpack.c.h.b16 %v618
    %v905 = vunpack.c.l.b16 %v619
    %v906 = vunpack.c.h.b16 %v619
    %v907 = vunpack.c.l.b16 %v620
    %v908 = vunpack.c.h.b16 %v620
    %v909 = vunpack.c.l.b16 %v621
    %v910 = vunpack.c.h.b16 %v621
    %v911 = vunpack.c.l.b16 %v622
    %v912 = vunpack.c.h.b16 %v622
    %v913 = vunpack.c.l.b16 %v623
    %v914 = vunpack.c.h.b16 %v623
    %v915 = vunpack.c.l.b16 %v624
    %v916 = vunpack.c.h.b16 %v624
    %v917 = vunpack.c.l.b16 %v625
    %v918 = vunpack.c.h.b16 %v625
    %v919 = vunpack.c.l.b16 %v626
    %v920 = vunpack.c.h.b16 %v626
    %v921 = vunpack.c.l.b16 %v627
    %v922 = vunpack.c.h.b16 %v627
    %v923 = vunpack.c.l.b16 %v628
    %v924 = vunpack.c.h.b16 %v628
    %v925 = vunpack.c.l.b16 %v629
    %v926 = vunpack.c.h.b16 %v629
    %v927 = vunpack.c.l.b16 %v630
    %v928 = vunpack.c.h.b16 %v630
    %v929 = vunpack.c.l.b16 %v631
    %v930 = vunpack.c.h.b16 %v631
    %v931 = vunpack.c.l.b16 %v632
    %v932 = vunpack.c.h.b16 %v632
    %v933 = vunpack.c.l.b16 %v633
    %v934 = vunpack.c.h.b16 %v633
    %v935 = vunpack.c.l.b16 %v634
    %v936 = vunpack.c.h.b16 %v634
    %v937 = vunpack.c.l.b16 %v635
    %v938 = vunpack.c.h.b16 %v635
    %v939 = vunpack.c.l.b16 %v636
    %v940 = vunpack.c.h.b16 %v636
    %v941 = vunpack.c.l.b16 %v637
    %v942 = vunpack.c.h.b16 %v637
    %v943 = vunpack.c.l.b16 %v638
    %v944 = vunpack.c.h.b16 %v638
    %v945 = vunpack.c.l.b16 %v639
    %v946 = vunpack.c.h.b16 %v639
    %v947 = vunpack.c.l.b16 %v640
    %v948 = vunpack.c.h.b16 %v640
    %v949 = vpack.c.b16 %v859, %v853
    %v950 = vpack.c.b16 %v860, %v854
    %v951 = vpack.c.b16 %v861, %v855
    %v952 = vpack.c.b16 %v862, %v856
    %v953 = vpack.c.b16 %v863, %v857
    %v954 = vpack.c.b16 %v864, %v858
    %v955 = vpack.c.b16 %v871, %v865
    %v956 = vpack.c.b16 %v872, %v866
    %v957 = vpack.c.b16 %v873, %v867
    %v958 = vpack.c.b16 %v874, %v868
    %v959 = vpack.c.b16 %v875, %v869
    %v960 = vpack.c.b16 %v876, %v870
    %v961 = vpack.c.b16 %v883, %v877
    %v962 = vpack.c.b16 %v884, %v878
    %v963 = vpack.c.b16 %v885, %v879
    %v964 = vpack.c.b16 %v886, %v880
    %v965 = vpack.c.b16 %v887, %v881
    %v966 = vpack.c.b16 %v888, %v882
    %v967 = vpack.c.b16 %v895, %v889
    %v968 = vpack.c.b16 %v896, %v890
    %v969 = vpack.c.b16 %v897, %v891
    %v970 = vpack.c.b16 %v898, %v892
    %v971 = vpack.c.b16 %v899, %v893
    %v972 = vpack.c.b16 %v900, %v894
    %v973 = vpack.c.b16 %v907, %v901
    %v974 = vpack.c.b16 %v908, %v902
    %v975 = vpack.c.b16 %v909, %v903
    %v976 = vpack.c.b16 %v910, %v904
    %v977 = vpack.c.b16 %v911, %v905
    %v978 = vpack.c.b16 %v912, %v906
    %v979 = vpack.c.b16 %v919, %v913
    %v980 = vpack.c.b16 %v920, %v914
    %v981 = vpack.c.b16 %v921, %v915
    %v982 = vpack.c.b16 %v922, %v916
    %v983 = vpack.c.b16 %v923, %v917
    %v984 = vpack.c.b16 %v924, %v918
    %v985 = vpack.c.b16 %v931, %v925
    %v986 = vpack.c.b16 %v932, %v926
    %v987 = vpack.c.b16 %v933, %v927
    %v988 = vpack.c.b16 %v934, %v928
    %v989 = vpack.c.b16 %v935, %v929
    %v990 = vpack.c.b16 %v936, %v930
    %v991 = vpack.c.b16 %v943, %v937
    %v992 = vpack.c.b16 %v944, %v938
    %v993 = vpack.c.b16 %v945, %v939
    %v994 = vpack.c.b16 %v946, %v940
    %v995 = vpack.c.b16 %v947, %v941
    %v996 = vpack.c.b16 %v948, %v942
    %1045 = vmatprep.subr.bf16.mxu0 %v950
    %1046 = vmatpush1.bf16.msra.mxu0 %v949
    %1047 = vmatprep.subr.bf16.mxu0 %v956
    %1048 = vmatpush1.bf16.msra.mxu0 %v955
    %1049 = vmatprep.subr.bf16.mxu0 %v962
    %1050 = vmatpush1.bf16.msra.mxu0 %v961
    %1051 = vmatprep.subr.bf16.mxu0 %v968
    %1052 = vmatpush1.bf16.msra.mxu0 %v967
    %1053 = vmatprep.subr.bf16.mxu0 %v974
    %1054 = vmatpush1.bf16.msra.mxu0 %v973
    %1055 = vmatprep.subr.bf16.mxu0 %v980
    %1056 = vmatpush1.bf16.msra.mxu0 %v979
    %1057 = vmatprep.subr.bf16.mxu0 %v986
    %1058 = vmatpush1.bf16.msra.mxu0 %v985
    %1059 = vmatprep.subr.bf16.mxu0 %v992
    %1060 = vmatpush1.bf16.msra.mxu0 %v991
    %1061 = vmatprep.subr.bf16.mxu0 0
    %1062 = vmatpush1.bf16.msra.mxu0 0
    %1063 = vmatprep.subr.bf16.mxu0 0
    %1064 = vmatpush1.bf16.msra.mxu0 0
    %1065 = vmatprep.subr.bf16.mxu0 0
    %1066 = vmatpush1.bf16.msra.mxu0 0
    %1067 = vmatprep.subr.bf16.mxu0 0
    %1068 = vmatpush1.bf16.msra.mxu0 0
    %1069 = vmatprep.subr.bf16.mxu0 0
    %1070 = vmatpush1.bf16.msra.mxu0 0
    %1071 = vmatprep.subr.bf16.mxu0 0
    %1072 = vmatpush1.bf16.msra.mxu0 0
    %1073 = vmatprep.subr.bf16.mxu0 0
    %1074 = vmatpush1.bf16.msra.mxu0 0
    %1075 = vmatprep.subr.bf16.mxu0 0
    %1076 = vmatpush1.bf16.msra.mxu0 0
    %1077 = vmatprep.mubr.bf16.mxu0 0
    %1078 = vmatmul.mubr.bf16.gmra.mrb[0].mxu0 %v780
    %v1079 = vpop.f32.mrb[0].mxu0
    %v1080 = vadd.f32 %v784, %v1079
    %v1081 = vpop.f32.mrb[0].mxu0
    %v1082 = vadd.f32 %v788, %v1081
    %v1083 = vpop.f32.mrb[0].mxu0
    %v1084 = vpop.f32.mrb[0].mxu0
    %1085 = vdwg.mxu0
    %1086 = vmatprep.subr.bf16.mxu0 %v952
    %1087 = vmatpush1.bf16.msra.mxu0 %v951
    %1088 = vmatprep.subr.bf16.mxu0 %v958
    %1089 = vmatpush1.bf16.msra.mxu0 %v957
    %1090 = vmatprep.subr.bf16.mxu0 %v964
    %1091 = vmatpush1.bf16.msra.mxu0 %v963
    %1092 = vmatprep.subr.bf16.mxu0 %v970
    %1093 = vmatpush1.bf16.msra.mxu0 %v969
    %1094 = vmatprep.subr.bf16.mxu0 %v976
    %1095 = vmatpush1.bf16.msra.mxu0 %v975
    %1096 = vmatprep.subr.bf16.mxu0 %v982
    %1097 = vmatpush1.bf16.msra.mxu0 %v981
    %1098 = vmatprep.subr.bf16.mxu0 %v988
    %1099 = vmatpush1.bf16.msra.mxu0 %v987
    %1100 = vmatprep.subr.bf16.mxu0 %v994
    %1101 = vmatpush1.bf16.msra.mxu0 %v993
    %1102 = vmatprep.subr.bf16.mxu0 0
    %1103 = vmatpush1.bf16.msra.mxu0 0
    %1104 = vmatprep.subr.bf16.mxu0 0
    %1105 = vmatpush1.bf16.msra.mxu0 0
    %1106 = vmatprep.subr.bf16.mxu0 0
    %1107 = vmatpush1.bf16.msra.mxu0 0
    %1108 = vmatprep.subr.bf16.mxu0 0
    %1109 = vmatpush1.bf16.msra.mxu0 0
    %1110 = vmatprep.subr.bf16.mxu0 0
    %1111 = vmatpush1.bf16.msra.mxu0 0
    %1112 = vmatprep.subr.bf16.mxu0 0
    %1113 = vmatpush1.bf16.msra.mxu0 0
    %1114 = vmatprep.subr.bf16.mxu0 0
    %1115 = vmatpush1.bf16.msra.mxu0 0
    %1116 = vmatprep.subr.bf16.mxu0 0
    %1117 = vmatpush1.bf16.msra.mxu0 0
    %1118 = vmatprep.mubr.bf16.mxu0 0
    %1119 = vmatmul.mubr.bf16.gmra.mrb[0].mxu0 %v780
    %v1120 = vpop.f32.mrb[0].mxu0
    %v1121 = vadd.f32 %v792, %v1120
    %v1122 = vpop.f32.mrb[0].mxu0
    %v1123 = vadd.f32 %v796, %v1122
    %v1124 = vpop.f32.mrb[0].mxu0
    %v1125 = vpop.f32.mrb[0].mxu0
    %1126 = vdwg.mxu0
    %1127 = vmatprep.subr.bf16.mxu0 %v954
    %1128 = vmatpush1.bf16.msra.mxu0 %v953
    %1129 = vmatprep.subr.bf16.mxu0 %v960
    %1130 = vmatpush1.bf16.msra.mxu0 %v959
    %1131 = vmatprep.subr.bf16.mxu0 %v966
    %1132 = vmatpush1.bf16.msra.mxu0 %v965
    %1133 = vmatprep.subr.bf16.mxu0 %v972
    %1134 = vmatpush1.bf16.msra.mxu0 %v971
    %1135 = vmatprep.subr.bf16.mxu0 %v978
    %1136 = vmatpush1.bf16.msra.mxu0 %v977
    %1137 = vmatprep.subr.bf16.mxu0 %v984
    %1138 = vmatpush1.bf16.msra.mxu0 %v983
    %1139 = vmatprep.subr.bf16.mxu0 %v990
    %1140 = vmatpush1.bf16.msra.mxu0 %v989
    %1141 = vmatprep.subr.bf16.mxu0 %v996
    %1142 = vmatpush1.bf16.msra.mxu0 %v995
    %1143 = vmatprep.subr.bf16.mxu0 0
    %1144 = vmatpush1.bf16.msra.mxu0 0
    %1145 = vmatprep.subr.bf16.mxu0 0
    %1146 = vmatpush1.bf16.msra.mxu0 0
    %1147 = vmatprep.subr.bf16.mxu0 0
    %1148 = vmatpush1.bf16.msra.mxu0 0
    %1149 = vmatprep.subr.bf16.mxu0 0
    %1150 = vmatpush1.bf16.msra.mxu0 0
    %1151 = vmatprep.subr.bf16.mxu0 0
    %1152 = vmatpush1.bf16.msra.mxu0 0
    %1153 = vmatprep.subr.bf16.mxu0 0
    %1154 = vmatpush1.bf16.msra.mxu0 0
    %1155 = vmatprep.subr.bf16.mxu0 0
    %1156 = vmatpush1.bf16.msra.mxu0 0
    %1157 = vmatprep.subr.bf16.mxu0 0
    %1158 = vmatpush1.bf16.msra.mxu0 0
    %1159 = vmatprep.mubr.bf16.mxu0 0
    %1160 = vmatmul.mubr.bf16.gmra.mrb[0].mxu0 %v780
    %v1161 = vpop.f32.mrb[0].mxu0
    %v1162 = vadd.f32 %v800, %v1161
    %v1163 = vpop.f32.mrb[0].mxu0
    %v1164 = vadd.f32 %v804, %v1163
    %v1165 = vpop.f32.mrb[0].mxu0
    %v1166 = vpop.f32.mrb[0].mxu0
    %1167 = vdwg.mxu0
    %v1168 = vpack.c.bf16 %v1080, %v1080
    %v1169 = vpack.c.bf16 %v1082, %v1082
    %1170 = vmatprep.subr.bf16.mxu0 0
    %1171 = vmatpush1.bf16.xpose.msra.mxu0 %v1169
    %1172 = vmatprep.subr.bf16.mxu0 0
    %1173 = vmatpush1.bf16.xpose.msra.mxu0 0
    %1174 = vmatprep.subr.bf16.mxu0 0
    %1175 = vmatpush1.bf16.xpose.msra.mxu0 0
    %1176 = vmatprep.subr.bf16.mxu0 0
    %1177 = vmatpush1.bf16.xpose.msra.mxu0 0
    %1178 = vmatprep.subr.bf16.mxu0 0
    %1179 = vmatpush1.bf16.xpose.msra.mxu0 0
    %1180 = vmatprep.subr.bf16.mxu0 0
    %1181 = vmatpush1.bf16.xpose.msra.mxu0 0
    %1182 = vmatprep.subr.bf16.mxu0 0
    %1183 = vmatpush1.bf16.xpose.msra.mxu0 0
    %1184 = vmatprep.subr.bf16.mxu0 0
    %1185 = vmatpush1.bf16.xpose.msra.mxu0 0
    %1186 = vmatprep.subr.bf16.mxu0 0
    %1187 = vmatpush1.bf16.xpose.msra.mxu0 0
    %1188 = vmatprep.subr.bf16.mxu0 0
    %1189 = vmatpush1.bf16.xpose.msra.mxu0 0
    %1190 = vmatprep.subr.bf16.mxu0 0
    %1191 = vmatpush1.bf16.xpose.msra.mxu0 0
    %1192 = vmatprep.subr.bf16.mxu0 0
    %1193 = vmatpush1.bf16.xpose.msra.mxu0 0
    %1194 = vmatprep.subr.bf16.mxu0 0
    %1195 = vmatpush1.bf16.xpose.msra.mxu0 0
    %1196 = vmatprep.subr.bf16.mxu0 0
    %1197 = vmatpush1.bf16.xpose.msra.mxu0 0
    %1198 = vmatprep.subr.bf16.mxu0 0
    %1199 = vmatpush1.bf16.xpose.msra.mxu0 0
    %1200 = vmatprep.subr.bf16.mxu0 0
    %1201 = vmatpush1.bf16.xpose.msra.mxu0 0
    %1202 = vmatprep.mubr.bf16.mxu0 0
    %1203 = vmatmul.mubr.bf16.gmra.mrb[0].mxu0 %v1168
    %v1204 = vpop.f32.mrb[0].mxu0
    %v1205 = vadd.f32 %v560, %v1204
    %v1206 = vpop.f32.mrb[0].mxu0
    %v1207 = vpop.f32.mrb[0].mxu0
    %v1208 = vpop.f32.mrb[0].mxu0
    %1209 = vdwg.mxu0
    %vm1210 = vcmask 64512
    %v1211 = vsel %vm1210, %v1205, -inf
    %1212 = vmax.xlane.f32.xlu0 %v1211
    %v1213 = vpop.xlane.xlu0 %1212
    %v1214 = vsub.f32 %v1205, %v1213
    %v1215 = vmul.f32 %v1214, 1.442695
    %v1216 = vpow.pop %v1215
    %v1217 = vsel %vm1210, %v1216, 0.0
    %1218 = vadd.xlane.f32.xlu0 %v1217
    %v1219 = vpop.xlane.xlu0 %1218
    %v1220 = vrcp.pop %v1219
    %v1221 = vmul.f32 %v1216, %v1220
    %v1222 = vpack.c.bf16 %v1221, %v1221
    %v1223 = vpack.c.bf16 %v1121, %v1121
    %v1224 = vpack.c.bf16 %v1123, %v1123
    %v1225 = vpack.c.bf16 %v1162, %v1162
    %1226 = vmatprep.subr.bf16.mxu0 0
    %1227 = vmatpush1.bf16.xpose.msra.mxu0 %v1225
    %1228 = vmatprep.subr.bf16.mxu0 0
    %1229 = vmatpush1.bf16.xpose.msra.mxu0 0
    %1230 = vmatprep.subr.bf16.mxu0 0
    %1231 = vmatpush1.bf16.xpose.msra.mxu0 0
    %1232 = vmatprep.subr.bf16.mxu0 0
    %1233 = vmatpush1.bf16.xpose.msra.mxu0 0
    %1234 = vmatprep.subr.bf16.mxu0 0
    %1235 = vmatpush1.bf16.xpose.msra.mxu0 0
    %1236 = vmatprep.subr.bf16.mxu0 0
    %1237 = vmatpush1.bf16.xpose.msra.mxu0 0
    %1238 = vmatprep.subr.bf16.mxu0 0
    %1239 = vmatpush1.bf16.xpose.msra.mxu0 0
    %1240 = vmatprep.subr.bf16.mxu0 0
    %1241 = vmatpush1.bf16.xpose.msra.mxu0 0
    %1242 = vmatprep.subr.bf16.mxu0 0
    %1243 = vmatpush1.bf16.xpose.msra.mxu0 0
    %1244 = vmatprep.subr.bf16.mxu0 0
    %1245 = vmatpush1.bf16.xpose.msra.mxu0 0
    %1246 = vmatprep.subr.bf16.mxu0 0
    %1247 = vmatpush1.bf16.xpose.msra.mxu0 0
    %1248 = vmatprep.subr.bf16.mxu0 0
    %1249 = vmatpush1.bf16.xpose.msra.mxu0 0
    %1250 = vmatprep.subr.bf16.mxu0 0
    %1251 = vmatpush1.bf16.xpose.msra.mxu0 0
    %1252 = vmatprep.subr.bf16.mxu0 0
    %1253 = vmatpush1.bf16.xpose.msra.mxu0 0
    %1254 = vmatprep.subr.bf16.mxu0 0
    %1255 = vmatpush1.bf16.xpose.msra.mxu0 0
    %1256 = vmatprep.subr.bf16.mxu0 0
    %1257 = vmatpush1.bf16.xpose.msra.mxu0 0
    %1258 = vmatprep.mubr.bf16.mxu0 0
    %1259 = vmatmul.mubr.bf16.gmra.mrb[0].mxu0 %v1224
    %v1260 = vpop.f32.mrb[0].mxu0
    %v1261 = vadd.f32 %v560, %v1260
    %v1262 = vpop.f32.mrb[0].mxu0
    %v1263 = vpop.f32.mrb[0].mxu0
    %v1264 = vpop.f32.mrb[0].mxu0
    %1265 = vdwg.mxu0
    %v1266 = vsel %vm1210, %v1261, -inf
    %1267 = vmax.xlane.f32.xlu0 %v1266
    %v1268 = vpop.xlane.xlu0 %1267
    %v1269 = vsub.f32 %v1261, %v1268
    %v1270 = vmul.f32 %v1269, 1.442695
    %v1271 = vpow.pop %v1270
    %v1272 = vsel %vm1210, %v1271, 0.0
    %1273 = vadd.xlane.f32.xlu0 %v1272
    %v1274 = vpop.xlane.xlu0 %1273
    %v1275 = vrcp.pop %v1274
    %v1276 = vmul.f32 %v1271, %v1275
    %v1277 = vpack.c.bf16 %v1276, %v1276
    %v1278 = vpack.c.bf16 %v1164, %v1164
    %v1280 = vsel %vm1210, %v1277, 0
    %vm1282 = vcmask 1043456
    %v1284 = vsel %vm1282, %v1278, 0
    %1286 = vmatprep.subr.bf16.mxu0 0
    %1287 = vmatpush1.bf16.msra.mxu0 %v1284
    %1288 = vmatprep.subr.bf16.mxu0 0
    %1289 = vmatpush1.bf16.msra.mxu0 0
    %1290 = vmatprep.subr.bf16.mxu0 0
    %1291 = vmatpush1.bf16.msra.mxu0 0
    %1292 = vmatprep.subr.bf16.mxu0 0
    %1293 = vmatpush1.bf16.msra.mxu0 0
    %1294 = vmatprep.subr.bf16.mxu0 0
    %1295 = vmatpush1.bf16.msra.mxu0 0
    %1296 = vmatprep.subr.bf16.mxu0 0
    %1297 = vmatpush1.bf16.msra.mxu0 0
    %1298 = vmatprep.subr.bf16.mxu0 0
    %1299 = vmatpush1.bf16.msra.mxu0 0
    %1300 = vmatprep.subr.bf16.mxu0 0
    %1301 = vmatpush1.bf16.msra.mxu0 0
    %1302 = vmatprep.subr.bf16.mxu0 0
    %1303 = vmatpush1.bf16.msra.mxu0 0
    %1304 = vmatprep.subr.bf16.mxu0 0
    %1305 = vmatpush1.bf16.msra.mxu0 0
    %1306 = vmatprep.subr.bf16.mxu0 0
    %1307 = vmatpush1.bf16.msra.mxu0 0
    %1308 = vmatprep.subr.bf16.mxu0 0
    %1309 = vmatpush1.bf16.msra.mxu0 0
    %1310 = vmatprep.subr.bf16.mxu0 0
    %1311 = vmatpush1.bf16.msra.mxu0 0
    %1312 = vmatprep.subr.bf16.mxu0 0
    %1313 = vmatpush1.bf16.msra.mxu0 0
    %1314 = vmatprep.subr.bf16.mxu0 0
    %1315 = vmatpush1.bf16.msra.mxu0 0
    %1316 = vmatprep.subr.bf16.mxu0 0
    %1317 = vmatpush1.bf16.msra.mxu0 0
    %1318 = vmatprep.mubr.bf16.mxu0 0
    %1319 = vmatmul.mubr.bf16.gmra.mrb[0].mxu0 %v1280
    %v1320 = vpop.f32.mrb[0].mxu0
    %v1321 = vadd.f32 0.0, %v1320
    %v1322 = vpop.f32.mrb[0].mxu0
    %v1323 = vpop.f32.mrb[0].mxu0
    %v1324 = vpop.f32.mrb[0].mxu0
    %1325 = vdwg.mxu0
    %v1327 = vsel %vm1210, %v1222, 0
    %v1330 = vsel %vm1282, %v1223, 0
    %1332 = vmatprep.subr.bf16.mxu0 0
    %1333 = vmatpush1.bf16.msra.mxu0 %v1330
    %1334 = vmatprep.subr.bf16.mxu0 0
    %1335 = vmatpush1.bf16.msra.mxu0 0
    %1336 = vmatprep.subr.bf16.mxu0 0
    %1337 = vmatpush1.bf16.msra.mxu0 0
    %1338 = vmatprep.subr.bf16.mxu0 0
    %1339 = vmatpush1.bf16.msra.mxu0 0
    %1340 = vmatprep.subr.bf16.mxu0 0
    %1341 = vmatpush1.bf16.msra.mxu0 0
    %1342 = vmatprep.subr.bf16.mxu0 0
    %1343 = vmatpush1.bf16.msra.mxu0 0
    %1344 = vmatprep.subr.bf16.mxu0 0
    %1345 = vmatpush1.bf16.msra.mxu0 0
    %1346 = vmatprep.subr.bf16.mxu0 0
    %1347 = vmatpush1.bf16.msra.mxu0 0
    %1348 = vmatprep.subr.bf16.mxu0 0
    %1349 = vmatpush1.bf16.msra.mxu0 0
    %1350 = vmatprep.subr.bf16.mxu0 0
    %1351 = vmatpush1.bf16.msra.mxu0 0
    %1352 = vmatprep.subr.bf16.mxu0 0
    %1353 = vmatpush1.bf16.msra.mxu0 0
    %1354 = vmatprep.subr.bf16.mxu0 0
    %1355 = vmatpush1.bf16.msra.mxu0 0
    %1356 = vmatprep.subr.bf16.mxu0 0
    %1357 = vmatpush1.bf16.msra.mxu0 0
    %1358 = vmatprep.subr.bf16.mxu0 0
    %1359 = vmatpush1.bf16.msra.mxu0 0
    %1360 = vmatprep.subr.bf16.mxu0 0
    %1361 = vmatpush1.bf16.msra.mxu0 0
    %1362 = vmatprep.subr.bf16.mxu0 0
    %1363 = vmatpush1.bf16.msra.mxu0 0
    %1364 = vmatprep.mubr.bf16.mxu0 0
    %1365 = vmatmul.mubr.bf16.gmra.mrb[0].mxu0 %v1327
    %v1366 = vpop.f32.mrb[0].mxu0
    %v1367 = vadd.f32 %v1321, %v1366
    %v1368 = vpop.f32.mrb[0].mxu0
    %v1369 = vpop.f32.mrb[0].mxu0
    %v1370 = vpop.f32.mrb[0].mxu0
    %1371 = vdwg.mxu0
    %v1372 = vpack.c.bf16 %v1367, %v1367
    %v1389 = vunpack.c.l.b16 %v641
    %v1390 = vunpack.c.l.b16 %v642
    %v1391 = vunpack.c.l.b16 %v643
    %v1392 = vunpack.c.l.b16 %v644
    %v1393 = vunpack.c.l.b16 %v645
    %v1394 = vunpack.c.l.b16 %v646
    %v1395 = vunpack.c.l.b16 %v647
    %v1396 = vunpack.c.l.b16 %v648
    %v1397 = vunpack.c.l.b16 %v649
    %v1398 = vunpack.c.l.b16 %v650
    %v1399 = vunpack.c.l.b16 %v651
    %v1400 = vunpack.c.l.b16 %v652
    %v1401 = vunpack.c.l.b16 %v653
    %v1402 = vunpack.c.l.b16 %v654
    %v1403 = vunpack.c.l.b16 %v655
    %v1404 = vunpack.c.l.b16 %v656
    %v1405 = vpack.c.b16 %v1390, %v1389
    %v1406 = vpack.c.b16 %v1392, %v1391
    %v1407 = vpack.c.b16 %v1394, %v1393
    %v1408 = vpack.c.b16 %v1396, %v1395
    %v1409 = vpack.c.b16 %v1398, %v1397
    %v1410 = vpack.c.b16 %v1400, %v1399
    %v1411 = vpack.c.b16 %v1402, %v1401
    %v1412 = vpack.c.b16 %v1404, %v1403
    %1421 = vmatprep.subr.bf16.mxu0 0
    %1422 = vmatpush1.bf16.msra.mxu0 %v1405
    %1423 = vmatprep.subr.bf16.mxu0 0
    %1424 = vmatpush1.bf16.msra.mxu0 %v1406
    %1425 = vmatprep.subr.bf16.mxu0 0
    %1426 = vmatpush1.bf16.msra.mxu0 %v1407
    %1427 = vmatprep.subr.bf16.mxu0 0
    %1428 = vmatpush1.bf16.msra.mxu0 %v1408
    %1429 = vmatprep.subr.bf16.mxu0 0
    %1430 = vmatpush1.bf16.msra.mxu0 %v1409
    %1431 = vmatprep.subr.bf16.mxu0 0
    %1432 = vmatpush1.bf16.msra.mxu0 %v1410
    %1433 = vmatprep.subr.bf16.mxu0 0
    %1434 = vmatpush1.bf16.msra.mxu0 %v1411
    %1435 = vmatprep.subr.bf16.mxu0 0
    %1436 = vmatpush1.bf16.msra.mxu0 %v1412
    %1437 = vmatprep.subr.bf16.mxu0 0
    %1438 = vmatpush1.bf16.msra.mxu0 0
    %1439 = vmatprep.subr.bf16.mxu0 0
    %1440 = vmatpush1.bf16.msra.mxu0 0
    %1441 = vmatprep.subr.bf16.mxu0 0
    %1442 = vmatpush1.bf16.msra.mxu0 0
    %1443 = vmatprep.subr.bf16.mxu0 0
    %1444 = vmatpush1.bf16.msra.mxu0 0
    %1445 = vmatprep.subr.bf16.mxu0 0
    %1446 = vmatpush1.bf16.msra.mxu0 0
    %1447 = vmatprep.subr.bf16.mxu0 0
    %1448 = vmatpush1.bf16.msra.mxu0 0
    %1449 = vmatprep.subr.bf16.mxu0 0
    %1450 = vmatpush1.bf16.msra.mxu0 0
    %1451 = vmatprep.subr.bf16.mxu0 0
    %1452 = vmatpush1.bf16.msra.mxu0 0
    %1453 = vmatprep.mubr.bf16.mxu0 0
    %1454 = vmatmul.mubr.bf16.gmra.mrb[0].mxu0 %v1372
    %v1455 = vpop.f32.mrb[0].mxu0
    %v1456 = vadd.f32 0.0, %v1455
    %v1457 = vpop.f32.mrb[0].mxu0
    %v1458 = vpop.f32.mrb[0].mxu0
    %v1459 = vpop.f32.mrb[0].mxu0
    %1460 = vdwg.mxu0
    %v1461 = vadd.f32 %v549, %v1456
    %v1462 = vlaneseq
    %v1463 = vshrl.u32 %v1462, 7
    %v1464 = vsub.s32 3, %v1463
    %v1465 = vrot.slane %v753, %v1464
    %v1466 = vadd.f32 %v1461, %v1465
    %1467 = vadd.xlane.f32.xlu0 %v1466
    %v1468 = vpop.xlane.xlu0 %1467
    %v1469 = vmul.f32 %v1468, %v335
    %v1470 = vsub.f32 %v1466, %v1469
    %v1471 = vmul.f32 %v1470, %v1470
    %1472 = vadd.xlane.f32.xlu0 %v1471
    %v1473 = vpop.xlane.xlu0 %1472
    %v1474 = vmul.f32 %v1473, %v335
    %v1475 = vadd.f32 %v1474, 1e-06
    %v1476 = vrsqrt.pop %v1475
    %v1477 = vmul.f32 %v1470, %v1476
    %v1478 = vlaneseq
    %v1479 = vshrl.u32 %v1478, 7
    %v1480 = vsub.s32 4, %v1479
    %v1481 = vrot.slane %v753, %v1480
    %v1482 = vmul.f32 %v1477, %v1481
    %v1483 = vlaneseq
    %v1484 = vshrl.u32 %v1483, 7
    %v1485 = vsub.s32 5, %v1484
    %v1486 = vrot.slane %v753, %v1485
    %v1487 = vadd.f32 %v1482, %v1486
    %v1488 = vpack.c.bf16 %v1487, %v1487
    %v1489 = vlaneseq
    %v1490 = vshrl.u32 %v1489, 7
    %v1491 = vsub.s32 6, %v1490
    %v1492 = vrot.slane %v753, %v1491
    %v1493 = vlaneseq
    %v1494 = vshrl.u32 %v1493, 7
    %v1495 = vsub.s32 6, %v1494
    %v1496 = vrot.slane %v754, %v1495
    %v1497 = vlaneseq
    %v1498 = vshrl.u32 %v1497, 7
    %v1499 = vsub.s32 6, %v1498
    %v1500 = vrot.slane %v755, %v1499
    %v1501 = vlaneseq
    %v1502 = vshrl.u32 %v1501, 7
    %v1503 = vsub.s32 6, %v1502
    %v1504 = vrot.slane %v756, %v1503
    %v1537 = vunpack.c.l.b16 %v657
    %v1538 = vunpack.c.h.b16 %v657
    %v1539 = vunpack.c.l.b16 %v658
    %v1540 = vunpack.c.h.b16 %v658
    %v1541 = vunpack.c.l.b16 %v659
    %v1542 = vunpack.c.h.b16 %v659
    %v1543 = vunpack.c.l.b16 %v660
    %v1544 = vunpack.c.h.b16 %v660
    %v1545 = vunpack.c.l.b16 %v661
    %v1546 = vunpack.c.h.b16 %v661
    %v1547 = vunpack.c.l.b16 %v662
    %v1548 = vunpack.c.h.b16 %v662
    %v1549 = vunpack.c.l.b16 %v663
    %v1550 = vunpack.c.h.b16 %v663
    %v1551 = vunpack.c.l.b16 %v664
    %v1552 = vunpack.c.h.b16 %v664
    %v1553 = vunpack.c.l.b16 %v665
    %v1554 = vunpack.c.h.b16 %v665
    %v1555 = vunpack.c.l.b16 %v666
    %v1556 = vunpack.c.h.b16 %v666
    %v1557 = vunpack.c.l.b16 %v667
    %v1558 = vunpack.c.h.b16 %v667
    %v1559 = vunpack.c.l.b16 %v668
    %v1560 = vunpack.c.h.b16 %v668
    %v1561 = vunpack.c.l.b16 %v669
    %v1562 = vunpack.c.h.b16 %v669
    %v1563 = vunpack.c.l.b16 %v670
    %v1564 = vunpack.c.h.b16 %v670
    %v1565 = vunpack.c.l.b16 %v671
    %v1566 = vunpack.c.h.b16 %v671
    %v1567 = vunpack.c.l.b16 %v672
    %v1568 = vunpack.c.h.b16 %v672
    %v1569 = vunpack.c.l.b16 %v673
    %v1570 = vunpack.c.h.b16 %v673
    %v1571 = vunpack.c.l.b16 %v674
    %v1572 = vunpack.c.h.b16 %v674
    %v1573 = vunpack.c.l.b16 %v675
    %v1574 = vunpack.c.h.b16 %v675
    %v1575 = vunpack.c.l.b16 %v676
    %v1576 = vunpack.c.h.b16 %v676
    %v1577 = vunpack.c.l.b16 %v677
    %v1578 = vunpack.c.h.b16 %v677
    %v1579 = vunpack.c.l.b16 %v678
    %v1580 = vunpack.c.h.b16 %v678
    %v1581 = vunpack.c.l.b16 %v679
    %v1582 = vunpack.c.h.b16 %v679
    %v1583 = vunpack.c.l.b16 %v680
    %v1584 = vunpack.c.h.b16 %v680
    %v1585 = vunpack.c.l.b16 %v681
    %v1586 = vunpack.c.h.b16 %v681
    %v1587 = vunpack.c.l.b16 %v682
    %v1588 = vunpack.c.h.b16 %v682
    %v1589 = vunpack.c.l.b16 %v683
    %v1590 = vunpack.c.h.b16 %v683
    %v1591 = vunpack.c.l.b16 %v684
    %v1592 = vunpack.c.h.b16 %v684
    %v1593 = vunpack.c.l.b16 %v685
    %v1594 = vunpack.c.h.b16 %v685
    %v1595 = vunpack.c.l.b16 %v686
    %v1596 = vunpack.c.h.b16 %v686
    %v1597 = vunpack.c.l.b16 %v687
    %v1598 = vunpack.c.h.b16 %v687
    %v1599 = vunpack.c.l.b16 %v688
    %v1600 = vunpack.c.h.b16 %v688
    %v1601 = vpack.c.b16 %v1541, %v1537
    %v1602 = vpack.c.b16 %v1542, %v1538
    %v1603 = vpack.c.b16 %v1543, %v1539
    %v1604 = vpack.c.b16 %v1544, %v1540
    %v1605 = vpack.c.b16 %v1549, %v1545
    %v1606 = vpack.c.b16 %v1550, %v1546
    %v1607 = vpack.c.b16 %v1551, %v1547
    %v1608 = vpack.c.b16 %v1552, %v1548
    %v1609 = vpack.c.b16 %v1557, %v1553
    %v1610 = vpack.c.b16 %v1558, %v1554
    %v1611 = vpack.c.b16 %v1559, %v1555
    %v1612 = vpack.c.b16 %v1560, %v1556
    %v1613 = vpack.c.b16 %v1565, %v1561
    %v1614 = vpack.c.b16 %v1566, %v1562
    %v1615 = vpack.c.b16 %v1567, %v1563
    %v1616 = vpack.c.b16 %v1568, %v1564
    %v1617 = vpack.c.b16 %v1573, %v1569
    %v1618 = vpack.c.b16 %v1574, %v1570
    %v1619 = vpack.c.b16 %v1575, %v1571
    %v1620 = vpack.c.b16 %v1576, %v1572
    %v1621 = vpack.c.b16 %v1581, %v1577
    %v1622 = vpack.c.b16 %v1582, %v1578
    %v1623 = vpack.c.b16 %v1583, %v1579
    %v1624 = vpack.c.b16 %v1584, %v1580
    %v1625 = vpack.c.b16 %v1589, %v1585
    %v1626 = vpack.c.b16 %v1590, %v1586
    %v1627 = vpack.c.b16 %v1591, %v1587
    %v1628 = vpack.c.b16 %v1592, %v1588
    %v1629 = vpack.c.b16 %v1597, %v1593
    %v1630 = vpack.c.b16 %v1598, %v1594
    %v1631 = vpack.c.b16 %v1599, %v1595
    %v1632 = vpack.c.b16 %v1600, %v1596
    %1665 = vmatprep.subr.bf16.mxu0 %v1602
    %1666 = vmatpush1.bf16.msra.mxu0 %v1601
    %1667 = vmatprep.subr.bf16.mxu0 %v1606
    %1668 = vmatpush1.bf16.msra.mxu0 %v1605
    %1669 = vmatprep.subr.bf16.mxu0 %v1610
    %1670 = vmatpush1.bf16.msra.mxu0 %v1609
    %1671 = vmatprep.subr.bf16.mxu0 %v1614
    %1672 = vmatpush1.bf16.msra.mxu0 %v1613
    %1673 = vmatprep.subr.bf16.mxu0 %v1618
    %1674 = vmatpush1.bf16.msra.mxu0 %v1617
    %1675 = vmatprep.subr.bf16.mxu0 %v1622
    %1676 = vmatpush1.bf16.msra.mxu0 %v1621
    %1677 = vmatprep.subr.bf16.mxu0 %v1626
    %1678 = vmatpush1.bf16.msra.mxu0 %v1625
    %1679 = vmatprep.subr.bf16.mxu0 %v1630
    %1680 = vmatpush1.bf16.msra.mxu0 %v1629
    %1681 = vmatprep.subr.bf16.mxu0 0
    %1682 = vmatpush1.bf16.msra.mxu0 0
    %1683 = vmatprep.subr.bf16.mxu0 0
    %1684 = vmatpush1.bf16.msra.mxu0 0
    %1685 = vmatprep.subr.bf16.mxu0 0
    %1686 = vmatpush1.bf16.msra.mxu0 0
    %1687 = vmatprep.subr.bf16.mxu0 0
    %1688 = vmatpush1.bf16.msra.mxu0 0
    %1689 = vmatprep.subr.bf16.mxu0 0
    %1690 = vmatpush1.bf16.msra.mxu0 0
    %1691 = vmatprep.subr.bf16.mxu0 0
    %1692 = vmatpush1.bf16.msra.mxu0 0
    %1693 = vmatprep.subr.bf16.mxu0 0
    %1694 = vmatpush1.bf16.msra.mxu0 0
    %1695 = vmatprep.subr.bf16.mxu0 0
    %1696 = vmatpush1.bf16.msra.mxu0 0
    %1697 = vmatprep.mubr.bf16.mxu0 0
    %1698 = vmatmul.mubr.bf16.gmra.mrb[0].mxu0 %v1488
    %v1699 = vpop.f32.mrb[0].mxu0
    %v1700 = vadd.f32 %v1492, %v1699
    %v1701 = vpop.f32.mrb[0].mxu0
    %v1702 = vadd.f32 %v1496, %v1701
    %v1703 = vpop.f32.mrb[0].mxu0
    %v1704 = vpop.f32.mrb[0].mxu0
    %1705 = vdwg.mxu0
    %1706 = vmatprep.subr.bf16.mxu0 %v1604
    %1707 = vmatpush1.bf16.msra.mxu0 %v1603
    %1708 = vmatprep.subr.bf16.mxu0 %v1608
    %1709 = vmatpush1.bf16.msra.mxu0 %v1607
    %1710 = vmatprep.subr.bf16.mxu0 %v1612
    %1711 = vmatpush1.bf16.msra.mxu0 %v1611
    %1712 = vmatprep.subr.bf16.mxu0 %v1616
    %1713 = vmatpush1.bf16.msra.mxu0 %v1615
    %1714 = vmatprep.subr.bf16.mxu0 %v1620
    %1715 = vmatpush1.bf16.msra.mxu0 %v1619
    %1716 = vmatprep.subr.bf16.mxu0 %v1624
    %1717 = vmatpush1.bf16.msra.mxu0 %v1623
    %1718 = vmatprep.subr.bf16.mxu0 %v1628
    %1719 = vmatpush1.bf16.msra.mxu0 %v1627
    %1720 = vmatprep.subr.bf16.mxu0 %v1632
    %1721 = vmatpush1.bf16.msra.mxu0 %v1631
    %1722 = vmatprep.subr.bf16.mxu0 0
    %1723 = vmatpush1.bf16.msra.mxu0 0
    %1724 = vmatprep.subr.bf16.mxu0 0
    %1725 = vmatpush1.bf16.msra.mxu0 0
    %1726 = vmatprep.subr.bf16.mxu0 0
    %1727 = vmatpush1.bf16.msra.mxu0 0
    %1728 = vmatprep.subr.bf16.mxu0 0
    %1729 = vmatpush1.bf16.msra.mxu0 0
    %1730 = vmatprep.subr.bf16.mxu0 0
    %1731 = vmatpush1.bf16.msra.mxu0 0
    %1732 = vmatprep.subr.bf16.mxu0 0
    %1733 = vmatpush1.bf16.msra.mxu0 0
    %1734 = vmatprep.subr.bf16.mxu0 0
    %1735 = vmatpush1.bf16.msra.mxu0 0
    %1736 = vmatprep.subr.bf16.mxu0 0
    %1737 = vmatpush1.bf16.msra.mxu0 0
    %1738 = vmatprep.mubr.bf16.mxu0 0
    %1739 = vmatmul.mubr.bf16.gmra.mrb[0].mxu0 %v1488
    %v1740 = vpop.f32.mrb[0].mxu0
    %v1741 = vadd.f32 %v1500, %v1740
    %v1742 = vpop.f32.mrb[0].mxu0
    %v1743 = vadd.f32 %v1504, %v1742
    %v1744 = vpop.f32.mrb[0].mxu0
    %v1745 = vpop.f32.mrb[0].mxu0
    %1746 = vdwg.mxu0
    %v1747 = vmul.f32 %v1700, %v1700
    %v1748 = vmul.f32 %v1702, %v1702
    %v1749 = vmul.f32 %v1741, %v1741
    %v1750 = vmul.f32 %v1743, %v1743
    %v1751 = vmul.f32 %v1700, %v1747
    %v1752 = vmul.f32 %v1702, %v1748
    %v1753 = vmul.f32 %v1741, %v1749
    %v1754 = vmul.f32 %v1743, %v1750
    %v1755 = vmul.f32 %v1751, 0.044715
    %v1756 = vmul.f32 %v1752, 0.044715
    %v1757 = vmul.f32 %v1753, 0.044715
    %v1758 = vmul.f32 %v1754, 0.044715
    %v1759 = vadd.f32 %v1700, %v1755
    %v1760 = vadd.f32 %v1702, %v1756
    %v1761 = vadd.f32 %v1741, %v1757
    %v1762 = vadd.f32 %v1743, %v1758
    %v1763 = vmul.f32 %v1759, 0.7978846
    %v1764 = vmul.f32 %v1760, 0.7978846
    %v1765 = vmul.f32 %v1761, 0.7978846
    %v1766 = vmul.f32 %v1762, 0.7978846
    %v1767 = vtanh.pop %v1763
    %v1768 = vtanh.pop %v1764
    %v1769 = vtanh.pop %v1765
    %v1770 = vtanh.pop %v1766
    %v1771 = vadd.f32 %v1767, 1.0
    %v1772 = vadd.f32 %v1768, 1.0
    %v1773 = vadd.f32 %v1769, 1.0
    %v1774 = vadd.f32 %v1770, 1.0
    %v1775 = vmul.f32 %v1771, 0.5
    %v1776 = vmul.f32 %v1772, 0.5
    %v1777 = vmul.f32 %v1773, 0.5
    %v1778 = vmul.f32 %v1774, 0.5
    %v1779 = vmul.f32 %v1700, %v1775
    %v1780 = vmul.f32 %v1702, %v1776
    %v1781 = vmul.f32 %v1741, %v1777
    %v1782 = vmul.f32 %v1743, %v1778
    %v1783 = vpack.c.bf16 %v1779, %v1779
    %v1784 = vpack.c.bf16 %v1780, %v1780
    %v1785 = vpack.c.bf16 %v1781, %v1781
    %v1786 = vpack.c.bf16 %v1782, %v1782
    %v1851 = vunpack.c.l.b16 %v689
    %v1852 = vunpack.c.l.b16 %v690
    %v1853 = vunpack.c.l.b16 %v691
    %v1854 = vunpack.c.l.b16 %v692
    %v1855 = vunpack.c.l.b16 %v693
    %v1856 = vunpack.c.l.b16 %v694
    %v1857 = vunpack.c.l.b16 %v695
    %v1858 = vunpack.c.l.b16 %v696
    %v1859 = vunpack.c.l.b16 %v697
    %v1860 = vunpack.c.l.b16 %v698
    %v1861 = vunpack.c.l.b16 %v699
    %v1862 = vunpack.c.l.b16 %v700
    %v1863 = vunpack.c.l.b16 %v701
    %v1864 = vunpack.c.l.b16 %v702
    %v1865 = vunpack.c.l.b16 %v703
    %v1866 = vunpack.c.l.b16 %v704
    %v1867 = vunpack.c.l.b16 %v705
    %v1868 = vunpack.c.l.b16 %v706
    %v1869 = vunpack.c.l.b16 %v707
    %v1870 = vunpack.c.l.b16 %v708
    %v1871 = vunpack.c.l.b16 %v709
    %v1872 = vunpack.c.l.b16 %v710
    %v1873 = vunpack.c.l.b16 %v711
    %v1874 = vunpack.c.l.b16 %v712
    %v1875 = vunpack.c.l.b16 %v713
    %v1876 = vunpack.c.l.b16 %v714
    %v1877 = vunpack.c.l.b16 %v715
    %v1878 = vunpack.c.l.b16 %v716
    %v1879 = vunpack.c.l.b16 %v717
    %v1880 = vunpack.c.l.b16 %v718
    %v1881 = vunpack.c.l.b16 %v719
    %v1882 = vunpack.c.l.b16 %v720
    %v1883 = vunpack.c.l.b16 %v721
    %v1884 = vunpack.c.l.b16 %v722
    %v1885 = vunpack.c.l.b16 %v723
    %v1886 = vunpack.c.l.b16 %v724
    %v1887 = vunpack.c.l.b16 %v725
    %v1888 = vunpack.c.l.b16 %v726
    %v1889 = vunpack.c.l.b16 %v727
    %v1890 = vunpack.c.l.b16 %v728
    %v1891 = vunpack.c.l.b16 %v729
    %v1892 = vunpack.c.l.b16 %v730
    %v1893 = vunpack.c.l.b16 %v731
    %v1894 = vunpack.c.l.b16 %v732
    %v1895 = vunpack.c.l.b16 %v733
    %v1896 = vunpack.c.l.b16 %v734
    %v1897 = vunpack.c.l.b16 %v735
    %v1898 = vunpack.c.l.b16 %v736
    %v1899 = vunpack.c.l.b16 %v737
    %v1900 = vunpack.c.l.b16 %v738
    %v1901 = vunpack.c.l.b16 %v739
    %v1902 = vunpack.c.l.b16 %v740
    %v1903 = vunpack.c.l.b16 %v741
    %v1904 = vunpack.c.l.b16 %v742
    %v1905 = vunpack.c.l.b16 %v743
    %v1906 = vunpack.c.l.b16 %v744
    %v1907 = vunpack.c.l.b16 %v745
    %v1908 = vunpack.c.l.b16 %v746
    %v1909 = vunpack.c.l.b16 %v747
    %v1910 = vunpack.c.l.b16 %v748
    %v1911 = vunpack.c.l.b16 %v749
    %v1912 = vunpack.c.l.b16 %v750
    %v1913 = vunpack.c.l.b16 %v751
    %v1914 = vunpack.c.l.b16 %v752
    %v1915 = vpack.c.b16 %v1852, %v1851
    %v1916 = vpack.c.b16 %v1854, %v1853
    %v1917 = vpack.c.b16 %v1856, %v1855
    %v1918 = vpack.c.b16 %v1858, %v1857
    %v1919 = vpack.c.b16 %v1860, %v1859
    %v1920 = vpack.c.b16 %v1862, %v1861
    %v1921 = vpack.c.b16 %v1864, %v1863
    %v1922 = vpack.c.b16 %v1866, %v1865
    %v1923 = vpack.c.b16 %v1868, %v1867
    %v1924 = vpack.c.b16 %v1870, %v1869
    %v1925 = vpack.c.b16 %v1872, %v1871
    %v1926 = vpack.c.b16 %v1874, %v1873
    %v1927 = vpack.c.b16 %v1876, %v1875
    %v1928 = vpack.c.b16 %v1878, %v1877
    %v1929 = vpack.c.b16 %v1880, %v1879
    %v1930 = vpack.c.b16 %v1882, %v1881
    %v1931 = vpack.c.b16 %v1884, %v1883
    %v1932 = vpack.c.b16 %v1886, %v1885
    %v1933 = vpack.c.b16 %v1888, %v1887
    %v1934 = vpack.c.b16 %v1890, %v1889
    %v1935 = vpack.c.b16 %v1892, %v1891
    %v1936 = vpack.c.b16 %v1894, %v1893
    %v1937 = vpack.c.b16 %v1896, %v1895
    %v1938 = vpack.c.b16 %v1898, %v1897
    %v1939 = vpack.c.b16 %v1900, %v1899
    %v1940 = vpack.c.b16 %v1902, %v1901
    %v1941 = vpack.c.b16 %v1904, %v1903
    %v1942 = vpack.c.b16 %v1906, %v1905
    %v1943 = vpack.c.b16 %v1908, %v1907
    %v1944 = vpack.c.b16 %v1910, %v1909
    %v1945 = vpack.c.b16 %v1912, %v1911
    %v1946 = vpack.c.b16 %v1914, %v1913
    %1979 = vmatprep.subr.bf16.mxu0 0
    %1980 = vmatpush1.bf16.msra.mxu0 %v1915
    %1981 = vmatprep.subr.bf16.mxu0 0
    %1982 = vmatpush1.bf16.msra.mxu0 %v1916
    %1983 = vmatprep.subr.bf16.mxu0 0
    %1984 = vmatpush1.bf16.msra.mxu0 %v1917
    %1985 = vmatprep.subr.bf16.mxu0 0
    %1986 = vmatpush1.bf16.msra.mxu0 %v1918
    %1987 = vmatprep.subr.bf16.mxu0 0
    %1988 = vmatpush1.bf16.msra.mxu0 %v1919
    %1989 = vmatprep.subr.bf16.mxu0 0
    %1990 = vmatpush1.bf16.msra.mxu0 %v1920
    %1991 = vmatprep.subr.bf16.mxu0 0
    %1992 = vmatpush1.bf16.msra.mxu0 %v1921
    %1993 = vmatprep.subr.bf16.mxu0 0
    %1994 = vmatpush1.bf16.msra.mxu0 %v1922
    %1995 = vmatprep.subr.bf16.mxu0 0
    %1996 = vmatpush1.bf16.msra.mxu0 %v1923
    %1997 = vmatprep.subr.bf16.mxu0 0
    %1998 = vmatpush1.bf16.msra.mxu0 %v1924
    %1999 = vmatprep.subr.bf16.mxu0 0
    %2000 = vmatpush1.bf16.msra.mxu0 %v1925
    %2001 = vmatprep.subr.bf16.mxu0 0
    %2002 = vmatpush1.bf16.msra.mxu0 %v1926
    %2003 = vmatprep.subr.bf16.mxu0 0
    %2004 = vmatpush1.bf16.msra.mxu0 %v1927
    %2005 = vmatprep.subr.bf16.mxu0 0
    %2006 = vmatpush1.bf16.msra.mxu0 %v1928
    %2007 = vmatprep.subr.bf16.mxu0 0
    %2008 = vmatpush1.bf16.msra.mxu0 %v1929
    %2009 = vmatprep.subr.bf16.mxu0 0
    %2010 = vmatpush1.bf16.msra.mxu0 %v1930
    %2011 = vmatprep.mubr.bf16.mxu0 %v1784
    %2012 = vmatmul.mubr.bf16.gmra.mrb[0].mxu0 %v1783
    %v2013 = vpop.f32.mrb[0].mxu0
    %v2014 = vadd.f32 0.0, %v2013
    %v2015 = vpop.f32.mrb[0].mxu0
    %v2016 = vpop.f32.mrb[0].mxu0
    %v2017 = vpop.f32.mrb[0].mxu0
    %2018 = vdwg.mxu0
    %2019 = vmatprep.subr.bf16.mxu0 0
    %2020 = vmatpush1.bf16.msra.mxu0 %v1931
    %2021 = vmatprep.subr.bf16.mxu0 0
    %2022 = vmatpush1.bf16.msra.mxu0 %v1932
    %2023 = vmatprep.subr.bf16.mxu0 0
    %2024 = vmatpush1.bf16.msra.mxu0 %v1933
    %2025 = vmatprep.subr.bf16.mxu0 0
    %2026 = vmatpush1.bf16.msra.mxu0 %v1934
    %2027 = vmatprep.subr.bf16.mxu0 0
    %2028 = vmatpush1.bf16.msra.mxu0 %v1935
    %2029 = vmatprep.subr.bf16.mxu0 0
    %2030 = vmatpush1.bf16.msra.mxu0 %v1936
    %2031 = vmatprep.subr.bf16.mxu0 0
    %2032 = vmatpush1.bf16.msra.mxu0 %v1937
    %2033 = vmatprep.subr.bf16.mxu0 0
    %2034 = vmatpush1.bf16.msra.mxu0 %v1938
    %2035 = vmatprep.subr.bf16.mxu0 0
    %2036 = vmatpush1.bf16.msra.mxu0 %v1939
    %2037 = vmatprep.subr.bf16.mxu0 0
    %2038 = vmatpush1.bf16.msra.mxu0 %v1940
    %2039 = vmatprep.subr.bf16.mxu0 0
    %2040 = vmatpush1.bf16.msra.mxu0 %v1941
    %2041 = vmatprep.subr.bf16.mxu0 0
    %2042 = vmatpush1.bf16.msra.mxu0 %v1942
    %2043 = vmatprep.subr.bf16.mxu0 0
    %2044 = vmatpush1.bf16.msra.mxu0 %v1943
    %2045 = vmatprep.subr.bf16.mxu0 0
    %2046 = vmatpush1.bf16.msra.mxu0 %v1944
    %2047 = vmatprep.subr.bf16.mxu0 0
    %2048 = vmatpush1.bf16.msra.mxu0 %v1945
    %2049 = vmatprep.subr.bf16.mxu0 0
    %2050 = vmatpush1.bf16.msra.mxu0 %v1946
    %2051 = vmatprep.mubr.bf16.mxu0 %v1786
    %2052 = vmatmul.mubr.bf16.gmra.mrb[0].mxu0 %v1785
    %v2053 = vpop.f32.mrb[0].mxu0
    %v2054 = vadd.f32 %v2014, %v2053
    %v2055 = vpop.f32.mrb[0].mxu0
    %v2056 = vpop.f32.mrb[0].mxu0
    %v2057 = vpop.f32.mrb[0].mxu0
    %2058 = vdwg.mxu0
    %v2059 = vadd.f32 %v1466, %v2054
    %v2060 = vlaneseq
    %v2061 = vshrl.u32 %v2060, 7
    %v2062 = vsub.s32 7, %v2061
    %v2063 = vrot.slane %v753, %v2062
    %v2064 = vadd.f32 %v2059, %v2063
    %s2065 = scalar_lea.vmem [#allocation11], 384
    %v2066 = vld [vmem:[%s2065] sm:$0xff]
    %v2067 = vld [vmem:[%s2065 + $0x8] sm:$0xff]
    %v2068 = vld [vmem:[%s2065 + $0x10] sm:$0xff]
    %v2069 = vld [vmem:[%s2065 + $0x18] sm:$0xff]
    %v2070 = vld [vmem:[%s2065 + $0x20] sm:$0xff]
    %v2071 = vld [vmem:[%s2065 + $0x28] sm:$0xff]
    %v2072 = vld [vmem:[%s2065 + $0x30] sm:$0xff]
    %v2073 = vld [vmem:[%s2065 + $0x38] sm:$0xff]
    %v2074 = vld [vmem:[%s2065 + $0x40] sm:$0xff]
    %v2075 = vld [vmem:[%s2065 + $0x48] sm:$0xff]
    %v2076 = vld [vmem:[%s2065 + $0x50] sm:$0xff]
    %v2077 = vld [vmem:[%s2065 + $0x58] sm:$0xff]
    %v2078 = vld [vmem:[%s2065 + $0x60] sm:$0xff]
    %v2079 = vld [vmem:[%s2065 + $0x68] sm:$0xff]
    %v2080 = vld [vmem:[%s2065 + $0x70] sm:$0xff]
    %v2081 = vld [vmem:[%s2065 + $0x78] sm:$0xff]
    %v2082 = vld [vmem:[%s2065 + $0x80] sm:$0xff]
    %v2083 = vld [vmem:[%s2065 + $0x88] sm:$0xff]
    %v2084 = vld [vmem:[%s2065 + $0x90] sm:$0xff]
    %v2085 = vld [vmem:[%s2065 + $0x98] sm:$0xff]
    %v2086 = vld [vmem:[%s2065 + $0xa0] sm:$0xff]
    %v2087 = vld [vmem:[%s2065 + $0xa8] sm:$0xff]
    %v2088 = vld [vmem:[%s2065 + $0xb0] sm:$0xff]
    %v2089 = vld [vmem:[%s2065 + $0xb8] sm:$0xff]
    %v2090 = vld [vmem:[%s2065 + $0xc0] sm:$0xff]
    %v2091 = vld [vmem:[%s2065 + $0xc8] sm:$0xff]
    %v2092 = vld [vmem:[%s2065 + $0xd0] sm:$0xff]
    %v2093 = vld [vmem:[%s2065 + $0xd8] sm:$0xff]
    %v2094 = vld [vmem:[%s2065 + $0xe0] sm:$0xff]
    %v2095 = vld [vmem:[%s2065 + $0xe8] sm:$0xff]
    %v2096 = vld [vmem:[%s2065 + $0xf0] sm:$0xff]
    %v2097 = vld [vmem:[%s2065 + $0xf8] sm:$0xff]
    %v2098 = vld [vmem:[%s2065 + $0x100] sm:$0xff]
    %v2099 = vld [vmem:[%s2065 + $0x108] sm:$0xff]
    %v2100 = vld [vmem:[%s2065 + $0x110] sm:$0xff]
    %v2101 = vld [vmem:[%s2065 + $0x118] sm:$0xff]
    %v2102 = vld [vmem:[%s2065 + $0x120] sm:$0xff]
    %v2103 = vld [vmem:[%s2065 + $0x128] sm:$0xff]
    %v2104 = vld [vmem:[%s2065 + $0x130] sm:$0xff]
    %v2105 = vld [vmem:[%s2065 + $0x138] sm:$0xff]
    %v2106 = vld [vmem:[%s2065 + $0x140] sm:$0xff]
    %v2107 = vld [vmem:[%s2065 + $0x148] sm:$0xff]
    %v2108 = vld [vmem:[%s2065 + $0x150] sm:$0xff]
    %v2109 = vld [vmem:[%s2065 + $0x158] sm:$0xff]
    %v2110 = vld [vmem:[%s2065 + $0x160] sm:$0xff]
    %v2111 = vld [vmem:[%s2065 + $0x168] sm:$0xff]
    %v2112 = vld [vmem:[%s2065 + $0x170] sm:$0xff]
    %v2113 = vld [vmem:[%s2065 + $0x178] sm:$0xff]
    %s2114 = scalar_lea.vmem [#allocation12], 64
    %v2115 = vld [vmem:[%s2114] sm:$0xf]
    %v2116 = vld [vmem:[%s2114 + $0x4] sm:$0xf]
    %v2117 = vld [vmem:[%s2114 + $0x8] sm:$0xf]
    %v2118 = vld [vmem:[%s2114 + $0xc] sm:$0xf]
    %v2119 = vld [vmem:[%s2114 + $0x10] sm:$0xf]
    %v2120 = vld [vmem:[%s2114 + $0x14] sm:$0xf]
    %v2121 = vld [vmem:[%s2114 + $0x18] sm:$0xf]
    %v2122 = vld [vmem:[%s2114 + $0x1c] sm:$0xf]
    %v2123 = vld [vmem:[%s2114 + $0x20] sm:$0xf]
    %v2124 = vld [vmem:[%s2114 + $0x24] sm:$0xf]
    %v2125 = vld [vmem:[%s2114 + $0x28] sm:$0xf]
    %v2126 = vld [vmem:[%s2114 + $0x2c] sm:$0xf]
    %v2127 = vld [vmem:[%s2114 + $0x30] sm:$0xf]
    %v2128 = vld [vmem:[%s2114 + $0x34] sm:$0xf]
    %v2129 = vld [vmem:[%s2114 + $0x38] sm:$0xf]
    %v2130 = vld [vmem:[%s2114 + $0x3c] sm:$0xf]
    %s2131 = scalar_lea.vmem [#allocation14], 256
    %v2132 = vld [vmem:[%s2131] sm:$0xff]
    %v2133 = vld [vmem:[%s2131 + $0x8] sm:$0xff]
    %v2134 = vld [vmem:[%s2131 + $0x10] sm:$0xff]
    %v2135 = vld [vmem:[%s2131 + $0x18] sm:$0xff]
    %v2136 = vld [vmem:[%s2131 + $0x20] sm:$0xff]
    %v2137 = vld [vmem:[%s2131 + $0x28] sm:$0xff]
    %v2138 = vld [vmem:[%s2131 + $0x30] sm:$0xff]
    %v2139 = vld [vmem:[%s2131 + $0x38] sm:$0xff]
    %v2140 = vld [vmem:[%s2131 + $0x40] sm:$0xff]
    %v2141 = vld [vmem:[%s2131 + $0x48] sm:$0xff]
    %v2142 = vld [vmem:[%s2131 + $0x50] sm:$0xff]
    %v2143 = vld [vmem:[%s2131 + $0x58] sm:$0xff]
    %v2144 = vld [vmem:[%s2131 + $0x60] sm:$0xff]
    %v2145 = vld [vmem:[%s2131 + $0x68] sm:$0xff]
    %v2146 = vld [vmem:[%s2131 + $0x70] sm:$0xff]
    %v2147 = vld [vmem:[%s2131 + $0x78] sm:$0xff]
    %v2148 = vld [vmem:[%s2131 + $0x80] sm:$0xff]
    %v2149 = vld [vmem:[%s2131 + $0x88] sm:$0xff]
    %v2150 = vld [vmem:[%s2131 + $0x90] sm:$0xff]
    %v2151 = vld [vmem:[%s2131 + $0x98] sm:$0xff]
    %v2152 = vld [vmem:[%s2131 + $0xa0] sm:$0xff]
    %v2153 = vld [vmem:[%s2131 + $0xa8] sm:$0xff]
    %v2154 = vld [vmem:[%s2131 + $0xb0] sm:$0xff]
    %v2155 = vld [vmem:[%s2131 + $0xb8] sm:$0xff]
    %v2156 = vld [vmem:[%s2131 + $0xc0] sm:$0xff]
    %v2157 = vld [vmem:[%s2131 + $0xc8] sm:$0xff]
    %v2158 = vld [vmem:[%s2131 + $0xd0] sm:$0xff]
    %v2159 = vld [vmem:[%s2131 + $0xd8] sm:$0xff]
    %v2160 = vld [vmem:[%s2131 + $0xe0] sm:$0xff]
    %v2161 = vld [vmem:[%s2131 + $0xe8] sm:$0xff]
    %v2162 = vld [vmem:[%s2131 + $0xf0] sm:$0xff]
    %v2163 = vld [vmem:[%s2131 + $0xf8] sm:$0xff]
    %s2164 = scalar_lea.vmem [#allocation15], 256
    %v2165 = vld [vmem:[%s2164] sm:$0xf]
    %v2166 = vld [vmem:[%s2164 + $0x4] sm:$0xf]
    %v2167 = vld [vmem:[%s2164 + $0x8] sm:$0xf]
    %v2168 = vld [vmem:[%s2164 + $0xc] sm:$0xf]
    %v2169 = vld [vmem:[%s2164 + $0x10] sm:$0xf]
    %v2170 = vld [vmem:[%s2164 + $0x14] sm:$0xf]
    %v2171 = vld [vmem:[%s2164 + $0x18] sm:$0xf]
    %v2172 = vld [vmem:[%s2164 + $0x1c] sm:$0xf]
    %v2173 = vld [vmem:[%s2164 + $0x20] sm:$0xf]
    %v2174 = vld [vmem:[%s2164 + $0x24] sm:$0xf]
    %v2175 = vld [vmem:[%s2164 + $0x28] sm:$0xf]
    %v2176 = vld [vmem:[%s2164 + $0x2c] sm:$0xf]
    %v2177 = vld [vmem:[%s2164 + $0x30] sm:$0xf]
    %v2178 = vld [vmem:[%s2164 + $0x34] sm:$0xf]
    %v2179 = vld [vmem:[%s2164 + $0x38] sm:$0xf]
    %v2180 = vld [vmem:[%s2164 + $0x3c] sm:$0xf]
    %v2181 = vld [vmem:[%s2164 + $0x40] sm:$0xf]
    %v2182 = vld [vmem:[%s2164 + $0x44] sm:$0xf]
    %v2183 = vld [vmem:[%s2164 + $0x48] sm:$0xf]
    %v2184 = vld [vmem:[%s2164 + $0x4c] sm:$0xf]
    %v2185 = vld [vmem:[%s2164 + $0x50] sm:$0xf]
    %v2186 = vld [vmem:[%s2164 + $0x54] sm:$0xf]
    %v2187 = vld [vmem:[%s2164 + $0x58] sm:$0xf]
    %v2188 = vld [vmem:[%s2164 + $0x5c] sm:$0xf]
    %v2189 = vld [vmem:[%s2164 + $0x60] sm:$0xf]
    %v2190 = vld [vmem:[%s2164 + $0x64] sm:$0xf]
    %v2191 = vld [vmem:[%s2164 + $0x68] sm:$0xf]
    %v2192 = vld [vmem:[%s2164 + $0x6c] sm:$0xf]
    %v2193 = vld [vmem:[%s2164 + $0x70] sm:$0xf]
    %v2194 = vld [vmem:[%s2164 + $0x74] sm:$0xf]
    %v2195 = vld [vmem:[%s2164 + $0x78] sm:$0xf]
    %v2196 = vld [vmem:[%s2164 + $0x7c] sm:$0xf]
    %v2197 = vld [vmem:[%s2164 + $0x80] sm:$0xf]
    %v2198 = vld [vmem:[%s2164 + $0x84] sm:$0xf]
    %v2199 = vld [vmem:[%s2164 + $0x88] sm:$0xf]
    %v2200 = vld [vmem:[%s2164 + $0x8c] sm:$0xf]
    %v2201 = vld [vmem:[%s2164 + $0x90] sm:$0xf]
    %v2202 = vld [vmem:[%s2164 + $0x94] sm:$0xf]
    %v2203 = vld [vmem:[%s2164 + $0x98] sm:$0xf]
    %v2204 = vld [vmem:[%s2164 + $0x9c] sm:$0xf]
    %v2205 = vld [vmem:[%s2164 + $0xa0] sm:$0xf]
    %v2206 = vld [vmem:[%s2164 + $0xa4] sm:$0xf]
    %v2207 = vld [vmem:[%s2164 + $0xa8] sm:$0xf]
    %v2208 = vld [vmem:[%s2164 + $0xac] sm:$0xf]
    %v2209 = vld [vmem:[%s2164 + $0xb0] sm:$0xf]
    %v2210 = vld [vmem:[%s2164 + $0xb4] sm:$0xf]
    %v2211 = vld [vmem:[%s2164 + $0xb8] sm:$0xf]
    %v2212 = vld [vmem:[%s2164 + $0xbc] sm:$0xf]
    %v2213 = vld [vmem:[%s2164 + $0xc0] sm:$0xf]
    %v2214 = vld [vmem:[%s2164 + $0xc4] sm:$0xf]
    %v2215 = vld [vmem:[%s2164 + $0xc8] sm:$0xf]
    %v2216 = vld [vmem:[%s2164 + $0xcc] sm:$0xf]
    %v2217 = vld [vmem:[%s2164 + $0xd0] sm:$0xf]
    %v2218 = vld [vmem:[%s2164 + $0xd4] sm:$0xf]
    %v2219 = vld [vmem:[%s2164 + $0xd8] sm:$0xf]
    %v2220 = vld [vmem:[%s2164 + $0xdc] sm:$0xf]
    %v2221 = vld [vmem:[%s2164 + $0xe0] sm:$0xf]
    %v2222 = vld [vmem:[%s2164 + $0xe4] sm:$0xf]
    %v2223 = vld [vmem:[%s2164 + $0xe8] sm:$0xf]
    %v2224 = vld [vmem:[%s2164 + $0xec] sm:$0xf]
    %v2225 = vld [vmem:[%s2164 + $0xf0] sm:$0xf]
    %v2226 = vld [vmem:[%s2164 + $0xf4] sm:$0xf]
    %v2227 = vld [vmem:[%s2164 + $0xf8] sm:$0xf]
    %v2228 = vld [vmem:[%s2164 + $0xfc] sm:$0xf]
    %s2229 = scalar_lea.vmem [#allocation17], 48
    %v2230 = vld [vmem:[%s2229] sm:$0xff]
    %v2231 = vld [vmem:[%s2229 + $0x8] sm:$0xff]
    %v2232 = vld [vmem:[%s2229 + $0x10] sm:$0xff]
    %v2233 = vld [vmem:[%s2229 + $0x18] sm:$0xff]
    %v2234 = vld [vmem:[%s2229 + $0x20] sm:$0xff]
    %v2235 = vld [vmem:[%s2229 + $0x28] sm:$0xff]
    %2236 = vadd.xlane.f32.xlu0 %v2064
    %v2237 = vpop.xlane.xlu0 %2236
    %v2238 = vmul.f32 %v2237, %v335
    %v2239 = vsub.f32 %v2064, %v2238
    %v2240 = vmul.f32 %v2239, %v2239
    %2241 = vadd.xlane.f32.xlu0 %v2240
    %v2242 = vpop.xlane.xlu0 %2241
    %v2243 = vmul.f32 %v2242, %v335
    %v2244 = vadd.f32 %v2243, 1e-06
    %v2245 = vrsqrt.pop %v2244
    %v2246 = vmul.f32 %v2239, %v2245
    %v2247 = vlaneseq
    %v2248 = vshrl.u32 %v2247, 7
    %v2249 = vsub.s32 0, %v2248
    %v2250 = vrot.slane %v2230, %v2249
    %v2251 = vmul.f32 %v2246, %v2250
    %v2252 = vlaneseq
    %v2253 = vshrl.u32 %v2252, 7
    %v2254 = vsub.s32 1, %v2253
    %v2255 = vrot.slane %v2230, %v2254
    %v2256 = vadd.f32 %v2251, %v2255
    %v2257 = vpack.c.bf16 %v2256, %v2256
    %v2258 = vlaneseq
    %v2259 = vshrl.u32 %v2258, 7
    %v2260 = vsub.s32 2, %v2259
    %v2261 = vrot.slane %v2230, %v2260
    %v2262 = vlaneseq
    %v2263 = vshrl.u32 %v2262, 7
    %v2264 = vsub.s32 2, %v2263
    %v2265 = vrot.slane %v2231, %v2264
    %v2266 = vlaneseq
    %v2267 = vshrl.u32 %v2266, 7
    %v2268 = vsub.s32 2, %v2267
    %v2269 = vrot.slane %v2232, %v2268
    %v2270 = vlaneseq
    %v2271 = vshrl.u32 %v2270, 7
    %v2272 = vsub.s32 2, %v2271
    %v2273 = vrot.slane %v2233, %v2272
    %v2274 = vlaneseq
    %v2275 = vshrl.u32 %v2274, 7
    %v2276 = vsub.s32 2, %v2275
    %v2277 = vrot.slane %v2234, %v2276
    %v2278 = vlaneseq
    %v2279 = vshrl.u32 %v2278, 7
    %v2280 = vsub.s32 2, %v2279
    %v2281 = vrot.slane %v2235, %v2280
    %v2330 = vunpack.c.l.b16 %v2066
    %v2331 = vunpack.c.h.b16 %v2066
    %v2332 = vunpack.c.l.b16 %v2067
    %v2333 = vunpack.c.h.b16 %v2067
    %v2334 = vunpack.c.l.b16 %v2068
    %v2335 = vunpack.c.h.b16 %v2068
    %v2336 = vunpack.c.l.b16 %v2069
    %v2337 = vunpack.c.h.b16 %v2069
    %v2338 = vunpack.c.l.b16 %v2070
    %v2339 = vunpack.c.h.b16 %v2070
    %v2340 = vunpack.c.l.b16 %v2071
    %v2341 = vunpack.c.h.b16 %v2071
    %v2342 = vunpack.c.l.b16 %v2072
    %v2343 = vunpack.c.h.b16 %v2072
    %v2344 = vunpack.c.l.b16 %v2073
    %v2345 = vunpack.c.h.b16 %v2073
    %v2346 = vunpack.c.l.b16 %v2074
    %v2347 = vunpack.c.h.b16 %v2074
    %v2348 = vunpack.c.l.b16 %v2075
    %v2349 = vunpack.c.h.b16 %v2075
    %v2350 = vunpack.c.l.b16 %v2076
    %v2351 = vunpack.c.h.b16 %v2076
    %v2352 = vunpack.c.l.b16 %v2077
    %v2353 = vunpack.c.h.b16 %v2077
    %v2354 = vunpack.c.l.b16 %v2078
    %v2355 = vunpack.c.h.b16 %v2078
    %v2356 = vunpack.c.l.b16 %v2079
    %v2357 = vunpack.c.h.b16 %v2079
    %v2358 = vunpack.c.l.b16 %v2080
    %v2359 = vunpack.c.h.b16 %v2080
    %v2360 = vunpack.c.l.b16 %v2081
    %v2361 = vunpack.c.h.b16 %v2081
    %v2362 = vunpack.c.l.b16 %v2082
    %v2363 = vunpack.c.h.b16 %v2082
    %v2364 = vunpack.c.l.b16 %v2083
    %v2365 = vunpack.c.h.b16 %v2083
    %v2366 = vunpack.c.l.b16 %v2084
    %v2367 = vunpack.c.h.b16 %v2084
    %v2368 = vunpack.c.l.b16 %v2085
    %v2369 = vunpack.c.h.b16 %v2085
    %v2370 = vunpack.c.l.b16 %v2086
    %v2371 = vunpack.c.h.b16 %v2086
    %v2372 = vunpack.c.l.b16 %v2087
    %v2373 = vunpack.c.h.b16 %v2087
    %v2374 = vunpack.c.l.b16 %v2088
    %v2375 = vunpack.c.h.b16 %v2088
    %v2376 = vunpack.c.l.b16 %v2089
    %v2377 = vunpack.c.h.b16 %v2089
    %v2378 = vunpack.c.l.b16 %v2090
    %v2379 = vunpack.c.h.b16 %v2090
    %v2380 = vunpack.c.l.b16 %v2091
    %v2381 = vunpack.c.h.b16 %v2091
    %v2382 = vunpack.c.l.b16 %v2092
    %v2383 = vunpack.c.h.b16 %v2092
    %v2384 = vunpack.c.l.b16 %v2093
    %v2385 = vunpack.c.h.b16 %v2093
    %v2386 = vunpack.c.l.b16 %v2094
    %v2387 = vunpack.c.h.b16 %v2094
    %v2388 = vunpack.c.l.b16 %v2095
    %v2389 = vunpack.c.h.b16 %v2095
    %v2390 = vunpack.c.l.b16 %v2096
    %v2391 = vunpack.c.h.b16 %v2096
    %v2392 = vunpack.c.l.b16 %v2097
    %v2393 = vunpack.c.h.b16 %v2097
    %v2394 = vunpack.c.l.b16 %v2098
    %v2395 = vunpack.c.h.b16 %v2098
    %v2396 = vunpack.c.l.b16 %v2099
    %v2397 = vunpack.c.h.b16 %v2099
    %v2398 = vunpack.c.l.b16 %v2100
    %v2399 = vunpack.c.h.b16 %v2100
    %v2400 = vunpack.c.l.b16 %v2101
    %v2401 = vunpack.c.h.b16 %v2101
    %v2402 = vunpack.c.l.b16 %v2102
    %v2403 = vunpack.c.h.b16 %v2102
    %v2404 = vunpack.c.l.b16 %v2103
    %v2405 = vunpack.c.h.b16 %v2103
    %v2406 = vunpack.c.l.b16 %v2104
    %v2407 = vunpack.c.h.b16 %v2104
    %v2408 = vunpack.c.l.b16 %v2105
    %v2409 = vunpack.c.h.b16 %v2105
    %v2410 = vunpack.c.l.b16 %v2106
    %v2411 = vunpack.c.h.b16 %v2106
    %v2412 = vunpack.c.l.b16 %v2107
    %v2413 = vunpack.c.h.b16 %v2107
    %v2414 = vunpack.c.l.b16 %v2108
    %v2415 = vunpack.c.h.b16 %v2108
    %v2416 = vunpack.c.l.b16 %v2109
    %v2417 = vunpack.c.h.b16 %v2109
    %v2418 = vunpack.c.l.b16 %v2110
    %v2419 = vunpack.c.h.b16 %v2110
    %v2420 = vunpack.c.l.b16 %v2111
    %v2421 = vunpack.c.h.b16 %v2111
    %v2422 = vunpack.c.l.b16 %v2112
    %v2423 = vunpack.c.h.b16 %v2112
    %v2424 = vunpack.c.l.b16 %v2113
    %v2425 = vunpack.c.h.b16 %v2113
    %v2426 = vpack.c.b16 %v2336, %v2330
    %v2427 = vpack.c.b16 %v2337, %v2331
    %v2428 = vpack.c.b16 %v2338, %v2332
    %v2429 = vpack.c.b16 %v2339, %v2333
    %v2430 = vpack.c.b16 %v2340, %v2334
    %v2431 = vpack.c.b16 %v2341, %v2335
    %v2432 = vpack.c.b16 %v2348, %v2342
    %v2433 = vpack.c.b16 %v2349, %v2343
    %v2434 = vpack.c.b16 %v2350, %v2344
    %v2435 = vpack.c.b16 %v2351, %v2345
    %v2436 = vpack.c.b16 %v2352, %v2346
    %v2437 = vpack.c.b16 %v2353, %v2347
    %v2438 = vpack.c.b16 %v2360, %v2354
    %v2439 = vpack.c.b16 %v2361, %v2355
    %v2440 = vpack.c.b16 %v2362, %v2356
    %v2441 = vpack.c.b16 %v2363, %v2357
    %v2442 = vpack.c.b16 %v2364, %v2358
    %v2443 = vpack.c.b16 %v2365, %v2359
    %v2444 = vpack.c.b16 %v2372, %v2366
    %v2445 = vpack.c.b16 %v2373, %v2367
    %v2446 = vpack.c.b16 %v2374, %v2368
    %v2447 = vpack.c.b16 %v2375, %v2369
    %v2448 = vpack.c.b16 %v2376, %v2370
    %v2449 = vpack.c.b16 %v2377, %v2371
    %v2450 = vpack.c.b16 %v2384, %v2378
    %v2451 = vpack.c.b16 %v2385, %v2379
    %v2452 = vpack.c.b16 %v2386, %v2380
    %v2453 = vpack.c.b16 %v2387, %v2381
    %v2454 = vpack.c.b16 %v2388, %v2382
    %v2455 = vpack.c.b16 %v2389, %v2383
    %v2456 = vpack.c.b16 %v2396, %v2390
    %v2457 = vpack.c.b16 %v2397, %v2391
    %v2458 = vpack.c.b16 %v2398, %v2392
    %v2459 = vpack.c.b16 %v2399, %v2393
    %v2460 = vpack.c.b16 %v2400, %v2394
    %v2461 = vpack.c.b16 %v2401, %v2395
    %v2462 = vpack.c.b16 %v2408, %v2402
    %v2463 = vpack.c.b16 %v2409, %v2403
    %v2464 = vpack.c.b16 %v2410, %v2404
    %v2465 = vpack.c.b16 %v2411, %v2405
    %v2466 = vpack.c.b16 %v2412, %v2406
    %v2467 = vpack.c.b16 %v2413, %v2407
    %v2468 = vpack.c.b16 %v2420, %v2414
    %v2469 = vpack.c.b16 %v2421, %v2415
    %v2470 = vpack.c.b16 %v2422, %v2416
    %v2471 = vpack.c.b16 %v2423, %v2417
    %v2472 = vpack.c.b16 %v2424, %v2418
    %v2473 = vpack.c.b16 %v2425, %v2419
    %2522 = vmatprep.subr.bf16.mxu0 %v2427
    %2523 = vmatpush1.bf16.msra.mxu0 %v2426
    %2524 = vmatprep.subr.bf16.mxu0 %v2433
    %2525 = vmatpush1.bf16.msra.mxu0 %v2432
    %2526 = vmatprep.subr.bf16.mxu0 %v2439
    %2527 = vmatpush1.bf16.msra.mxu0 %v2438
    %2528 = vmatprep.subr.bf16.mxu0 %v2445
    %2529 = vmatpush1.bf16.msra.mxu0 %v2444
    %2530 = vmatprep.subr.bf16.mxu0 %v2451
    %2531 = vmatpush1.bf16.msra.mxu0 %v2450
    %2532 = vmatprep.subr.bf16.mxu0 %v2457
    %2533 = vmatpush1.bf16.msra.mxu0 %v2456
    %2534 = vmatprep.subr.bf16.mxu0 %v2463
    %2535 = vmatpush1.bf16.msra.mxu0 %v2462
    %2536 = vmatprep.subr.bf16.mxu0 %v2469
    %2537 = vmatpush1.bf16.msra.mxu0 %v2468
    %2538 = vmatprep.subr.bf16.mxu0 0
    %2539 = vmatpush1.bf16.msra.mxu0 0
    %2540 = vmatprep.subr.bf16.mxu0 0
    %2541 = vmatpush1.bf16.msra.mxu0 0
    %2542 = vmatprep.subr.bf16.mxu0 0
    %2543 = vmatpush1.bf16.msra.mxu0 0
    %2544 = vmatprep.subr.bf16.mxu0 0
    %2545 = vmatpush1.bf16.msra.mxu0 0
    %2546 = vmatprep.subr.bf16.mxu0 0
    %2547 = vmatpush1.bf16.msra.mxu0 0
    %2548 = vmatprep.subr.bf16.mxu0 0
    %2549 = vmatpush1.bf16.msra.mxu0 0
    %2550 = vmatprep.subr.bf16.mxu0 0
    %2551 = vmatpush1.bf16.msra.mxu0 0
    %2552 = vmatprep.subr.bf16.mxu0 0
    %2553 = vmatpush1.bf16.msra.mxu0 0
    %2554 = vmatprep.mubr.bf16.mxu0 0
    %2555 = vmatmul.mubr.bf16.gmra.mrb[0].mxu0 %v2257
    %v2556 = vpop.f32.mrb[0].mxu0
    %v2557 = vadd.f32 %v2261, %v2556
    %v2558 = vpop.f32.mrb[0].mxu0
    %v2559 = vadd.f32 %v2265, %v2558
    %v2560 = vpop.f32.mrb[0].mxu0
    %v2561 = vpop.f32.mrb[0].mxu0
    %2562 = vdwg.mxu0
    %2563 = vmatprep.subr.bf16.mxu0 %v2429
    %2564 = vmatpush1.bf16.msra.mxu0 %v2428
    %2565 = vmatprep.subr.bf16.mxu0 %v2435
    %2566 = vmatpush1.bf16.msra.mxu0 %v2434
    %2567 = vmatprep.subr.bf16.mxu0 %v2441
    %2568 = vmatpush1.bf16.msra.mxu0 %v2440
    %2569 = vmatprep.subr.bf16.mxu0 %v2447
    %2570 = vmatpush1.bf16.msra.mxu0 %v2446
    %2571 = vmatprep.subr.bf16.mxu0 %v2453
    %2572 = vmatpush1.bf16.msra.mxu0 %v2452
    %2573 = vmatprep.subr.bf16.mxu0 %v2459
    %2574 = vmatpush1.bf16.msra.mxu0 %v2458
    %2575 = vmatprep.subr.bf16.mxu0 %v2465
    %2576 = vmatpush1.bf16.msra.mxu0 %v2464
    %2577 = vmatprep.subr.bf16.mxu0 %v2471
    %2578 = vmatpush1.bf16.msra.mxu0 %v2470
    %2579 = vmatprep.subr.bf16.mxu0 0
    %2580 = vmatpush1.bf16.msra.mxu0 0
    %2581 = vmatprep.subr.bf16.mxu0 0
    %2582 = vmatpush1.bf16.msra.mxu0 0
    %2583 = vmatprep.subr.bf16.mxu0 0
    %2584 = vmatpush1.bf16.msra.mxu0 0
    %2585 = vmatprep.subr.bf16.mxu0 0
    %2586 = vmatpush1.bf16.msra.mxu0 0
    %2587 = vmatprep.subr.bf16.mxu0 0
    %2588 = vmatpush1.bf16.msra.mxu0 0
    %2589 = vmatprep.subr.bf16.mxu0 0
    %2590 = vmatpush1.bf16.msra.mxu0 0
    %2591 = vmatprep.subr.bf16.mxu0 0
    %2592 = vmatpush1.bf16.msra.mxu0 0
    %2593 = vmatprep.subr.bf16.mxu0 0
    %2594 = vmatpush1.bf16.msra.mxu0 0
    %2595 = vmatprep.mubr.bf16.mxu0 0
    %2596 = vmatmul.mubr.bf16.gmra.mrb[0].mxu0 %v2257
    %v2597 = vpop.f32.mrb[0].mxu0
    %v2598 = vadd.f32 %v2269, %v2597
    %v2599 = vpop.f32.mrb[0].mxu0
    %v2600 = vadd.f32 %v2273, %v2599
    %v2601 = vpop.f32.mrb[0].mxu0
    %v2602 = vpop.f32.mrb[0].mxu0
    %2603 = vdwg.mxu0
    %2604 = vmatprep.subr.bf16.mxu0 %v2431
    %2605 = vmatpush1.bf16.msra.mxu0 %v2430
    %2606 = vmatprep.subr.bf16.mxu0 %v2437
    %2607 = vmatpush1.bf16.msra.mxu0 %v2436
    %2608 = vmatprep.subr.bf16.mxu0 %v2443
    %2609 = vmatpush1.bf16.msra.mxu0 %v2442
    %2610 = vmatprep.subr.bf16.mxu0 %v2449
    %2611 = vmatpush1.bf16.msra.mxu0 %v2448
    %2612 = vmatprep.subr.bf16.mxu0 %v2455
    %2613 = vmatpush1.bf16.msra.mxu0 %v2454
    %2614 = vmatprep.subr.bf16.mxu0 %v2461
    %2615 = vmatpush1.bf16.msra.mxu0 %v2460
    %2616 = vmatprep.subr.bf16.mxu0 %v2467
    %2617 = vmatpush1.bf16.msra.mxu0 %v2466
    %2618 = vmatprep.subr.bf16.mxu0 %v2473
    %2619 = vmatpush1.bf16.msra.mxu0 %v2472
    %2620 = vmatprep.subr.bf16.mxu0 0
    %2621 = vmatpush1.bf16.msra.mxu0 0
    %2622 = vmatprep.subr.bf16.mxu0 0
    %2623 = vmatpush1.bf16.msra.mxu0 0
    %2624 = vmatprep.subr.bf16.mxu0 0
    %2625 = vmatpush1.bf16.msra.mxu0 0
    %2626 = vmatprep.subr.bf16.mxu0 0
    %2627 = vmatpush1.bf16.msra.mxu0 0
    %2628 = vmatprep.subr.bf16.mxu0 0
    %2629 = vmatpush1.bf16.msra.mxu0 0
    %2630 = vmatprep.subr.bf16.mxu0 0
    %2631 = vmatpush1.bf16.msra.mxu0 0
    %2632 = vmatprep.subr.bf16.mxu0 0
    %2633 = vmatpush1.bf16.msra.mxu0 0
    %2634 = vmatprep.subr.bf16.mxu0 0
    %2635 = vmatpush1.bf16.msra.mxu0 0
    %2636 = vmatprep.mubr.bf16.mxu0 0
    %2637 = vmatmul.mubr.bf16.gmra.mrb[0].mxu0 %v2257
    %v2638 = vpop.f32.mrb[0].mxu0
    %v2639 = vadd.f32 %v2277, %v2638
    %v2640 = vpop.f32.mrb[0].mxu0
    %v2641 = vadd.f32 %v2281, %v2640
    %v2642 = vpop.f32.mrb[0].mxu0
    %v2643 = vpop.f32.mrb[0].mxu0
    %2644 = vdwg.mxu0
    %v2645 = vpack.c.bf16 %v2557, %v2557
    %v2646 = vpack.c.bf16 %v2559, %v2559
    %2647 = vmatprep.subr.bf16.mxu0 0
    %2648 = vmatpush1.bf16.xpose.msra.mxu0 %v2646
    %2649 = vmatprep.subr.bf16.mxu0 0
    %2650 = vmatpush1.bf16.xpose.msra.mxu0 0
    %2651 = vmatprep.subr.bf16.mxu0 0
    %2652 = vmatpush1.bf16.xpose.msra.mxu0 0
    %2653 = vmatprep.subr.bf16.mxu0 0
    %2654 = vmatpush1.bf16.xpose.msra.mxu0 0
    %2655 = vmatprep.subr.bf16.mxu0 0
    %2656 = vmatpush1.bf16.xpose.msra.mxu0 0
    %2657 = vmatprep.subr.bf16.mxu0 0
    %2658 = vmatpush1.bf16.xpose.msra.mxu0 0
    %2659 = vmatprep.subr.bf16.mxu0 0
    %2660 = vmatpush1.bf16.xpose.msra.mxu0 0
    %2661 = vmatprep.subr.bf16.mxu0 0
    %2662 = vmatpush1.bf16.xpose.msra.mxu0 0
    %2663 = vmatprep.subr.bf16.mxu0 0
    %2664 = vmatpush1.bf16.xpose.msra.mxu0 0
    %2665 = vmatprep.subr.bf16.mxu0 0
    %2666 = vmatpush1.bf16.xpose.msra.mxu0 0
    %2667 = vmatprep.subr.bf16.mxu0 0
    %2668 = vmatpush1.bf16.xpose.msra.mxu0 0
    %2669 = vmatprep.subr.bf16.mxu0 0
    %2670 = vmatpush1.bf16.xpose.msra.mxu0 0
    %2671 = vmatprep.subr.bf16.mxu0 0
    %2672 = vmatpush1.bf16.xpose.msra.mxu0 0
    %2673 = vmatprep.subr.bf16.mxu0 0
    %2674 = vmatpush1.bf16.xpose.msra.mxu0 0
    %2675 = vmatprep.subr.bf16.mxu0 0
    %2676 = vmatpush1.bf16.xpose.msra.mxu0 0
    %2677 = vmatprep.subr.bf16.mxu0 0
    %2678 = vmatpush1.bf16.xpose.msra.mxu0 0
    %2679 = vmatprep.mubr.bf16.mxu0 0
    %2680 = vmatmul.mubr.bf16.gmra.mrb[0].mxu0 %v2645
    %v2681 = vpop.f32.mrb[0].mxu0
    %v2682 = vadd.f32 %v560, %v2681
    %v2683 = vpop.f32.mrb[0].mxu0
    %v2684 = vpop.f32.mrb[0].mxu0
    %v2685 = vpop.f32.mrb[0].mxu0
    %2686 = vdwg.mxu0
    %v2687 = vsel %vm1210, %v2682, -inf
    %2688 = vmax.xlane.f32.xlu0 %v2687
    %v2689 = vpop.xlane.xlu0 %2688
    %v2690 = vsub.f32 %v2682, %v2689
    %v2691 = vmul.f32 %v2690, 1.442695
    %v2692 = vpow.pop %v2691
    %v2693 = vsel %vm1210, %v2692, 0.0
    %2694 = vadd.xlane.f32.xlu0 %v2693
    %v2695 = vpop.xlane.xlu0 %2694
    %v2696 = vrcp.pop %v2695
    %v2697 = vmul.f32 %v2692, %v2696
    %v2698 = vpack.c.bf16 %v2697, %v2697
    %v2699 = vpack.c.bf16 %v2598, %v2598
    %v2700 = vpack.c.bf16 %v2600, %v2600
    %v2701 = vpack.c.bf16 %v2639, %v2639
    %2702 = vmatprep.subr.bf16.mxu0 0
    %2703 = vmatpush1.bf16.xpose.msra.mxu0 %v2701
    %2704 = vmatprep.subr.bf16.mxu0 0
    %2705 = vmatpush1.bf16.xpose.msra.mxu0 0
    %2706 = vmatprep.subr.bf16.mxu0 0
    %2707 = vmatpush1.bf16.xpose.msra.mxu0 0
    %2708 = vmatprep.subr.bf16.mxu0 0
    %2709 = vmatpush1.bf16.xpose.msra.mxu0 0
    %2710 = vmatprep.subr.bf16.mxu0 0
    %2711 = vmatpush1.bf16.xpose.msra.mxu0 0
    %2712 = vmatprep.subr.bf16.mxu0 0
    %2713 = vmatpush1.bf16.xpose.msra.mxu0 0
    %2714 = vmatprep.subr.bf16.mxu0 0
    %2715 = vmatpush1.bf16.xpose.msra.mxu0 0
    %2716 = vmatprep.subr.bf16.mxu0 0
    %2717 = vmatpush1.bf16.xpose.msra.mxu0 0
    %2718 = vmatprep.subr.bf16.mxu0 0
    %2719 = vmatpush1.bf16.xpose.msra.mxu0 0
    %2720 = vmatprep.subr.bf16.mxu0 0
    %2721 = vmatpush1.bf16.xpose.msra.mxu0 0
    %2722 = vmatprep.subr.bf16.mxu0 0
    %2723 = vmatpush1.bf16.xpose.msra.mxu0 0
    %2724 = vmatprep.subr.bf16.mxu0 0
    %2725 = vmatpush1.bf16.xpose.msra.mxu0 0
    %2726 = vmatprep.subr.bf16.mxu0 0
    %2727 = vmatpush1.bf16.xpose.msra.mxu0 0
    %2728 = vmatprep.subr.bf16.mxu0 0
    %2729 = vmatpush1.bf16.xpose.msra.mxu0 0
    %2730 = vmatprep.subr.bf16.mxu0 0
    %2731 = vmatpush1.bf16.xpose.msra.mxu0 0
    %2732 = vmatprep.subr.bf16.mxu0 0
    %2733 = vmatpush1.bf16.xpose.msra.mxu0 0
    %2734 = vmatprep.mubr.bf16.mxu0 0
    %2735 = vmatmul.mubr.bf16.gmra.mrb[0].mxu0 %v2700
    %v2736 = vpop.f32.mrb[0].mxu0
    %v2737 = vadd.f32 %v560, %v2736
    %v2738 = vpop.f32.mrb[0].mxu0
    %v2739 = vpop.f32.mrb[0].mxu0
    %v2740 = vpop.f32.mrb[0].mxu0
    %2741 = vdwg.mxu0
    %v2742 = vsel %vm1210, %v2737, -inf
    %2743 = vmax.xlane.f32.xlu0 %v2742
    %v2744 = vpop.xlane.xlu0 %2743
    %v2745 = vsub.f32 %v2737, %v2744
    %v2746 = vmul.f32 %v2745, 1.442695
    %v2747 = vpow.pop %v2746
    %v2748 = vsel %vm1210, %v2747, 0.0
    %2749 = vadd.xlane.f32.xlu0 %v2748
    %v2750 = vpop.xlane.xlu0 %2749
    %v2751 = vrcp.pop %v2750
    %v2752 = vmul.f32 %v2747, %v2751
    %v2753 = vpack.c.bf16 %v2752, %v2752
    %v2754 = vpack.c.bf16 %v2641, %v2641
    %v2756 = vsel %vm1210, %v2753, 0
    %v2759 = vsel %vm1282, %v2754, 0
    %2761 = vmatprep.subr.bf16.mxu0 0
    %2762 = vmatpush1.bf16.msra.mxu0 %v2759
    %2763 = vmatprep.subr.bf16.mxu0 0
    %2764 = vmatpush1.bf16.msra.mxu0 0
    %2765 = vmatprep.subr.bf16.mxu0 0
    %2766 = vmatpush1.bf16.msra.mxu0 0
    %2767 = vmatprep.subr.bf16.mxu0 0
    %2768 = vmatpush1.bf16.msra.mxu0 0
    %2769 = vmatprep.subr.bf16.mxu0 0
    %2770 = vmatpush1.bf16.msra.mxu0 0
    %2771 = vmatprep.subr.bf16.mxu0 0
    %2772 = vmatpush1.bf16.msra.mxu0 0
    %2773 = vmatprep.subr.bf16.mxu0 0
    %2774 = vmatpush1.bf16.msra.mxu0 0
    %2775 = vmatprep.subr.bf16.mxu0 0
    %2776 = vmatpush1.bf16.msra.mxu0 0
    %2777 = vmatprep.subr.bf16.mxu0 0
    %2778 = vmatpush1.bf16.msra.mxu0 0
    %2779 = vmatprep.subr.bf16.mxu0 0
    %2780 = vmatpush1.bf16.msra.mxu0 0
    %2781 = vmatprep.subr.bf16.mxu0 0
    %2782 = vmatpush1.bf16.msra.mxu0 0
    %2783 = vmatprep.subr.bf16.mxu0 0
    %2784 = vmatpush1.bf16.msra.mxu0 0
    %2785 = vmatprep.subr.bf16.mxu0 0
    %2786 = vmatpush1.bf16.msra.mxu0 0
    %2787 = vmatprep.subr.bf16.mxu0 0
    %2788 = vmatpush1.bf16.msra.mxu0 0
    %2789 = vmatprep.subr.bf16.mxu0 0
    %2790 = vmatpush1.bf16.msra.mxu0 0
    %2791 = vmatprep.subr.bf16.mxu0 0
    %2792 = vmatpush1.bf16.msra.mxu0 0
    %2793 = vmatprep.mubr.bf16.mxu0 0
    %2794 = vmatmul.mubr.bf16.gmra.mrb[0].mxu0 %v2756
    %v2795 = vpop.f32.mrb[0].mxu0
    %v2796 = vadd.f32 0.0, %v2795
    %v2797 = vpop.f32.mrb[0].mxu0
    %v2798 = vpop.f32.mrb[0].mxu0
    %v2799 = vpop.f32.mrb[0].mxu0
    %2800 = vdwg.mxu0
    %v2802 = vsel %vm1210, %v2698, 0
    %v2805 = vsel %vm1282, %v2699, 0
    %2807 = vmatprep.subr.bf16.mxu0 0
    %2808 = vmatpush1.bf16.msra.mxu0 %v2805
    %2809 = vmatprep.subr.bf16.mxu0 0
    %2810 = vmatpush1.bf16.msra.mxu0 0
    %2811 = vmatprep.subr.bf16.mxu0 0
    %2812 = vmatpush1.bf16.msra.mxu0 0
    %2813 = vmatprep.subr.bf16.mxu0 0
    %2814 = vmatpush1.bf16.msra.mxu0 0
    %2815 = vmatprep.subr.bf16.mxu0 0
    %2816 = vmatpush1.bf16.msra.mxu0 0
    %2817 = vmatprep.subr.bf16.mxu0 0
    %2818 = vmatpush1.bf16.msra.mxu0 0
    %2819 = vmatprep.subr.bf16.mxu0 0
    %2820 = vmatpush1.bf16.msra.mxu0 0
    %2821 = vmatprep.subr.bf16.mxu0 0
    %2822 = vmatpush1.bf16.msra.mxu0 0
    %2823 = vmatprep.subr.bf16.mxu0 0
    %2824 = vmatpush1.bf16.msra.mxu0 0
    %2825 = vmatprep.subr.bf16.mxu0 0
    %2826 = vmatpush1.bf16.msra.mxu0 0
    %2827 = vmatprep.subr.bf16.mxu0 0
    %2828 = vmatpush1.bf16.msra.mxu0 0
    %2829 = vmatprep.subr.bf16.mxu0 0
    %2830 = vmatpush1.bf16.msra.mxu0 0
    %2831 = vmatprep.subr.bf16.mxu0 0
    %2832 = vmatpush1.bf16.msra.mxu0 0
    %2833 = vmatprep.subr.bf16.mxu0 0
    %2834 = vmatpush1.bf16.msra.mxu0 0
    %2835 = vmatprep.subr.bf16.mxu0 0
    %2836 = vmatpush1.bf16.msra.mxu0 0
    %2837 = vmatprep.subr.bf16.mxu0 0
    %2838 = vmatpush1.bf16.msra.mxu0 0
    %2839 = vmatprep.mubr.bf16.mxu0 0
    %2840 = vmatmul.mubr.bf16.gmra.mrb[0].mxu0 %v2802
    %v2841 = vpop.f32.mrb[0].mxu0
    %v2842 = vadd.f32 %v2796, %v2841
    %v2843 = vpop.f32.mrb[0].mxu0
    %v2844 = vpop.f32.mrb[0].mxu0
    %v2845 = vpop.f32.mrb[0].mxu0
    %2846 = vdwg.mxu0
    %v2847 = vpack.c.bf16 %v2842, %v2842
    %v2864 = vunpack.c.l.b16 %v2115
    %v2865 = vunpack.c.l.b16 %v2116
    %v2866 = vunpack.c.l.b16 %v2117
    %v2867 = vunpack.c.l.b16 %v2118
    %v2868 = vunpack.c.l.b16 %v2119
    %v2869 = vunpack.c.l.b16 %v2120
    %v2870 = vunpack.c.l.b16 %v2121
    %v2871 = vunpack.c.l.b16 %v2122
    %v2872 = vunpack.c.l.b16 %v2123
    %v2873 = vunpack.c.l.b16 %v2124
    %v2874 = vunpack.c.l.b16 %v2125
    %v2875 = vunpack.c.l.b16 %v2126
    %v2876 = vunpack.c.l.b16 %v2127
    %v2877 = vunpack.c.l.b16 %v2128
    %v2878 = vunpack.c.l.b16 %v2129
    %v2879 = vunpack.c.l.b16 %v2130
    %v2880 = vpack.c.b16 %v2865, %v2864
    %v2881 = vpack.c.b16 %v2867, %v2866
    %v2882 = vpack.c.b16 %v2869, %v2868
    %v2883 = vpack.c.b16 %v2871, %v2870
    %v2884 = vpack.c.b16 %v2873, %v2872
    %v2885 = vpack.c.b16 %v2875, %v2874
    %v2886 = vpack.c.b16 %v2877, %v2876
    %v2887 = vpack.c.b16 %v2879, %v2878
    %2896 = vmatprep.subr.bf16.mxu0 0
    %2897 = vmatpush1.bf16.msra.mxu0 %v2880
    %2898 = vmatprep.subr.bf16.mxu0 0
    %2899 = vmatpush1.bf16.msra.mxu0 %v2881
    %2900 = vmatprep.subr.bf16.mxu0 0
    %2901 = vmatpush1.bf16.msra.mxu0 %v2882
    %2902 = vmatprep.subr.bf16.mxu0 0
    %2903 = vmatpush1.bf16.msra.mxu0 %v2883
    %2904 = vmatprep.subr.bf16.mxu0 0
    %2905 = vmatpush1.bf16.msra.mxu0 %v2884
    %2906 = vmatprep.subr.bf16.mxu0 0
    %2907 = vmatpush1.bf16.msra.mxu0 %v2885
    %2908 = vmatprep.subr.bf16.mxu0 0
    %2909 = vmatpush1.bf16.msra.mxu0 %v2886
    %2910 = vmatprep.subr.bf16.mxu0 0
    %2911 = vmatpush1.bf16.msra.mxu0 %v2887
    %2912 = vmatprep.subr.bf16.mxu0 0
    %2913 = vmatpush1.bf16.msra.mxu0 0
    %2914 = vmatprep.subr.bf16.mxu0 0
    %2915 = vmatpush1.bf16.msra.mxu0 0
    %2916 = vmatprep.subr.bf16.mxu0 0
    %2917 = vmatpush1.bf16.msra.mxu0 0
    %2918 = vmatprep.subr.bf16.mxu0 0
    %2919 = vmatpush1.bf16.msra.mxu0 0
    %2920 = vmatprep.subr.bf16.mxu0 0
    %2921 = vmatpush1.bf16.msra.mxu0 0
    %2922 = vmatprep.subr.bf16.mxu0 0
    %2923 = vmatpush1.bf16.msra.mxu0 0
    %2924 = vmatprep.subr.bf16.mxu0 0
    %2925 = vmatpush1.bf16.msra.mxu0 0
    %2926 = vmatprep.subr.bf16.mxu0 0
    %2927 = vmatpush1.bf16.msra.mxu0 0
    %2928 = vmatprep.mubr.bf16.mxu0 0
    %2929 = vmatmul.mubr.bf16.gmra.mrb[0].mxu0 %v2847
    %v2930 = vpop.f32.mrb[0].mxu0
    %v2931 = vadd.f32 0.0, %v2930
    %v2932 = vpop.f32.mrb[0].mxu0
    %v2933 = vpop.f32.mrb[0].mxu0
    %v2934 = vpop.f32.mrb[0].mxu0
    %2935 = vdwg.mxu0
    %v2936 = vadd.f32 %v2064, %v2931
    %v2937 = vlaneseq
    %v2938 = vshrl.u32 %v2937, 7
    %v2939 = vsub.s32 3, %v2938
    %v2940 = vrot.slane %v2230, %v2939
    %v2941 = vadd.f32 %v2936, %v2940
    %2942 = vadd.xlane.f32.xlu0 %v2941
    %v2943 = vpop.xlane.xlu0 %2942
    %v2944 = vmul.f32 %v2943, %v335
    %v2945 = vsub.f32 %v2941, %v2944
    %v2946 = vmul.f32 %v2945, %v2945
    %2947 = vadd.xlane.f32.xlu0 %v2946
    %v2948 = vpop.xlane.xlu0 %2947
    %v2949 = vmul.f32 %v2948, %v335
    %v2950 = vadd.f32 %v2949, 1e-06
    %v2951 = vrsqrt.pop %v2950
    %v2952 = vmul.f32 %v2945, %v2951
    %v2953 = vlaneseq
    %v2954 = vshrl.u32 %v2953, 7
    %v2955 = vsub.s32 4, %v2954
    %v2956 = vrot.slane %v2230, %v2955
    %v2957 = vmul.f32 %v2952, %v2956
    %v2958 = vlaneseq
    %v2959 = vshrl.u32 %v2958, 7
    %v2960 = vsub.s32 5, %v2959
    %v2961 = vrot.slane %v2230, %v2960
    %v2962 = vadd.f32 %v2957, %v2961
    %v2963 = vpack.c.bf16 %v2962, %v2962
    %v2964 = vlaneseq
    %v2965 = vshrl.u32 %v2964, 7
    %v2966 = vsub.s32 6, %v2965
    %v2967 = vrot.slane %v2230, %v2966
    %v2968 = vlaneseq
    %v2969 = vshrl.u32 %v2968, 7
    %v2970 = vsub.s32 6, %v2969
    %v2971 = vrot.slane %v2231, %v2970
    %v2972 = vlaneseq
    %v2973 = vshrl.u32 %v2972, 7
    %v2974 = vsub.s32 6, %v2973
    %v2975 = vrot.slane %v2232, %v2974
    %v2976 = vlaneseq
    %v2977 = vshrl.u32 %v2976, 7
    %v2978 = vsub.s32 6, %v2977
    %v2979 = vrot.slane %v2233, %v2978
    %v3012 = vunpack.c.l.b16 %v2132
    %v3013 = vunpack.c.h.b16 %v2132
    %v3014 = vunpack.c.l.b16 %v2133
    %v3015 = vunpack.c.h.b16 %v2133
    %v3016 = vunpack.c.l.b16 %v2134
    %v3017 = vunpack.c.h.b16 %v2134
    %v3018 = vunpack.c.l.b16 %v2135
    %v3019 = vunpack.c.h.b16 %v2135
    %v3020 = vunpack.c.l.b16 %v2136
    %v3021 = vunpack.c.h.b16 %v2136
    %v3022 = vunpack.c.l.b16 %v2137
    %v3023 = vunpack.c.h.b16 %v2137
    %v3024 = vunpack.c.l.b16 %v2138
    %v3025 = vunpack.c.h.b16 %v2138
    %v3026 = vunpack.c.l.b16 %v2139
    %v3027 = vunpack.c.h.b16 %v2139
    %v3028 = vunpack.c.l.b16 %v2140
    %v3029 = vunpack.c.h.b16 %v2140
    %v3030 = vunpack.c.l.b16 %v2141
    %v3031 = vunpack.c.h.b16 %v2141
    %v3032 = vunpack.c.l.b16 %v2142
    %v3033 = vunpack.c.h.b16 %v2142
    %v3034 = vunpack.c.l.b16 %v2143
    %v3035 = vunpack.c.h.b16 %v2143
    %v3036 = vunpack.c.l.b16 %v2144
    %v3037 = vunpack.c.h.b16 %v2144
    %v3038 = vunpack.c.l.b16 %v2145
    %v3039 = vunpack.c.h.b16 %v2145
    %v3040 = vunpack.c.l.b16 %v2146
    %v3041 = vunpack.c.h.b16 %v2146
    %v3042 = vunpack.c.l.b16 %v2147
    %v3043 = vunpack.c.h.b16 %v2147
    %v3044 = vunpack.c.l.b16 %v2148
    %v3045 = vunpack.c.h.b16 %v2148
    %v3046 = vunpack.c.l.b16 %v2149
    %v3047 = vunpack.c.h.b16 %v2149
    %v3048 = vunpack.c.l.b16 %v2150
    %v3049 = vunpack.c.h.b16 %v2150
    %v3050 = vunpack.c.l.b16 %v2151
    %v3051 = vunpack.c.h.b16 %v2151
    %v3052 = vunpack.c.l.b16 %v2152
    %v3053 = vunpack.c.h.b16 %v2152
    %v3054 = vunpack.c.l.b16 %v2153
    %v3055 = vunpack.c.h.b16 %v2153
    %v3056 = vunpack.c.l.b16 %v2154
    %v3057 = vunpack.c.h.b16 %v2154
    %v3058 = vunpack.c.l.b16 %v2155
    %v3059 = vunpack.c.h.b16 %v2155
    %v3060 = vunpack.c.l.b16 %v2156
    %v3061 = vunpack.c.h.b16 %v2156
    %v3062 = vunpack.c.l.b16 %v2157
    %v3063 = vunpack.c.h.b16 %v2157
    %v3064 = vunpack.c.l.b16 %v2158
    %v3065 = vunpack.c.h.b16 %v2158
    %v3066 = vunpack.c.l.b16 %v2159
    %v3067 = vunpack.c.h.b16 %v2159
    %v3068 = vunpack.c.l.b16 %v2160
    %v3069 = vunpack.c.h.b16 %v2160
    %v3070 = vunpack.c.l.b16 %v2161
    %v3071 = vunpack.c.h.b16 %v2161
    %v3072 = vunpack.c.l.b16 %v2162
    %v3073 = vunpack.c.h.b16 %v2162
    %v3074 = vunpack.c.l.b16 %v2163
    %v3075 = vunpack.c.h.b16 %v2163
    %v3076 = vpack.c.b16 %v3016, %v3012
    %v3077 = vpack.c.b16 %v3017, %v3013
    %v3078 = vpack.c.b16 %v3018, %v3014
    %v3079 = vpack.c.b16 %v3019, %v3015
    %v3080 = vpack.c.b16 %v3024, %v3020
    %v3081 = vpack.c.b16 %v3025, %v3021
    %v3082 = vpack.c.b16 %v3026, %v3022
    %v3083 = vpack.c.b16 %v3027, %v3023
    %v3084 = vpack.c.b16 %v3032, %v3028
    %v3085 = vpack.c.b16 %v3033, %v3029
    %v3086 = vpack.c.b16 %v3034, %v3030
    %v3087 = vpack.c.b16 %v3035, %v3031
    %v3088 = vpack.c.b16 %v3040, %v3036
    %v3089 = vpack.c.b16 %v3041, %v3037
    %v3090 = vpack.c.b16 %v3042, %v3038
    %v3091 = vpack.c.b16 %v3043, %v3039
    %v3092 = vpack.c.b16 %v3048, %v3044
    %v3093 = vpack.c.b16 %v3049, %v3045
    %v3094 = vpack.c.b16 %v3050, %v3046
    %v3095 = vpack.c.b16 %v3051, %v3047
    %v3096 = vpack.c.b16 %v3056, %v3052
    %v3097 = vpack.c.b16 %v3057, %v3053
    %v3098 = vpack.c.b16 %v3058, %v3054
    %v3099 = vpack.c.b16 %v3059, %v3055
    %v3100 = vpack.c.b16 %v3064, %v3060
    %v3101 = vpack.c.b16 %v3065, %v3061
    %v3102 = vpack.c.b16 %v3066, %v3062
    %v3103 = vpack.c.b16 %v3067, %v3063
    %v3104 = vpack.c.b16 %v3072, %v3068
    %v3105 = vpack.c.b16 %v3073, %v3069
    %v3106 = vpack.c.b16 %v3074, %v3070
    %v3107 = vpack.c.b16 %v3075, %v3071
    %3140 = vmatprep.subr.bf16.mxu0 %v3077
    %3141 = vmatpush1.bf16.msra.mxu0 %v3076
    %3142 = vmatprep.subr.bf16.mxu0 %v3081
    %3143 = vmatpush1.bf16.msra.mxu0 %v3080
    %3144 = vmatprep.subr.bf16.mxu0 %v3085
    %3145 = vmatpush1.bf16.msra.mxu0 %v3084
    %3146 = vmatprep.subr.bf16.mxu0 %v3089
    %3147 = vmatpush1.bf16.msra.mxu0 %v3088
    %3148 = vmatprep.subr.bf16.mxu0 %v3093
    %3149 = vmatpush1.bf16.msra.mxu0 %v3092
    %3150 = vmatprep.subr.bf16.mxu0 %v3097
    %3151 = vmatpush1.bf16.msra.mxu0 %v3096
    %3152 = vmatprep.subr.bf16.mxu0 %v3101
    %3153 = vmatpush1.bf16.msra.mxu0 %v3100
    %3154 = vmatprep.subr.bf16.mxu0 %v3105
    %3155 = vmatpush1.bf16.msra.mxu0 %v3104
    %3156 = vmatprep.subr.bf16.mxu0 0
    %3157 = vmatpush1.bf16.msra.mxu0 0
    %3158 = vmatprep.subr.bf16.mxu0 0
    %3159 = vmatpush1.bf16.msra.mxu0 0
    %3160 = vmatprep.subr.bf16.mxu0 0
    %3161 = vmatpush1.bf16.msra.mxu0 0
    %3162 = vmatprep.subr.bf16.mxu0 0
    %3163 = vmatpush1.bf16.msra.mxu0 0
    %3164 = vmatprep.subr.bf16.mxu0 0
    %3165 = vmatpush1.bf16.msra.mxu0 0
    %3166 = vmatprep.subr.bf16.mxu0 0
    %3167 = vmatpush1.bf16.msra.mxu0 0
    %3168 = vmatprep.subr.bf16.mxu0 0
    %3169 = vmatpush1.bf16.msra.mxu0 0
    %3170 = vmatprep.subr.bf16.mxu0 0
    %3171 = vmatpush1.bf16.msra.mxu0 0
    %3172 = vmatprep.mubr.bf16.mxu0 0
    %3173 = vmatmul.mubr.bf16.gmra.mrb[0].mxu0 %v2963
    %v3174 = vpop.f32.mrb[0].mxu0
    %v3175 = vadd.f32 %v2967, %v3174
    %v3176 = vpop.f32.mrb[0].mxu0
    %v3177 = vadd.f32 %v2971, %v3176
    %v3178 = vpop.f32.mrb[0].mxu0
    %v3179 = vpop.f32.mrb[0].mxu0
    %3180 = vdwg.mxu0
    %3181 = vmatprep.subr.bf16.mxu0 %v3079
    %3182 = vmatpush1.bf16.msra.mxu0 %v3078
    %3183 = vmatprep.subr.bf16.mxu0 %v3083
    %3184 = vmatpush1.bf16.msra.mxu0 %v3082
    %3185 = vmatprep.subr.bf16.mxu0 %v3087
    %3186 = vmatpush1.bf16.msra.mxu0 %v3086
    %3187 = vmatprep.subr.bf16.mxu0 %v3091
    %3188 = vmatpush1.bf16.msra.mxu0 %v3090
    %3189 = vmatprep.subr.bf16.mxu0 %v3095
    %3190 = vmatpush1.bf16.msra.mxu0 %v3094
    %3191 = vmatprep.subr.bf16.mxu0 %v3099
    %3192 = vmatpush1.bf16.msra.mxu0 %v3098
    %3193 = vmatprep.subr.bf16.mxu0 %v3103
    %3194 = vmatpush1.bf16.msra.mxu0 %v3102
    %3195 = vmatprep.subr.bf16.mxu0 %v3107
    %3196 = vmatpush1.bf16.msra.mxu0 %v3106
    %3197 = vmatprep.subr.bf16.mxu0 0
    %3198 = vmatpush1.bf16.msra.mxu0 0
    %3199 = vmatprep.subr.bf16.mxu0 0
    %3200 = vmatpush1.bf16.msra.mxu0 0
    %3201 = vmatprep.subr.bf16.mxu0 0
    %3202 = vmatpush1.bf16.msra.mxu0 0
    %3203 = vmatprep.subr.bf16.mxu0 0
    %3204 = vmatpush1.bf16.msra.mxu0 0
    %3205 = vmatprep.subr.bf16.mxu0 0
    %3206 = vmatpush1.bf16.msra.mxu0 0
    %3207 = vmatprep.subr.bf16.mxu0 0
    %3208 = vmatpush1.bf16.msra.mxu0 0
    %3209 = vmatprep.subr.bf16.mxu0 0
    %3210 = vmatpush1.bf16.msra.mxu0 0
    %3211 = vmatprep.subr.bf16.mxu0 0
    %3212 = vmatpush1.bf16.msra.mxu0 0
    %3213 = vmatprep.mubr.bf16.mxu0 0
    %3214 = vmatmul.mubr.bf16.gmra.mrb[0].mxu0 %v2963
    %v3215 = vpop.f32.mrb[0].mxu0
    %v3216 = vadd.f32 %v2975, %v3215
    %v3217 = vpop.f32.mrb[0].mxu0
    %v3218 = vadd.f32 %v2979, %v3217
    %v3219 = vpop.f32.mrb[0].mxu0
    %v3220 = vpop.f32.mrb[0].mxu0
    %3221 = vdwg.mxu0
    %v3222 = vmul.f32 %v3175, %v3175
    %v3223 = vmul.f32 %v3177, %v3177
    %v3224 = vmul.f32 %v3216, %v3216
    %v3225 = vmul.f32 %v3218, %v3218
    %v3226 = vmul.f32 %v3175, %v3222
    %v3227 = vmul.f32 %v3177, %v3223
    %v3228 = vmul.f32 %v3216, %v3224
    %v3229 = vmul.f32 %v3218, %v3225
    %v3230 = vmul.f32 %v3226, 0.044715
    %v3231 = vmul.f32 %v3227, 0.044715
    %v3232 = vmul.f32 %v3228, 0.044715
    %v3233 = vmul.f32 %v3229, 0.044715
    %v3234 = vadd.f32 %v3175, %v3230
    %v3235 = vadd.f32 %v3177, %v3231
    %v3236 = vadd.f32 %v3216, %v3232
    %v3237 = vadd.f32 %v3218, %v3233
    %v3238 = vmul.f32 %v3234, 0.7978846
    %v3239 = vmul.f32 %v3235, 0.7978846
    %v3240 = vmul.f32 %v3236, 0.7978846
    %v3241 = vmul.f32 %v3237, 0.7978846
    %v3242 = vtanh.pop %v3238
    %v3243 = vtanh.pop %v3239
    %v3244 = vtanh.pop %v3240
    %v3245 = vtanh.pop %v3241
    %v3246 = vadd.f32 %v3242, 1.0
    %v3247 = vadd.f32 %v3243, 1.0
    %v3248 = vadd.f32 %v3244, 1.0
    %v3249 = vadd.f32 %v3245, 1.0
    %v3250 = vmul.f32 %v3246, 0.5
    %v3251 = vmul.f32 %v3247, 0.5
    %v3252 = vmul.f32 %v3248, 0.5
    %v3253 = vmul.f32 %v3249, 0.5
    %v3254 = vmul.f32 %v3175, %v3250
    %v3255 = vmul.f32 %v3177, %v3251
    %v3256 = vmul.f32 %v3216, %v3252
    %v3257 = vmul.f32 %v3218, %v3253
    %v3258 = vpack.c.bf16 %v3254, %v3254
    %v3259 = vpack.c.bf16 %v3255, %v3255
    %v3260 = vpack.c.bf16 %v3256, %v3256
    %v3261 = vpack.c.bf16 %v3257, %v3257
    %v3326 = vunpack.c.l.b16 %v2165
    %v3327 = vunpack.c.l.b16 %v2166
    %v3328 = vunpack.c.l.b16 %v2167
    %v3329 = vunpack.c.l.b16 %v2168
    %v3330 = vunpack.c.l.b16 %v2169
    %v3331 = vunpack.c.l.b16 %v2170
    %v3332 = vunpack.c.l.b16 %v2171
    %v3333 = vunpack.c.l.b16 %v2172
    %v3334 = vunpack.c.l.b16 %v2173
    %v3335 = vunpack.c.l.b16 %v2174
    %v3336 = vunpack.c.l.b16 %v2175
    %v3337 = vunpack.c.l.b16 %v2176
    %v3338 = vunpack.c.l.b16 %v2177
    %v3339 = vunpack.c.l.b16 %v2178
    %v3340 = vunpack.c.l.b16 %v2179
    %v3341 = vunpack.c.l.b16 %v2180
    %v3342 = vunpack.c.l.b16 %v2181
    %v3343 = vunpack.c.l.b16 %v2182
    %v3344 = vunpack.c.l.b16 %v2183
    %v3345 = vunpack.c.l.b16 %v2184
    %v3346 = vunpack.c.l.b16 %v2185
    %v3347 = vunpack.c.l.b16 %v2186
    %v3348 = vunpack.c.l.b16 %v2187
    %v3349 = vunpack.c.l.b16 %v2188
    %v3350 = vunpack.c.l.b16 %v2189
    %v3351 = vunpack.c.l.b16 %v2190
    %v3352 = vunpack.c.l.b16 %v2191
    %v3353 = vunpack.c.l.b16 %v2192
    %v3354 = vunpack.c.l.b16 %v2193
    %v3355 = vunpack.c.l.b16 %v2194
    %v3356 = vunpack.c.l.b16 %v2195
    %v3357 = vunpack.c.l.b16 %v2196
    %v3358 = vunpack.c.l.b16 %v2197
    %v3359 = vunpack.c.l.b16 %v2198
    %v3360 = vunpack.c.l.b16 %v2199
    %v3361 = vunpack.c.l.b16 %v2200
    %v3362 = vunpack.c.l.b16 %v2201
    %v3363 = vunpack.c.l.b16 %v2202
    %v3364 = vunpack.c.l.b16 %v2203
    %v3365 = vunpack.c.l.b16 %v2204
    %v3366 = vunpack.c.l.b16 %v2205
    %v3367 = vunpack.c.l.b16 %v2206
    %v3368 = vunpack.c.l.b16 %v2207
    %v3369 = vunpack.c.l.b16 %v2208
    %v3370 = vunpack.c.l.b16 %v2209
    %v3371 = vunpack.c.l.b16 %v2210
    %v3372 = vunpack.c.l.b16 %v2211
    %v3373 = vunpack.c.l.b16 %v2212
    %v3374 = vunpack.c.l.b16 %v2213
    %v3375 = vunpack.c.l.b16 %v2214
    %v3376 = vunpack.c.l.b16 %v2215
    %v3377 = vunpack.c.l.b16 %v2216
    %v3378 = vunpack.c.l.b16 %v2217
    %v3379 = vunpack.c.l.b16 %v2218
    %v3380 = vunpack.c.l.b16 %v2219
    %v3381 = vunpack.c.l.b16 %v2220
    %v3382 = vunpack.c.l.b16 %v2221
    %v3383 = vunpack.c.l.b16 %v2222
    %v3384 = vunpack.c.l.b16 %v2223
    %v3385 = vunpack.c.l.b16 %v2224
    %v3386 = vunpack.c.l.b16 %v2225
    %v3387 = vunpack.c.l.b16 %v2226
    %v3388 = vunpack.c.l.b16 %v2227
    %v3389 = vunpack.c.l.b16 %v2228
    %v3390 = vpack.c.b16 %v3327, %v3326
    %v3391 = vpack.c.b16 %v3329, %v3328
    %v3392 = vpack.c.b16 %v3331, %v3330
    %v3393 = vpack.c.b16 %v3333, %v3332
    %v3394 = vpack.c.b16 %v3335, %v3334
    %v3395 = vpack.c.b16 %v3337, %v3336
    %v3396 = vpack.c.b16 %v3339, %v3338
    %v3397 = vpack.c.b16 %v3341, %v3340
    %v3398 = vpack.c.b16 %v3343, %v3342
    %v3399 = vpack.c.b16 %v3345, %v3344
    %v3400 = vpack.c.b16 %v3347, %v3346
    %v3401 = vpack.c.b16 %v3349, %v3348
    %v3402 = vpack.c.b16 %v3351, %v3350
    %v3403 = vpack.c.b16 %v3353, %v3352
    %v3404 = vpack.c.b16 %v3355, %v3354
    %v3405 = vpack.c.b16 %v3357, %v3356
    %v3406 = vpack.c.b16 %v3359, %v3358
    %v3407 = vpack.c.b16 %v3361, %v3360
    %v3408 = vpack.c.b16 %v3363, %v3362
    %v3409 = vpack.c.b16 %v3365, %v3364
    %v3410 = vpack.c.b16 %v3367, %v3366
    %v3411 = vpack.c.b16 %v3369, %v3368
    %v3412 = vpack.c.b16 %v3371, %v3370
    %v3413 = vpack.c.b16 %v3373, %v3372
    %v3414 = vpack.c.b16 %v3375, %v3374
    %v3415 = vpack.c.b16 %v3377, %v3376
    %v3416 = vpack.c.b16 %v3379, %v3378
    %v3417 = vpack.c.b16 %v3381, %v3380
    %v3418 = vpack.c.b16 %v3383, %v3382
    %v3419 = vpack.c.b16 %v3385, %v3384
    %v3420 = vpack.c.b16 %v3387, %v3386
    %v3421 = vpack.c.b16 %v3389, %v3388
    %3454 = vmatprep.subr.bf16.mxu0 0
    %3455 = vmatpush1.bf16.msra.mxu0 %v3390
    %3456 = vmatprep.subr.bf16.mxu0 0
    %3457 = vmatpush1.bf16.msra.mxu0 %v3391
    %3458 = vmatprep.subr.bf16.mxu0 0
    %3459 = vmatpush1.bf16.msra.mxu0 %v3392
    %3460 = vmatprep.subr.bf16.mxu0 0
    %3461 = vmatpush1.bf16.msra.mxu0 %v3393
    %3462 = vmatprep.subr.bf16.mxu0 0
    %3463 = vmatpush1.bf16.msra.mxu0 %v3394
    %3464 = vmatprep.subr.bf16.mxu0 0
    %3465 = vmatpush1.bf16.msra.mxu0 %v3395
    %3466 = vmatprep.subr.bf16.mxu0 0
    %3467 = vmatpush1.bf16.msra.mxu0 %v3396
    %3468 = vmatprep.subr.bf16.mxu0 0
    %3469 = vmatpush1.bf16.msra.mxu0 %v3397
    %3470 = vmatprep.subr.bf16.mxu0 0
    %3471 = vmatpush1.bf16.msra.mxu0 %v3398
    %3472 = vmatprep.subr.bf16.mxu0 0
    %3473 = vmatpush1.bf16.msra.mxu0 %v3399
    %3474 = vmatprep.subr.bf16.mxu0 0
    %3475 = vmatpush1.bf16.msra.mxu0 %v3400
    %3476 = vmatprep.subr.bf16.mxu0 0
    %3477 = vmatpush1.bf16.msra.mxu0 %v3401
    %3478 = vmatprep.subr.bf16.mxu0 0
    %3479 = vmatpush1.bf16.msra.mxu0 %v3402
    %3480 = vmatprep.subr.bf16.mxu0 0
    %3481 = vmatpush1.bf16.msra.mxu0 %v3403
    %3482 = vmatprep.subr.bf16.mxu0 0
    %3483 = vmatpush1.bf16.msra.mxu0 %v3404
    %3484 = vmatprep.subr.bf16.mxu0 0
    %3485 = vmatpush1.bf16.msra.mxu0 %v3405
    %3486 = vmatprep.mubr.bf16.mxu0 %v3259
    %3487 = vmatmul.mubr.bf16.gmra.mrb[0].mxu0 %v3258
    %v3488 = vpop.f32.mrb[0].mxu0
    %v3489 = vadd.f32 0.0, %v3488
    %v3490 = vpop.f32.mrb[0].mxu0
    %v3491 = vpop.f32.mrb[0].mxu0
    %v3492 = vpop.f32.mrb[0].mxu0
    %3493 = vdwg.mxu0
    %3494 = vmatprep.subr.bf16.mxu0 0
    %3495 = vmatpush1.bf16.msra.mxu0 %v3406
    %3496 = vmatprep.subr.bf16.mxu0 0
    %3497 = vmatpush1.bf16.msra.mxu0 %v3407
    %3498 = vmatprep.subr.bf16.mxu0 0
    %3499 = vmatpush1.bf16.msra.mxu0 %v3408
    %3500 = vmatprep.subr.bf16.mxu0 0
    %3501 = vmatpush1.bf16.msra.mxu0 %v3409
    %3502 = vmatprep.subr.bf16.mxu0 0
    %3503 = vmatpush1.bf16.msra.mxu0 %v3410
    %3504 = vmatprep.subr.bf16.mxu0 0
    %3505 = vmatpush1.bf16.msra.mxu0 %v3411
    %3506 = vmatprep.subr.bf16.mxu0 0
    %3507 = vmatpush1.bf16.msra.mxu0 %v3412
    %3508 = vmatprep.subr.bf16.mxu0 0
    %3509 = vmatpush1.bf16.msra.mxu0 %v3413
    %3510 = vmatprep.subr.bf16.mxu0 0
    %3511 = vmatpush1.bf16.msra.mxu0 %v3414
    %3512 = vmatprep.subr.bf16.mxu0 0
    %3513 = vmatpush1.bf16.msra.mxu0 %v3415
    %3514 = vmatprep.subr.bf16.mxu0 0
    %3515 = vmatpush1.bf16.msra.mxu0 %v3416
    %3516 = vmatprep.subr.bf16.mxu0 0
    %3517 = vmatpush1.bf16.msra.mxu0 %v3417
    %3518 = vmatprep.subr.bf16.mxu0 0
    %3519 = vmatpush1.bf16.msra.mxu0 %v3418
    %3520 = vmatprep.subr.bf16.mxu0 0
    %3521 = vmatpush1.bf16.msra.mxu0 %v3419
    %3522 = vmatprep.subr.bf16.mxu0 0
    %3523 = vmatpush1.bf16.msra.mxu0 %v3420
    %3524 = vmatprep.subr.bf16.mxu0 0
    %3525 = vmatpush1.bf16.msra.mxu0 %v3421
    %3526 = vmatprep.mubr.bf16.mxu0 %v3261
    %3527 = vmatmul.mubr.bf16.gmra.mrb[0].mxu0 %v3260
    %v3528 = vpop.f32.mrb[0].mxu0
    %v3529 = vadd.f32 %v3489, %v3528
    %v3530 = vpop.f32.mrb[0].mxu0
    %v3531 = vpop.f32.mrb[0].mxu0
    %v3532 = vpop.f32.mrb[0].mxu0
    %3533 = vdwg.mxu0
    %v3534 = vadd.f32 %v2941, %v3529
    %v3535 = vlaneseq
    %v3536 = vshrl.u32 %v3535, 7
    %v3537 = vsub.s32 7, %v3536
    %v3538 = vrot.slane %v2230, %v3537
    %v3539 = vadd.f32 %v3534, %v3538
    %3540 = vadd.xlane.f32.xlu0 %v3539
    %v3541 = vpop.xlane.xlu0 %3540
    %v3542 = vmul.f32 %v3541, %v335
    %v3543 = vsub.f32 %v3539, %v3542
    %v3544 = vmul.f32 %v3543, %v3543
    %3545 = vadd.xlane.f32.xlu0 %v3544
    %v3546 = vpop.xlane.xlu0 %3545
    %v3547 = vmul.f32 %v3546, %v335
    %v3548 = vadd.f32 %v3547, 1e-06
    %v3549 = vrsqrt.pop %v3548
    %v3550 = vmul.f32 %v3543, %v3549
    %v3551 = vlaneseq
    %v3552 = vshrl.u32 %v3551, 7
    %v3553 = vsub.s32 6, %v3552
    %v3554 = vrot.slane %v185, %v3553
    %v3555 = vmul.f32 %v3550, %v3554
    %v3556 = vlaneseq
    %v3557 = vshrl.u32 %v3556, 7
    %v3558 = vsub.s32 7, %v3557
    %v3559 = vrot.slane %v185, %v3558
    %v3560 = vadd.f32 %v3555, %v3559
    %v3561 = vpack.c.bf16 %v3560, %v3560
    %v3562 = vlaneseq
    %v3563 = vshrl.u32 %v3562, 7
    %v3564 = vsub.s32 3, %v3563
    %v3565 = vrot.slane %v186, %v3564
    %v3566 = vlaneseq
    %v3567 = vshrl.u32 %v3566, 7
    %v3568 = vsub.s32 3, %v3567
    %v3569 = vrot.slane %v187, %v3568
    %v3586 = vunpack.c.l.b16 %v561
    %v3587 = vunpack.c.h.b16 %v561
    %v3588 = vunpack.c.l.b16 %v562
    %v3589 = vunpack.c.h.b16 %v562
    %v3590 = vunpack.c.l.b16 %v563
    %v3591 = vunpack.c.h.b16 %v563
    %v3592 = vunpack.c.l.b16 %v564
    %v3593 = vunpack.c.h.b16 %v564
    %v3594 = vunpack.c.l.b16 %v565
    %v3595 = vunpack.c.h.b16 %v565
    %v3596 = vunpack.c.l.b16 %v566
    %v3597 = vunpack.c.h.b16 %v566
    %v3598 = vunpack.c.l.b16 %v567
    %v3599 = vunpack.c.h.b16 %v567
    %v3600 = vunpack.c.l.b16 %v568
    %v3601 = vunpack.c.h.b16 %v568
    %v3602 = vunpack.c.l.b16 %v569
    %v3603 = vunpack.c.h.b16 %v569
    %v3604 = vunpack.c.l.b16 %v570
    %v3605 = vunpack.c.h.b16 %v570
    %v3606 = vunpack.c.l.b16 %v571
    %v3607 = vunpack.c.h.b16 %v571
    %v3608 = vunpack.c.l.b16 %v572
    %v3609 = vunpack.c.h.b16 %v572
    %v3610 = vunpack.c.l.b16 %v573
    %v3611 = vunpack.c.h.b16 %v573
    %v3612 = vunpack.c.l.b16 %v574
    %v3613 = vunpack.c.h.b16 %v574
    %v3614 = vunpack.c.l.b16 %v575
    %v3615 = vunpack.c.h.b16 %v575
    %v3616 = vunpack.c.l.b16 %v576
    %v3617 = vunpack.c.h.b16 %v576
    %v3618 = vpack.c.b16 %v3588, %v3586
    %v3619 = vpack.c.b16 %v3589, %v3587
    %v3620 = vpack.c.b16 %v3592, %v3590
    %v3621 = vpack.c.b16 %v3593, %v3591
    %v3622 = vpack.c.b16 %v3596, %v3594
    %v3623 = vpack.c.b16 %v3597, %v3595
    %v3624 = vpack.c.b16 %v3600, %v3598
    %v3625 = vpack.c.b16 %v3601, %v3599
    %v3626 = vpack.c.b16 %v3604, %v3602
    %v3627 = vpack.c.b16 %v3605, %v3603
    %v3628 = vpack.c.b16 %v3608, %v3606
    %v3629 = vpack.c.b16 %v3609, %v3607
    %v3630 = vpack.c.b16 %v3612, %v3610
    %v3631 = vpack.c.b16 %v3613, %v3611
    %v3632 = vpack.c.b16 %v3616, %v3614
    %v3633 = vpack.c.b16 %v3617, %v3615
    %3650 = vmatprep.subr.bf16.mxu0 %v3619
    %3651 = vmatpush1.bf16.msra.mxu0 %v3618
    %3652 = vmatprep.subr.bf16.mxu0 %v3621
    %3653 = vmatpush1.bf16.msra.mxu0 %v3620
    %3654 = vmatprep.subr.bf16.mxu0 %v3623
    %3655 = vmatpush1.bf16.msra.mxu0 %v3622
    %3656 = vmatprep.subr.bf16.mxu0 %v3625
    %3657 = vmatpush1.bf16.msra.mxu0 %v3624
    %3658 = vmatprep.subr.bf16.mxu0 %v3627
    %3659 = vmatpush1.bf16.msra.mxu0 %v3626
    %3660 = vmatprep.subr.bf16.mxu0 %v3629
    %3661 = vmatpush1.bf16.msra.mxu0 %v3628
    %3662 = vmatprep.subr.bf16.mxu0 %v3631
    %3663 = vmatpush1.bf16.msra.mxu0 %v3630
    %3664 = vmatprep.subr.bf16.mxu0 %v3633
    %3665 = vmatpush1.bf16.msra.mxu0 %v3632
    %3666 = vmatprep.subr.bf16.mxu0 0
    %3667 = vmatpush1.bf16.msra.mxu0 0
    %3668 = vmatprep.subr.bf16.mxu0 0
    %3669 = vmatpush1.bf16.msra.mxu0 0
    %3670 = vmatprep.subr.bf16.mxu0 0
    %3671 = vmatpush1.bf16.msra.mxu0 0
    %3672 = vmatprep.subr.bf16.mxu0 0
    %3673 = vmatpush1.bf16.msra.mxu0 0
    %3674 = vmatprep.subr.bf16.mxu0 0
    %3675 = vmatpush1.bf16.msra.mxu0 0
    %3676 = vmatprep.subr.bf16.mxu0 0
    %3677 = vmatpush1.bf16.msra.mxu0 0
    %3678 = vmatprep.subr.bf16.mxu0 0
    %3679 = vmatpush1.bf16.msra.mxu0 0
    %3680 = vmatprep.subr.bf16.mxu0 0
    %3681 = vmatpush1.bf16.msra.mxu0 0
    %3682 = vmatprep.mubr.bf16.mxu0 0
    %3683 = vmatmul.mubr.bf16.gmra.mrb[0].mxu0 %v3561
    %v3684 = vpop.f32.mrb[0].mxu0
    %v3685 = vadd.f32 %v3565, %v3684
    %v3686 = vpop.f32.mrb[0].mxu0
    %v3687 = vadd.f32 %v3569, %v3686
    %v3688 = vpop.f32.mrb[0].mxu0
    %v3689 = vpop.f32.mrb[0].mxu0
    %3690 = vdwg.mxu0
    %v3691 = vmul.f32 %v3687, %v3687
    %3692 = vadd.xlane.f32.xlu0 %v3691
    %v3693 = vpop.xlane.xlu0 %3692
    %v3694 = vrsqrt.pop %v3693
    %v3695 = vmul.f32 %v3687, %v3694
    %v3696 = vpack.c.bf16 %v3695, %v3695
    %v3713 = vunpack.c.l.b16 %v577
    %v3714 = vunpack.c.l.b16 %v578
    %v3715 = vunpack.c.l.b16 %v579
    %v3716 = vunpack.c.l.b16 %v580
    %v3717 = vunpack.c.l.b16 %v581
    %v3718 = vunpack.c.l.b16 %v582
    %v3719 = vunpack.c.l.b16 %v583
    %v3720 = vunpack.c.l.b16 %v584
    %v3721 = vunpack.c.l.b16 %v585
    %v3722 = vunpack.c.l.b16 %v586
    %v3723 = vunpack.c.l.b16 %v587
    %v3724 = vunpack.c.l.b16 %v588
    %v3725 = vunpack.c.l.b16 %v589
    %v3726 = vunpack.c.l.b16 %v590
    %v3727 = vunpack.c.l.b16 %v591
    %v3728 = vunpack.c.l.b16 %v592
    %v3729 = vpack.c.b16 %v3714, %v3713
    %v3730 = vpack.c.b16 %v3716, %v3715
    %v3731 = vpack.c.b16 %v3718, %v3717
    %v3732 = vpack.c.b16 %v3720, %v3719
    %v3733 = vpack.c.b16 %v3722, %v3721
    %v3734 = vpack.c.b16 %v3724, %v3723
    %v3735 = vpack.c.b16 %v3726, %v3725
    %v3736 = vpack.c.b16 %v3728, %v3727
    %3745 = vmatprep.subr.bf16.mxu0 0
    %3746 = vmatpush1.bf16.msra.mxu0 %v3729
    %3747 = vmatprep.subr.bf16.mxu0 0
    %3748 = vmatpush1.bf16.msra.mxu0 %v3730
    %3749 = vmatprep.subr.bf16.mxu0 0
    %3750 = vmatpush1.bf16.msra.mxu0 %v3731
    %3751 = vmatprep.subr.bf16.mxu0 0
    %3752 = vmatpush1.bf16.msra.mxu0 %v3732
    %3753 = vmatprep.subr.bf16.mxu0 0
    %3754 = vmatpush1.bf16.msra.mxu0 %v3733
    %3755 = vmatprep.subr.bf16.mxu0 0
    %3756 = vmatpush1.bf16.msra.mxu0 %v3734
    %3757 = vmatprep.subr.bf16.mxu0 0
    %3758 = vmatpush1.bf16.msra.mxu0 %v3735
    %3759 = vmatprep.subr.bf16.mxu0 0
    %3760 = vmatpush1.bf16.msra.mxu0 %v3736
    %3761 = vmatprep.subr.bf16.mxu0 0
    %3762 = vmatpush1.bf16.msra.mxu0 0
    %3763 = vmatprep.subr.bf16.mxu0 0
    %3764 = vmatpush1.bf16.msra.mxu0 0
    %3765 = vmatprep.subr.bf16.mxu0 0
    %3766 = vmatpush1.bf16.msra.mxu0 0
    %3767 = vmatprep.subr.bf16.mxu0 0
    %3768 = vmatpush1.bf16.msra.mxu0 0
    %3769 = vmatprep.subr.bf16.mxu0 0
    %3770 = vmatpush1.bf16.msra.mxu0 0
    %3771 = vmatprep.subr.bf16.mxu0 0
    %3772 = vmatpush1.bf16.msra.mxu0 0
    %3773 = vmatprep.subr.bf16.mxu0 0
    %3774 = vmatpush1.bf16.msra.mxu0 0
    %3775 = vmatprep.subr.bf16.mxu0 0
    %3776 = vmatpush1.bf16.msra.mxu0 0
    %3777 = vmatprep.mubr.bf16.mxu0 0
    %3778 = vmatmul.mubr.bf16.gmra.mrb[0].mxu0 %v3696
    %v3779 = vpop.f32.mrb[0].mxu0
    %v3780 = vadd.f32 0.0, %v3779
    %v3781 = vpop.f32.mrb[0].mxu0
    %v3782 = vpop.f32.mrb[0].mxu0
    %v3783 = vpop.f32.mrb[0].mxu0
    %3784 = vdwg.mxu0
    %3785 = vst [vmem:[#allocation21] sm:$0xff] %v3685
    %3786 = vst [vmem:[#allocation21 + $0x8] sm:$0xff] %v3780
    // Predicated region
    $region90: #{tpu_custom_call.1} parent=1 // pred_check
      _
    $region91: #{tpu_custom_call.1} parent=1 // pred_check_branch
      %3788 = sbr.rel (0) target = $region93
    $region92: #{tpu_custom_call.1} parent=1 // pred_region
      %s3790 = ssub.s32 256, 256
      %3791 = vsyncadd [#allocation5], %s3790
      %s3793 = sshll.u32 [#allocation21], 4
      %s3794 = int_to_ptr.vmem [resolvable:$true] %s3793
      %3796 = dma.vmem_to_hbm [thread:$0]  %s3794, 256, %s11, [#allocation5]
    $region93: #{tpu_custom_call.1} parent=1 // pred_fallthru
      _
    // Predicated region
    $region94: #{tpu_custom_call.1} parent=1 // pred_check
      _
    $region95: #{tpu_custom_call.1} parent=1 // pred_check_branch
      %3798 = sbr.rel (0) target = $region97
    $region96: #{tpu_custom_call.1} parent=1 // pred_region
      %3799 = dma.done [#allocation5], 256
    $region97: #{tpu_custom_call.1} parent=1 // pred_fallthru
      _
    %3800 = vsyncpa [#allocation4], 1
    %3801 = vsyncpa [#allocation7], 1
    %3802 = vsyncpa [#allocation10], 1
    %3803 = vsyncpa [#allocation13], 1
    %3804 = vsyncpa [#allocation16], 1
    %3805 = vsyncpa [#allocation19], 1
    %3806 = vsyncpa [#allocation5], 1

</llo_original>
